<compile_context>
chip_gen: v7x
topology: tpu7x:2x2x1
jax: 0.10.0
libtpu: 0.0.40
codegen_flags: <defaults>
</compile_context>

<pallas_src>
import jax
import jax.numpy as jnp
from jax.experimental import pallas as pl
from jax.experimental.pallas import tpu as pltpu

EPS = 1e-5  # torch.nn.BatchNorm2d default


def _make_kernel(N, H, W, CP, NPW, guard):
    """Builds the fused (conv3x3 + BN + ReLU) x 2 kernel for fixed shapes."""
    Hp, Wp = H + 2, W + 2
    inv_count = 1.0 / float(N * H * W)
    # Tap read-offsets relative to the output position, in flattened
    # (row-major, Wp-strided) canvas coordinates; order matches the folded
    # weight layout built by the wrapper (tap-major, t = ky*3 + kx).
    shifts = [(ky - 1) * Wp + (kx - 1) for ky in range(3) for kx in range(3)]

    def kernel(canvas_ref, w1_ref, g1_ref, be1_ref, w2_ref, g2_ref, be2_ref,
               mask_ref, out_ref, act_ref):
        mask = mask_ref[...]                                     # (1, NPW)

        def conv_bn_relu(src_ref, w_ref, g_ref, b_ref):
            # Conv 3x3 as 9 accumulated MXU matmuls straight from static
            # lane-shifted canvas slices (no im2col, no fold scratch).
            acc = None
            for t, s in enumerate(shifts):
                tap = src_ref[:, guard + s:guard + s + NPW]      # (CP, NPW)
                part = jnp.dot(w_ref[:, t * CP:(t + 1) * CP], tap,
                               preferred_element_type=jnp.float32)
                acc = part if acc is None else acc + part        # (CP, NPW)

            # One-pass training-mode BatchNorm over the N*H*W interior pixels
            # (masked lane-axis reductions; padded/ring lanes carry mask=0).
            am = acc * mask
            ssum = jnp.sum(am, axis=1, keepdims=True)            # (CP, 1)
            ssq = jnp.sum(am * am, axis=1, keepdims=True)        # (CP, 1)
            mean = ssum * inv_count
            var = jnp.maximum(ssq * inv_count - mean * mean, 0.0)
            scale = g_ref[...] * jax.lax.rsqrt(var + EPS)        # (CP, 1)
            shift = b_ref[...] - mean * scale                    # (CP, 1)
            y = acc * scale + shift
            # ReLU; the mask also re-zeroes the padding ring and the lane
            # tail, so the result is directly the zero-padded input canvas
            # of the next conv.
            return jnp.maximum(y, 0.0) * mask                    # (CP, NPW)

        # Zero only the two lane-aligned guard bands of the activation
        # canvas; the interior ring / tail are re-zeroed by the mask above.
        act_ref[:, :guard] = jnp.zeros((CP, guard), jnp.float32)
        act_ref[:, guard + NPW:] = jnp.zeros((CP, guard), jnp.float32)

        # Block 1: intermediate activation stays in the VMEM scratch canvas.
        act_ref[:, guard:guard + NPW] = conv_bn_relu(
            canvas_ref, w1_ref, g1_ref, be1_ref)
        # Block 2: reads the VMEM-resident canvas, writes the output.
        out_ref[...] = conv_bn_relu(act_ref, w2_ref, g2_ref, be2_ref)

    return kernel


def convs1_forward(x_nchw, params):
    """Full Convs1 forward; input/output are NCHW to match PyTorch."""
    N, Cin, H, W = x_nchw.shape
    Cout = params["w1"].shape[-1]
    CP = ((max(Cin, Cout) + 7) // 8) * 8     # channel slots, sublane aligned
    Hp, Wp = H + 2, W + 2
    NPc = N * Hp * Wp                        # real fused N*Hp*Wp width
    NPW = ((NPc + 127) // 128) * 128         # lane-aligned (128x) width
    guard = ((Wp + 1 + 127) // 128) * 128    # lane-aligned zero guard band

    # ---------- wrapper-side layout glue (O(input) bytes, no im2col) -------
    xc = jnp.transpose(x_nchw, (1, 0, 2, 3)).astype(jnp.float32)  # (Cin,N,H,W)
    xc = jnp.pad(xc, ((0, CP - Cin), (0, 0), (1, 1), (1, 1)))     # (CP,N,Hp,Wp)
    canvas = jnp.pad(xc.reshape(CP, NPc),
                     ((0, 0), (guard, guard + NPW - NPc)))        # (CP, NPW+2g)

    def fold_w(w_hwio):                      # -> (CP, 9*CP), tap-major
        ci, co = w_hwio.shape[2], w_hwio.shape[3]
        w = jnp.transpose(w_hwio, (3, 0, 1, 2))          # (Cout, 3, 3, Cin)
        w = jnp.pad(w, ((0, CP - co), (0, 0), (0, 0), (0, CP - ci)))
        return w.reshape(CP, 9 * CP).astype(jnp.float32)

    def fold_v(v, fill):                     # -> (CP, 1) per-channel vector
        return jnp.pad(v, (0, CP - v.shape[0]),
                       constant_values=fill).reshape(CP, 1).astype(jnp.float32)

    # NOTE: conv biases params["b1"]/["b2"] are intentionally NOT passed to
    # the kernel -- training-mode BatchNorm subtracts the batch mean, so a
    # per-channel constant bias cancels exactly (the reference keeps them).
    w1, w2 = fold_w(params["w1"]), fold_w(params["w2"])
    g1, be1 = fold_v(params["g1"], 1.0), fold_v(params["be1"], 0.0)
    g2, be2 = fold_v(params["g2"], 1.0), fold_v(params["be2"], 0.0)

    # Interior-pixel mask (1 inside the HxW interior of every image, 0 on the
    # padding ring and on the lane-alignment tail).
    m = jnp.zeros((N, Hp, Wp), jnp.float32).at[:, 1:H + 1, 1:W + 1].set(1.0)
    mask = jnp.pad(m.reshape(1, NPc), ((0, 0), (0, NPW - NPc)))

    # Explicit scoped-VMEM budget from the actual footprint (with headroom).
    footprint = 4 * (2 * CP * (NPW + 2 * guard)        # input + act canvases
                     + CP * NPW                        # output
                     + 2 * 9 * CP * CP + 4 * CP + NPW)  # weights/vectors/mask
    vmem_limit = int(min(max(2 * footprint, 16 * 1024 * 1024),
                         48 * 1024 * 1024))

    vmem = pl.BlockSpec(memory_space=pltpu.MemorySpace.VMEM)
    out = pl.pallas_call(
        _make_kernel(N, H, W, CP, NPW, guard),
        out_shape=jax.ShapeDtypeStruct((CP, NPW), jnp.float32),
        in_specs=[vmem] * 8,
        out_specs=vmem,
        scratch_shapes=[
            pltpu.VMEM((CP, NPW + 2 * guard), jnp.float32),  # block-1 canvas
        ],
        compiler_params=pltpu.CompilerParams(vmem_limit_bytes=vmem_limit),
    )(canvas, w1, g1, be1, w2, g2, be2, mask)

    out = out[:, :NPc].reshape(CP, N, Hp, Wp)[:Cout, :, 1:H + 1, 1:W + 1]
    return jnp.transpose(out, (1, 0, 2, 3))                     # -> NCHW


# ---------------- pure-JAX reference (for correctness check) ----------------
def _ref_block(x_nhwc, w_hwio, bias, gamma, beta):
    y = jax.lax.conv_general_dilated(
        x_nhwc, w_hwio, window_strides=(1, 1), padding="SAME",
        dimension_numbers=("NHWC", "HWIO", "NHWC")) + bias
    mean = y.mean(axis=(0, 1, 2))
    var = jnp.square(y - mean).mean(axis=(0, 1, 2))
    y = (y - mean) * jax.lax.rsqrt(var + EPS) * gamma + beta
    return jnp.maximum(y, 0.0)


def convs1_reference(x_nchw, params):
    x = jnp.transpose(x_nchw, (0, 2, 3, 1))
    y = _ref_block(x, params["w1"], params["b1"], params["g1"], params["be1"])
    y = _ref_block(y, params["w2"], params["b2"], params["g2"], params["be2"])
    return jnp.transpose(y, (0, 3, 1, 2))


if __name__ == "__main__":
    # Small shapes consistent with the module: in_channels=4, out_channels=8.
    N, Cin, Cout, H, W = 2, 4, 8, 16, 16

    key = jax.random.PRNGKey(0)
    k1, k2, k3, k4, kx = jax.random.split(key, 5)

    params = {
        # Conv weights in HWIO (equivalent to transposing PyTorch's OIHW).
        "w1": 0.1 * jax.random.normal(k1, (3, 3, Cin, Cout), jnp.float32),
        "b1": 0.1 * jax.random.normal(k2, (Cout,), jnp.float32),
        "g1": jnp.ones((Cout,), jnp.float32),    # BatchNorm2d default weight
        "be1": jnp.zeros((Cout,), jnp.float32),  # BatchNorm2d default bias
        "w2": 0.1 * jax.random.normal(k3, (3, 3, Cout, Cout), jnp.float32),
        "b2": 0.1 * jax.random.normal(k4, (Cout,), jnp.float32),
        "g2": jnp.ones((Cout,), jnp.float32),
        "be2": jnp.zeros((Cout,), jnp.float32),
    }

    x = jax.random.normal(kx, (N, Cin, H, W), jnp.float32)  # NCHW, like PyTorch

    out = jax.jit(convs1_forward)(x, params)
    out = jax.block_until_ready(out)

    ref = convs1_reference(x, params)
    assert out.shape == (N, Cout, H, W), out.shape
    err = float(jnp.max(jnp.abs(out - ref)))
    assert err < 1e-3, err

    print("KERNEL_OK")
</pallas_src>

<mosaic_0001>
module attributes {stable_mosaic.version = 11 : i64} {
  func.func @kernel(%arg0: memref<8x1024xf32, #tpu.memory_space<vmem>>, %arg1: memref<8x72xf32, #tpu.memory_space<vmem>>, %arg2: memref<8x1xf32, #tpu.memory_space<vmem>>, %arg3: memref<8x1xf32, #tpu.memory_space<vmem>>, %arg4: memref<8x72xf32, #tpu.memory_space<vmem>>, %arg5: memref<8x1xf32, #tpu.memory_space<vmem>>, %arg6: memref<8x1xf32, #tpu.memory_space<vmem>>, %arg7: memref<1x768xf32, #tpu.memory_space<vmem>>, %arg8: memref<8x768xf32, #tpu.memory_space<vmem>>, %arg9: memref<8x1024xf32, #tpu.memory_space<vmem>>) attributes {dimension_semantics = [], scalar_prefetch = 0 : i64, scratch_operands = 1 : i64, tpu.core_type = #tpu.core_type<tc>} {
    %c0 = arith.constant 0 : index
    %c0_0 = arith.constant 0 : index
    %0 = vector.load %arg7[%c0, %c0_0] : memref<1x768xf32, #tpu.memory_space<vmem>>, vector<1x768xf32>
    %cst = arith.constant 0.000000e+00 : f32
    %1 = vector.broadcast %cst : f32 to vector<8x128xf32>
    %c0_1 = arith.constant 0 : index
    %c0_2 = arith.constant 0 : index
    %2 = vector.load %arg9[%c0_1, %c0_2] : memref<8x1024xf32, #tpu.memory_space<vmem>>, vector<8x128xf32>
    tpu.vector_store %arg9[%c0_1, %c0_2], %1 {strides = array<i32>} : memref<8x1024xf32, #tpu.memory_space<vmem>>, vector<8x128xf32>,
    %cst_3 = arith.constant 0.000000e+00 : f32
    %3 = vector.broadcast %cst_3 : f32 to vector<8x128xf32>
    %c0_4 = arith.constant 0 : index
    %c896 = arith.constant 896 : index
    %4 = vector.load %arg9[%c0_4, %c896] : memref<8x1024xf32, #tpu.memory_space<vmem>>, vector<8x128xf32>
    tpu.vector_store %arg9[%c0_4, %c896], %3 {strides = array<i32>} : memref<8x1024xf32, #tpu.memory_space<vmem>>, vector<8x128xf32>,
    %c0_5 = arith.constant 0 : index
    %c109 = arith.constant 109 : index
    %5 = vector.load %arg0[%c0_5, %c109] : memref<8x1024xf32, #tpu.memory_space<vmem>>, vector<8x768xf32>
    %c0_6 = arith.constant 0 : index
    %c0_7 = arith.constant 0 : index
    %6 = vector.load %arg1[%c0_6, %c0_7] : memref<8x72xf32, #tpu.memory_space<vmem>>, vector<8x8xf32>
    %cst_8 = arith.constant dense<0.000000e+00> : vector<8x768xf32>
    %7 = tpu.matmul %6, %5, %cst_8 {dimension_numbers = #tpu.dot_dimension_numbers<[1], [0], [0], [1], [0, 0, 1, 1], [], []>} : vector<8x8xf32>, vector<8x768xf32>, vector<8x768xf32> -> vector<8x768xf32>
    %c0_9 = arith.constant 0 : index
    %c110 = arith.constant 110 : index
    %8 = vector.load %arg0[%c0_9, %c110] : memref<8x1024xf32, #tpu.memory_space<vmem>>, vector<8x768xf32>
    %c0_10 = arith.constant 0 : index
    %c8 = arith.constant 8 : index
    %9 = vector.load %arg1[%c0_10, %c8] : memref<8x72xf32, #tpu.memory_space<vmem>>, vector<8x8xf32>
    %cst_11 = arith.constant dense<0.000000e+00> : vector<8x768xf32>
    %10 = tpu.matmul %9, %8, %cst_11 {dimension_numbers = #tpu.dot_dimension_numbers<[1], [0], [0], [1], [0, 0, 1, 1], [], []>} : vector<8x8xf32>, vector<8x768xf32>, vector<8x768xf32> -> vector<8x768xf32>
    %11 = arith.addf %7, %10 : vector<8x768xf32>
    %c0_12 = arith.constant 0 : index
    %c111 = arith.constant 111 : index
    %12 = vector.load %arg0[%c0_12, %c111] : memref<8x1024xf32, #tpu.memory_space<vmem>>, vector<8x768xf32>
    %c0_13 = arith.constant 0 : index
    %c16 = arith.constant 16 : index
    %13 = vector.load %arg1[%c0_13, %c16] : memref<8x72xf32, #tpu.memory_space<vmem>>, vector<8x8xf32>
    %cst_14 = arith.constant dense<0.000000e+00> : vector<8x768xf32>
    %14 = tpu.matmul %13, %12, %cst_14 {dimension_numbers = #tpu.dot_dimension_numbers<[1], [0], [0], [1], [0, 0, 1, 1], [], []>} : vector<8x8xf32>, vector<8x768xf32>, vector<8x768xf32> -> vector<8x768xf32>
    %15 = arith.addf %11, %14 : vector<8x768xf32>
    %c0_15 = arith.constant 0 : index
    %c127 = arith.constant 127 : index
    %16 = vector.load %arg0[%c0_15, %c127] : memref<8x1024xf32, #tpu.memory_space<vmem>>, vector<8x768xf32>
    %c0_16 = arith.constant 0 : index
    %c24 = arith.constant 24 : index
    %17 = vector.load %arg1[%c0_16, %c24] : memref<8x72xf32, #tpu.memory_space<vmem>>, vector<8x8xf32>
    %cst_17 = arith.constant dense<0.000000e+00> : vector<8x768xf32>
    %18 = tpu.matmul %17, %16, %cst_17 {dimension_numbers = #tpu.dot_dimension_numbers<[1], [0], [0], [1], [0, 0, 1, 1], [], []>} : vector<8x8xf32>, vector<8x768xf32>, vector<8x768xf32> -> vector<8x768xf32>
    %19 = arith.addf %15, %18 : vector<8x768xf32>
    %c0_18 = arith.constant 0 : index
    %c128 = arith.constant 128 : index
    %20 = vector.load %arg0[%c0_18, %c128] : memref<8x1024xf32, #tpu.memory_space<vmem>>, vector<8x768xf32>
    %c0_19 = arith.constant 0 : index
    %c32 = arith.constant 32 : index
    %21 = vector.load %arg1[%c0_19, %c32] : memref<8x72xf32, #tpu.memory_space<vmem>>, vector<8x8xf32>
    %cst_20 = arith.constant dense<0.000000e+00> : vector<8x768xf32>
    %22 = tpu.matmul %21, %20, %cst_20 {dimension_numbers = #tpu.dot_dimension_numbers<[1], [0], [0], [1], [0, 0, 1, 1], [], []>} : vector<8x8xf32>, vector<8x768xf32>, vector<8x768xf32> -> vector<8x768xf32>
    %23 = arith.addf %19, %22 : vector<8x768xf32>
    %c0_21 = arith.constant 0 : index
    %c129 = arith.constant 129 : index
    %24 = vector.load %arg0[%c0_21, %c129] : memref<8x1024xf32, #tpu.memory_space<vmem>>, vector<8x768xf32>
    %c0_22 = arith.constant 0 : index
    %c40 = arith.constant 40 : index
    %25 = vector.load %arg1[%c0_22, %c40] : memref<8x72xf32, #tpu.memory_space<vmem>>, vector<8x8xf32>
    %cst_23 = arith.constant dense<0.000000e+00> : vector<8x768xf32>
    %26 = tpu.matmul %25, %24, %cst_23 {dimension_numbers = #tpu.dot_dimension_numbers<[1], [0], [0], [1], [0, 0, 1, 1], [], []>} : vector<8x8xf32>, vector<8x768xf32>, vector<8x768xf32> -> vector<8x768xf32>
    %27 = arith.addf %23, %26 : vector<8x768xf32>
    %c0_24 = arith.constant 0 : index
    %c145 = arith.constant 145 : index
    %28 = vector.load %arg0[%c0_24, %c145] : memref<8x1024xf32, #tpu.memory_space<vmem>>, vector<8x768xf32>
    %c0_25 = arith.constant 0 : index
    %c48 = arith.constant 48 : index
    %29 = vector.load %arg1[%c0_25, %c48] : memref<8x72xf32, #tpu.memory_space<vmem>>, vector<8x8xf32>
    %cst_26 = arith.constant dense<0.000000e+00> : vector<8x768xf32>
    %30 = tpu.matmul %29, %28, %cst_26 {dimension_numbers = #tpu.dot_dimension_numbers<[1], [0], [0], [1], [0, 0, 1, 1], [], []>} : vector<8x8xf32>, vector<8x768xf32>, vector<8x768xf32> -> vector<8x768xf32>
    %31 = arith.addf %27, %30 : vector<8x768xf32>
    %c0_27 = arith.constant 0 : index
    %c146 = arith.constant 146 : index
    %32 = vector.load %arg0[%c0_27, %c146] : memref<8x1024xf32, #tpu.memory_space<vmem>>, vector<8x768xf32>
    %c0_28 = arith.constant 0 : index
    %c56 = arith.constant 56 : index
    %33 = vector.load %arg1[%c0_28, %c56] : memref<8x72xf32, #tpu.memory_space<vmem>>, vector<8x8xf32>
    %cst_29 = arith.constant dense<0.000000e+00> : vector<8x768xf32>
    %34 = tpu.matmul %33, %32, %cst_29 {dimension_numbers = #tpu.dot_dimension_numbers<[1], [0], [0], [1], [0, 0, 1, 1], [], []>} : vector<8x8xf32>, vector<8x768xf32>, vector<8x768xf32> -> vector<8x768xf32>
    %35 = arith.addf %31, %34 : vector<8x768xf32>
    %c0_30 = arith.constant 0 : index
    %c147 = arith.constant 147 : index
    %36 = vector.load %arg0[%c0_30, %c147] : memref<8x1024xf32, #tpu.memory_space<vmem>>, vector<8x768xf32>
    %c0_31 = arith.constant 0 : index
    %c64 = arith.constant 64 : index
    %37 = vector.load %arg1[%c0_31, %c64] : memref<8x72xf32, #tpu.memory_space<vmem>>, vector<8x8xf32>
    %cst_32 = arith.constant dense<0.000000e+00> : vector<8x768xf32>
    %38 = tpu.matmul %37, %36, %cst_32 {dimension_numbers = #tpu.dot_dimension_numbers<[1], [0], [0], [1], [0, 0, 1, 1], [], []>} : vector<8x8xf32>, vector<8x768xf32>, vector<8x768xf32> -> vector<8x768xf32>
    %39 = arith.addf %35, %38 : vector<8x768xf32>
    %40 = vector.broadcast %0 : vector<1x768xf32> to vector<8x768xf32>
    %41 = arith.mulf %39, %40 : vector<8x768xf32>
    %cst_33 = arith.constant dense<0.000000e+00> : vector<8xf32>
    %42 = vector.multi_reduction <add>, %41, %cst_33 [1] : vector<8x768xf32> to vector<8xf32>
    %43 = vector.shape_cast %42 : vector<8xf32> to vector<8x1xf32>
    %44 = arith.mulf %41, %41 : vector<8x768xf32>
    %cst_34 = arith.constant dense<0.000000e+00> : vector<8xf32>
    %45 = vector.multi_reduction <add>, %44, %cst_34 [1] : vector<8x768xf32> to vector<8xf32>
    %46 = vector.shape_cast %45 : vector<8xf32> to vector<8x1xf32>
    %cst_35 = arith.constant 0.001953125 : f32
    %47 = vector.broadcast %cst_35 : f32 to vector<8x1xf32>
    %48 = arith.mulf %43, %47 : vector<8x1xf32>
    %cst_36 = arith.constant 0.001953125 : f32
    %49 = vector.broadcast %cst_36 : f32 to vector<8x1xf32>
    %50 = arith.mulf %46, %49 : vector<8x1xf32>
    %51 = arith.mulf %48, %48 : vector<8x1xf32>
    %52 = arith.subf %50, %51 : vector<8x1xf32>
    %cst_37 = arith.constant 0.000000e+00 : f32
    %53 = vector.broadcast %cst_37 : f32 to vector<8x1xf32>
    %54 = arith.maximumf %52, %53 : vector<8x1xf32>
    %c0_38 = arith.constant 0 : index
    %c0_39 = arith.constant 0 : index
    %55 = vector.load %arg2[%c0_38, %c0_39] : memref<8x1xf32, #tpu.memory_space<vmem>>, vector<8x1xf32>
    %cst_40 = arith.constant 9.99999974E-6 : f32
    %56 = vector.broadcast %cst_40 : f32 to vector<8x1xf32>
    %57 = arith.addf %54, %56 : vector<8x1xf32>
    %58 = math.rsqrt %57 : vector<8x1xf32>
    %59 = arith.mulf %55, %58 : vector<8x1xf32>
    %c0_41 = arith.constant 0 : index
    %c0_42 = arith.constant 0 : index
    %60 = vector.load %arg3[%c0_41, %c0_42] : memref<8x1xf32, #tpu.memory_space<vmem>>, vector<8x1xf32>
    %61 = arith.mulf %48, %59 : vector<8x1xf32>
    %62 = arith.subf %60, %61 : vector<8x1xf32>
    %63 = vector.broadcast %59 : vector<8x1xf32> to vector<8x768xf32>
    %64 = arith.mulf %39, %63 : vector<8x768xf32>
    %65 = vector.broadcast %62 : vector<8x1xf32> to vector<8x768xf32>
    %66 = arith.addf %64, %65 : vector<8x768xf32>
    %cst_43 = arith.constant 0.000000e+00 : f32
    %67 = vector.broadcast %cst_43 : f32 to vector<8x768xf32>
    %68 = arith.maximumf %66, %67 : vector<8x768xf32>
    %69 = vector.broadcast %0 : vector<1x768xf32> to vector<8x768xf32>
    %70 = arith.mulf %68, %69 : vector<8x768xf32>
    %c0_44 = arith.constant 0 : index
    %c128_45 = arith.constant 128 : index
    %71 = vector.load %arg9[%c0_44, %c128_45] : memref<8x1024xf32, #tpu.memory_space<vmem>>, vector<8x768xf32>
    tpu.vector_store %arg9[%c0_44, %c128_45], %70 {strides = array<i32>} : memref<8x1024xf32, #tpu.memory_space<vmem>>, vector<8x768xf32>,
    %c0_46 = arith.constant 0 : index
    %c109_47 = arith.constant 109 : index
    %72 = vector.load %arg9[%c0_46, %c109_47] : memref<8x1024xf32, #tpu.memory_space<vmem>>, vector<8x768xf32>
    %c0_48 = arith.constant 0 : index
    %c0_49 = arith.constant 0 : index
    %73 = vector.load %arg4[%c0_48, %c0_49] : memref<8x72xf32, #tpu.memory_space<vmem>>, vector<8x8xf32>
    %cst_50 = arith.constant dense<0.000000e+00> : vector<8x768xf32>
    %74 = tpu.matmul %73, %72, %cst_50 {dimension_numbers = #tpu.dot_dimension_numbers<[1], [0], [0], [1], [0, 0, 1, 1], [], []>} : vector<8x8xf32>, vector<8x768xf32>, vector<8x768xf32> -> vector<8x768xf32>
    %c0_51 = arith.constant 0 : index
    %c110_52 = arith.constant 110 : index
    %75 = vector.load %arg9[%c0_51, %c110_52] : memref<8x1024xf32, #tpu.memory_space<vmem>>, vector<8x768xf32>
    %c0_53 = arith.constant 0 : index
    %c8_54 = arith.constant 8 : index
    %76 = vector.load %arg4[%c0_53, %c8_54] : memref<8x72xf32, #tpu.memory_space<vmem>>, vector<8x8xf32>
    %cst_55 = arith.constant dense<0.000000e+00> : vector<8x768xf32>
    %77 = tpu.matmul %76, %75, %cst_55 {dimension_numbers = #tpu.dot_dimension_numbers<[1], [0], [0], [1], [0, 0, 1, 1], [], []>} : vector<8x8xf32>, vector<8x768xf32>, vector<8x768xf32> -> vector<8x768xf32>
    %78 = arith.addf %74, %77 : vector<8x768xf32>
    %c0_56 = arith.constant 0 : index
    %c111_57 = arith.constant 111 : index
    %79 = vector.load %arg9[%c0_56, %c111_57] : memref<8x1024xf32, #tpu.memory_space<vmem>>, vector<8x768xf32>
    %c0_58 = arith.constant 0 : index
    %c16_59 = arith.constant 16 : index
    %80 = vector.load %arg4[%c0_58, %c16_59] : memref<8x72xf32, #tpu.memory_space<vmem>>, vector<8x8xf32>
    %cst_60 = arith.constant dense<0.000000e+00> : vector<8x768xf32>
    %81 = tpu.matmul %80, %79, %cst_60 {dimension_numbers = #tpu.dot_dimension_numbers<[1], [0], [0], [1], [0, 0, 1, 1], [], []>} : vector<8x8xf32>, vector<8x768xf32>, vector<8x768xf32> -> vector<8x768xf32>
    %82 = arith.addf %78, %81 : vector<8x768xf32>
    %c0_61 = arith.constant 0 : index
    %c127_62 = arith.constant 127 : index
    %83 = vector.load %arg9[%c0_61, %c127_62] : memref<8x1024xf32, #tpu.memory_space<vmem>>, vector<8x768xf32>
    %c0_63 = arith.constant 0 : index
    %c24_64 = arith.constant 24 : index
    %84 = vector.load %arg4[%c0_63, %c24_64] : memref<8x72xf32, #tpu.memory_space<vmem>>, vector<8x8xf32>
    %cst_65 = arith.constant dense<0.000000e+00> : vector<8x768xf32>
    %85 = tpu.matmul %84, %83, %cst_65 {dimension_numbers = #tpu.dot_dimension_numbers<[1], [0], [0], [1], [0, 0, 1, 1], [], []>} : vector<8x8xf32>, vector<8x768xf32>, vector<8x768xf32> -> vector<8x768xf32>
    %86 = arith.addf %82, %85 : vector<8x768xf32>
    %c0_66 = arith.constant 0 : index
    %c128_67 = arith.constant 128 : index
    %87 = vector.load %arg9[%c0_66, %c128_67] : memref<8x1024xf32, #tpu.memory_space<vmem>>, vector<8x768xf32>
    %c0_68 = arith.constant 0 : index
    %c32_69 = arith.constant 32 : index
    %88 = vector.load %arg4[%c0_68, %c32_69] : memref<8x72xf32, #tpu.memory_space<vmem>>, vector<8x8xf32>
    %cst_70 = arith.constant dense<0.000000e+00> : vector<8x768xf32>
    %89 = tpu.matmul %88, %87, %cst_70 {dimension_numbers = #tpu.dot_dimension_numbers<[1], [0], [0], [1], [0, 0, 1, 1], [], []>} : vector<8x8xf32>, vector<8x768xf32>, vector<8x768xf32> -> vector<8x768xf32>
    %90 = arith.addf %86, %89 : vector<8x768xf32>
    %c0_71 = arith.constant 0 : index
    %c129_72 = arith.constant 129 : index
    %91 = vector.load %arg9[%c0_71, %c129_72] : memref<8x1024xf32, #tpu.memory_space<vmem>>, vector<8x768xf32>
    %c0_73 = arith.constant 0 : index
    %c40_74 = arith.constant 40 : index
    %92 = vector.load %arg4[%c0_73, %c40_74] : memref<8x72xf32, #tpu.memory_space<vmem>>, vector<8x8xf32>
    %cst_75 = arith.constant dense<0.000000e+00> : vector<8x768xf32>
    %93 = tpu.matmul %92, %91, %cst_75 {dimension_numbers = #tpu.dot_dimension_numbers<[1], [0], [0], [1], [0, 0, 1, 1], [], []>} : vector<8x8xf32>, vector<8x768xf32>, vector<8x768xf32> -> vector<8x768xf32>
    %94 = arith.addf %90, %93 : vector<8x768xf32>
    %c0_76 = arith.constant 0 : index
    %c145_77 = arith.constant 145 : index
    %95 = vector.load %arg9[%c0_76, %c145_77] : memref<8x1024xf32, #tpu.memory_space<vmem>>, vector<8x768xf32>
    %c0_78 = arith.constant 0 : index
    %c48_79 = arith.constant 48 : index
    %96 = vector.load %arg4[%c0_78, %c48_79] : memref<8x72xf32, #tpu.memory_space<vmem>>, vector<8x8xf32>
    %cst_80 = arith.constant dense<0.000000e+00> : vector<8x768xf32>
    %97 = tpu.matmul %96, %95, %cst_80 {dimension_numbers = #tpu.dot_dimension_numbers<[1], [0], [0], [1], [0, 0, 1, 1], [], []>} : vector<8x8xf32>, vector<8x768xf32>, vector<8x768xf32> -> vector<8x768xf32>
    %98 = arith.addf %94, %97 : vector<8x768xf32>
    %c0_81 = arith.constant 0 : index
    %c146_82 = arith.constant 146 : index
    %99 = vector.load %arg9[%c0_81, %c146_82] : memref<8x1024xf32, #tpu.memory_space<vmem>>, vector<8x768xf32>
    %c0_83 = arith.constant 0 : index
    %c56_84 = arith.constant 56 : index
    %100 = vector.load %arg4[%c0_83, %c56_84] : memref<8x72xf32, #tpu.memory_space<vmem>>, vector<8x8xf32>
    %cst_85 = arith.constant dense<0.000000e+00> : vector<8x768xf32>
    %101 = tpu.matmul %100, %99, %cst_85 {dimension_numbers = #tpu.dot_dimension_numbers<[1], [0], [0], [1], [0, 0, 1, 1], [], []>} : vector<8x8xf32>, vector<8x768xf32>, vector<8x768xf32> -> vector<8x768xf32>
    %102 = arith.addf %98, %101 : vector<8x768xf32>
    %c0_86 = arith.constant 0 : index
    %c147_87 = arith.constant 147 : index
    %103 = vector.load %arg9[%c0_86, %c147_87] : memref<8x1024xf32, #tpu.memory_space<vmem>>, vector<8x768xf32>
    %c0_88 = arith.constant 0 : index
    %c64_89 = arith.constant 64 : index
    %104 = vector.load %arg4[%c0_88, %c64_89] : memref<8x72xf32, #tpu.memory_space<vmem>>, vector<8x8xf32>
    %cst_90 = arith.constant dense<0.000000e+00> : vector<8x768xf32>
    %105 = tpu.matmul %104, %103, %cst_90 {dimension_numbers = #tpu.dot_dimension_numbers<[1], [0], [0], [1], [0, 0, 1, 1], [], []>} : vector<8x8xf32>, vector<8x768xf32>, vector<8x768xf32> -> vector<8x768xf32>
    %106 = arith.addf %102, %105 : vector<8x768xf32>
    %107 = vector.broadcast %0 : vector<1x768xf32> to vector<8x768xf32>
    %108 = arith.mulf %106, %107 : vector<8x768xf32>
    %cst_91 = arith.constant dense<0.000000e+00> : vector<8xf32>
    %109 = vector.multi_reduction <add>, %108, %cst_91 [1] : vector<8x768xf32> to vector<8xf32>
    %110 = vector.shape_cast %109 : vector<8xf32> to vector<8x1xf32>
    %111 = arith.mulf %108, %108 : vector<8x768xf32>
    %cst_92 = arith.constant dense<0.000000e+00> : vector<8xf32>
    %112 = vector.multi_reduction <add>, %111, %cst_92 [1] : vector<8x768xf32> to vector<8xf32>
    %113 = vector.shape_cast %112 : vector<8xf32> to vector<8x1xf32>
    %cst_93 = arith.constant 0.001953125 : f32
    %114 = vector.broadcast %cst_93 : f32 to vector<8x1xf32>
    %115 = arith.mulf %110, %114 : vector<8x1xf32>
    %cst_94 = arith.constant 0.001953125 : f32
    %116 = vector.broadcast %cst_94 : f32 to vector<8x1xf32>
    %117 = arith.mulf %113, %116 : vector<8x1xf32>
    %118 = arith.mulf %115, %115 : vector<8x1xf32>
    %119 = arith.subf %117, %118 : vector<8x1xf32>
    %cst_95 = arith.constant 0.000000e+00 : f32
    %120 = vector.broadcast %cst_95 : f32 to vector<8x1xf32>
    %121 = arith.maximumf %119, %120 : vector<8x1xf32>
    %c0_96 = arith.constant 0 : index
    %c0_97 = arith.constant 0 : index
    %122 = vector.load %arg5[%c0_96, %c0_97] : memref<8x1xf32, #tpu.memory_space<vmem>>, vector<8x1xf32>
    %cst_98 = arith.constant 9.99999974E-6 : f32
    %123 = vector.broadcast %cst_98 : f32 to vector<8x1xf32>
    %124 = arith.addf %121, %123 : vector<8x1xf32>
    %125 = math.rsqrt %124 : vector<8x1xf32>
    %126 = arith.mulf %122, %125 : vector<8x1xf32>
    %c0_99 = arith.constant 0 : index
    %c0_100 = arith.constant 0 : index
    %127 = vector.load %arg6[%c0_99, %c0_100] : memref<8x1xf32, #tpu.memory_space<vmem>>, vector<8x1xf32>
    %128 = arith.mulf %115, %126 : vector<8x1xf32>
    %129 = arith.subf %127, %128 : vector<8x1xf32>
    %130 = vector.broadcast %126 : vector<8x1xf32> to vector<8x768xf32>
    %131 = arith.mulf %106, %130 : vector<8x768xf32>
    %132 = vector.broadcast %129 : vector<8x1xf32> to vector<8x768xf32>
    %133 = arith.addf %131, %132 : vector<8x768xf32>
    %cst_101 = arith.constant 0.000000e+00 : f32
    %134 = vector.broadcast %cst_101 : f32 to vector<8x768xf32>
    %135 = arith.maximumf %133, %134 : vector<8x768xf32>
    %136 = vector.broadcast %0 : vector<1x768xf32> to vector<8x768xf32>
    %137 = arith.mulf %135, %136 : vector<8x768xf32>
    %c0_102 = arith.constant 0 : index
    %c0_103 = arith.constant 0 : index
    %138 = vector.load %arg8[%c0_102, %c0_103] : memref<8x768xf32, #tpu.memory_space<vmem>>, vector<8x768xf32>
    tpu.vector_store %arg8[%c0_102, %c0_103], %137 {strides = array<i32>} : memref<8x768xf32, #tpu.memory_space<vmem>>, vector<8x768xf32>,
    return
  }
}

</mosaic_0001>

<llo_original>
// kernel: convs1_forward.1
$region0: #{convs1_forward.1}
  #allocation0 [shape = 'u32[]', space=smem, size = 0x4, offset = 0x4, fixed_abs, tag = 'smem constant byte address 0x4 - core index']
  #allocation1 [shape = 'u32[144,128]{1,0:T(1,128)}', space=vmem, size = 0x12000, scoped, tag = 'internal scratch']
  #allocation2 [shape = 'f32[8,1024]{1,0:T(8,128)}', space=vmem, size = 0x8000, scoped, tag = 'scratch operand']
  %s0 = inlined_call_operand.vmem [shape: f32[8,1024], index: 0, kind: input, shape index: {}]
  %s1 = inlined_call_operand.vmem [shape: f32[8,72], index: 1, kind: input, shape index: {}]
  %s2 = inlined_call_operand.vmem [shape: f32[8,1], index: 2, kind: input, shape index: {}]
  %s3 = inlined_call_operand.vmem [shape: f32[8,1], index: 3, kind: input, shape index: {}]
  %s4 = inlined_call_operand.vmem [shape: f32[8,72], index: 4, kind: input, shape index: {}]
  %s5 = inlined_call_operand.vmem [shape: f32[8,1], index: 5, kind: input, shape index: {}]
  %s6 = inlined_call_operand.vmem [shape: f32[8,1], index: 6, kind: input, shape index: {}]
  %s7 = inlined_call_operand.vmem [shape: f32[1,768], index: 7, kind: input, shape index: {}]
  %s8 = inlined_call_operand.vmem [shape: f32[8,768], index: 8, kind: output, shape index: {}]
  %s9 = sld [smem:[#allocation0]]
  $region42: #{convs1_forward.1} parent=0
    _
  %s11 = ssub.s32 1, %s9
  %s12 = scalar_select 0, %s11, %s9
  // Predicated region
  $region2: #{convs1_forward.1} parent=0 // pred_check
    _
  $region3: #{convs1_forward.1} parent=0 // pred_check_branch
    %14 = sbr.rel (0) target = $region5
  $region4: #{convs1_forward.1} parent=0 // pred_region
    _
  $region5: #{convs1_forward.1} parent=0 // pred_fallthru
    _
  // Predicated region
  $region6: #{convs1_forward.1} parent=0 // pred_check
    _
  $region7: #{convs1_forward.1} parent=0 // pred_check_branch
    %16 = sbr.rel (0) target = $region9
  $region8: #{convs1_forward.1} parent=0 // pred_region
    _
  $region9: #{convs1_forward.1} parent=0 // pred_fallthru
    _
  // Predicated region
  $region10: #{convs1_forward.1} parent=0 // pred_check
    _
  $region11: #{convs1_forward.1} parent=0 // pred_check_branch
    %18 = sbr.rel (0) target = $region13
  $region12: #{convs1_forward.1} parent=0 // pred_region
    _
  $region13: #{convs1_forward.1} parent=0 // pred_fallthru
    _
  // Predicated region
  $region14: #{convs1_forward.1} parent=0 // pred_check
    _
  $region15: #{convs1_forward.1} parent=0 // pred_check_branch
    %20 = sbr.rel (0) target = $region17
  $region16: #{convs1_forward.1} parent=0 // pred_region
    _
  $region17: #{convs1_forward.1} parent=0 // pred_fallthru
    _
  // Predicated region
  $region18: #{convs1_forward.1} parent=0 // pred_check
    _
  $region19: #{convs1_forward.1} parent=0 // pred_check_branch
    %22 = sbr.rel (0) target = $region21
  $region20: #{convs1_forward.1} parent=0 // pred_region
    _
  $region21: #{convs1_forward.1} parent=0 // pred_fallthru
    _
  // Predicated region
  $region22: #{convs1_forward.1} parent=0 // pred_check
    _
  $region23: #{convs1_forward.1} parent=0 // pred_check_branch
    %24 = sbr.rel (0) target = $region25
  $region24: #{convs1_forward.1} parent=0 // pred_region
    _
  $region25: #{convs1_forward.1} parent=0 // pred_fallthru
    _
  // Predicated region
  $region26: #{convs1_forward.1} parent=0 // pred_check
    _
  $region27: #{convs1_forward.1} parent=0 // pred_check_branch
    %26 = sbr.rel (0) target = $region29
  $region28: #{convs1_forward.1} parent=0 // pred_region
    _
  $region29: #{convs1_forward.1} parent=0 // pred_fallthru
    _
  // Predicated region
  $region30: #{convs1_forward.1} parent=0 // pred_check
    _
  $region31: #{convs1_forward.1} parent=0 // pred_check_branch
    %28 = sbr.rel (0) target = $region33
  $region32: #{convs1_forward.1} parent=0 // pred_region
    _
  $region33: #{convs1_forward.1} parent=0 // pred_fallthru
    _
  %v29 = vld [vmem:[%s7] sm:$0x3f]
  %30 = vst [vmem:[#allocation2] sm:$0xff] 0.0
  %31 = vst [vmem:[#allocation2 + $0x38] sm:$0xff] 0.0
  %v32 = vld [vmem:[%s0] sm:$0xff]
  %v33 = vld [vmem:[%s0 + $0x8] sm:$0xff]
  %v34 = vld [vmem:[%s0 + $0x10] sm:$0xff]
  %v35 = vld [vmem:[%s0 + $0x18] sm:$0xff]
  %v36 = vld [vmem:[%s0 + $0x20] sm:$0xff]
  %v37 = vld [vmem:[%s0 + $0x28] sm:$0xff]
  %v38 = vld [vmem:[%s0 + $0x30] sm:$0xff]
  %v39 = vld [vmem:[%s1] sm:$0xff]
  %41 = vrot.lane.b32.xlu0 %v39, 120
  %v42 = vpop.permute.xlu0 %41
  %50 = vrot.lane.b32.xlu0 %v32, 18
  %v51 = vpop.permute.xlu0 %50
  %52 = vrot.lane.b32.xlu0 %v33, 18
  %v53 = vpop.permute.xlu0 %52
  %54 = vrot.lane.b32.xlu0 %v34, 18
  %v55 = vpop.permute.xlu0 %54
  %56 = vrot.lane.b32.xlu0 %v35, 18
  %v57 = vpop.permute.xlu0 %56
  %58 = vrot.lane.b32.xlu0 %v36, 18
  %v59 = vpop.permute.xlu0 %58
  %60 = vrot.lane.b32.xlu0 %v37, 18
  %v61 = vpop.permute.xlu0 %60
  %62 = vrot.lane.b32.xlu0 %v38, 18
  %v63 = vpop.permute.xlu0 %62
  %vm64 = vcmask 146432
  %v65 = vsel %vm64, %v51, %v53
  %v66 = vsel %vm64, %v53, %v55
  %v67 = vsel %vm64, %v55, %v57
  %v68 = vsel %vm64, %v57, %v59
  %v69 = vsel %vm64, %v59, %v61
  %v70 = vsel %vm64, %v61, %v63
  %vm77 = vcmask 64512
  %v78 = vsel %vm77, %v42, 0
  %80 = vmatprep.subr.mxu0 %v66
  %81 = vmatpush1.msra.mxu0 %v65
  %82 = vmatprep.subr.mxu0 0.0
  %83 = vmatpush1.msra.mxu0 0.0
  %84 = vmatprep.subr.mxu0 0.0
  %85 = vmatpush1.msra.mxu0 0.0
  %86 = vmatprep.subr.mxu0 0.0
  %87 = vmatpush1.msra.mxu0 0.0
  %88 = vmatprep.subr.mxu0 0.0
  %89 = vmatpush1.msra.mxu0 0.0
  %90 = vmatprep.subr.mxu0 0.0
  %91 = vmatpush1.msra.mxu0 0.0
  %92 = vmatprep.subr.mxu0 0.0
  %93 = vmatpush1.msra.mxu0 0.0
  %94 = vmatprep.subr.mxu0 0.0
  %95 = vmatpush1.msra.mxu0 0.0
  %96 = vmatprep.subr.mxu0 0.0
  %97 = vmatpush1.msra.mxu0 0.0
  %98 = vmatprep.subr.mxu0 0.0
  %99 = vmatpush1.msra.mxu0 0.0
  %100 = vmatprep.subr.mxu0 0.0
  %101 = vmatpush1.msra.mxu0 0.0
  %102 = vmatprep.subr.mxu0 0.0
  %103 = vmatpush1.msra.mxu0 0.0
  %104 = vmatprep.subr.mxu0 0.0
  %105 = vmatpush1.msra.mxu0 0.0
  %106 = vmatprep.subr.mxu0 0.0
  %107 = vmatpush1.msra.mxu0 0.0
  %108 = vmatprep.subr.mxu0 0.0
  %109 = vmatpush1.msra.mxu0 0.0
  %110 = vmatprep.subr.mxu0 0.0
  %111 = vmatpush1.msra.mxu0 0.0
  %112 = vmatprep.subr.mxu0 0.0
  %113 = vmatpush1.msra.mxu0 0.0
  %114 = vmatprep.subr.mxu0 0.0
  %115 = vmatpush1.msra.mxu0 0.0
  %116 = vmatprep.subr.mxu0 0.0
  %117 = vmatpush1.msra.mxu0 0.0
  %118 = vmatprep.subr.mxu0 0.0
  %119 = vmatpush1.msra.mxu0 0.0
  %120 = vmatprep.subr.mxu0 0.0
  %121 = vmatpush1.msra.mxu0 0.0
  %122 = vmatprep.subr.mxu0 0.0
  %123 = vmatpush1.msra.mxu0 0.0
  %124 = vmatprep.subr.mxu0 0.0
  %125 = vmatpush1.msra.mxu0 0.0
  %126 = vmatprep.subr.mxu0 0.0
  %127 = vmatpush1.msra.mxu0 0.0
  %128 = vmatprep.subr.mxu0 0.0
  %129 = vmatpush1.msra.mxu0 0.0
  %130 = vmatprep.subr.mxu0 0.0
  %131 = vmatpush1.msra.mxu0 0.0
  %132 = vmatprep.subr.mxu0 0.0
  %133 = vmatpush1.msra.mxu0 0.0
  %134 = vmatprep.subr.mxu0 0.0
  %135 = vmatpush1.msra.mxu0 0.0
  %136 = vmatprep.subr.mxu0 0.0
  %137 = vmatpush1.msra.mxu0 0.0
  %138 = vmatprep.subr.mxu0 0.0
  %139 = vmatpush1.msra.mxu0 0.0
  %140 = vmatprep.subr.mxu0 0.0
  %141 = vmatpush1.msra.mxu0 0.0
  %142 = vmatprep.subr.mxu0 0.0
  %143 = vmatpush1.msra.mxu0 0.0
  %144 = vmatprep.mubr.f32.mxu0 0.0
  %145 = vmatmul.mubr.f32.gmra.mrb[0].mxu0 %v78
  %v146 = vpop.f32.mrb[0].mxu0
  %v147 = vadd.f32 0.0, %v146
  %v148 = vpop.f32.mrb[0].mxu0
  %v149 = vadd.f32 0.0, %v148
  %150 = vdwg.mxu0
  %151 = vmatprep.subr.mxu0 %v68
  %152 = vmatpush1.msra.mxu0 %v67
  %153 = vmatprep.subr.mxu0 0.0
  %154 = vmatpush1.msra.mxu0 0.0
  %155 = vmatprep.subr.mxu0 0.0
  %156 = vmatpush1.msra.mxu0 0.0
  %157 = vmatprep.subr.mxu0 0.0
  %158 = vmatpush1.msra.mxu0 0.0
  %159 = vmatprep.subr.mxu0 0.0
  %160 = vmatpush1.msra.mxu0 0.0
  %161 = vmatprep.subr.mxu0 0.0
  %162 = vmatpush1.msra.mxu0 0.0
  %163 = vmatprep.subr.mxu0 0.0
  %164 = vmatpush1.msra.mxu0 0.0
  %165 = vmatprep.subr.mxu0 0.0
  %166 = vmatpush1.msra.mxu0 0.0
  %167 = vmatprep.subr.mxu0 0.0
  %168 = vmatpush1.msra.mxu0 0.0
  %169 = vmatprep.subr.mxu0 0.0
  %170 = vmatpush1.msra.mxu0 0.0
  %171 = vmatprep.subr.mxu0 0.0
  %172 = vmatpush1.msra.mxu0 0.0
  %173 = vmatprep.subr.mxu0 0.0
  %174 = vmatpush1.msra.mxu0 0.0
  %175 = vmatprep.subr.mxu0 0.0
  %176 = vmatpush1.msra.mxu0 0.0
  %177 = vmatprep.subr.mxu0 0.0
  %178 = vmatpush1.msra.mxu0 0.0
  %179 = vmatprep.subr.mxu0 0.0
  %180 = vmatpush1.msra.mxu0 0.0
  %181 = vmatprep.subr.mxu0 0.0
  %182 = vmatpush1.msra.mxu0 0.0
  %183 = vmatprep.subr.mxu0 0.0
  %184 = vmatpush1.msra.mxu0 0.0
  %185 = vmatprep.subr.mxu0 0.0
  %186 = vmatpush1.msra.mxu0 0.0
  %187 = vmatprep.subr.mxu0 0.0
  %188 = vmatpush1.msra.mxu0 0.0
  %189 = vmatprep.subr.mxu0 0.0
  %190 = vmatpush1.msra.mxu0 0.0
  %191 = vmatprep.subr.mxu0 0.0
  %192 = vmatpush1.msra.mxu0 0.0
  %193 = vmatprep.subr.mxu0 0.0
  %194 = vmatpush1.msra.mxu0 0.0
  %195 = vmatprep.subr.mxu0 0.0
  %196 = vmatpush1.msra.mxu0 0.0
  %197 = vmatprep.subr.mxu0 0.0
  %198 = vmatpush1.msra.mxu0 0.0
  %199 = vmatprep.subr.mxu0 0.0
  %200 = vmatpush1.msra.mxu0 0.0
  %201 = vmatprep.subr.mxu0 0.0
  %202 = vmatpush1.msra.mxu0 0.0
  %203 = vmatprep.subr.mxu0 0.0
  %204 = vmatpush1.msra.mxu0 0.0
  %205 = vmatprep.subr.mxu0 0.0
  %206 = vmatpush1.msra.mxu0 0.0
  %207 = vmatprep.subr.mxu0 0.0
  %208 = vmatpush1.msra.mxu0 0.0
  %209 = vmatprep.subr.mxu0 0.0
  %210 = vmatpush1.msra.mxu0 0.0
  %211 = vmatprep.subr.mxu0 0.0
  %212 = vmatpush1.msra.mxu0 0.0
  %213 = vmatprep.subr.mxu0 0.0
  %214 = vmatpush1.msra.mxu0 0.0
  %215 = vmatprep.mubr.f32.mxu0 0.0
  %216 = vmatmul.mubr.f32.gmra.mrb[0].mxu0 %v78
  %v217 = vpop.f32.mrb[0].mxu0
  %v218 = vadd.f32 0.0, %v217
  %v219 = vpop.f32.mrb[0].mxu0
  %v220 = vadd.f32 0.0, %v219
  %221 = vdwg.mxu0
  %222 = vmatprep.subr.mxu0 %v70
  %223 = vmatpush1.msra.mxu0 %v69
  %224 = vmatprep.subr.mxu0 0.0
  %225 = vmatpush1.msra.mxu0 0.0
  %226 = vmatprep.subr.mxu0 0.0
  %227 = vmatpush1.msra.mxu0 0.0
  %228 = vmatprep.subr.mxu0 0.0
  %229 = vmatpush1.msra.mxu0 0.0
  %230 = vmatprep.subr.mxu0 0.0
  %231 = vmatpush1.msra.mxu0 0.0
  %232 = vmatprep.subr.mxu0 0.0
  %233 = vmatpush1.msra.mxu0 0.0
  %234 = vmatprep.subr.mxu0 0.0
  %235 = vmatpush1.msra.mxu0 0.0
  %236 = vmatprep.subr.mxu0 0.0
  %237 = vmatpush1.msra.mxu0 0.0
  %238 = vmatprep.subr.mxu0 0.0
  %239 = vmatpush1.msra.mxu0 0.0
  %240 = vmatprep.subr.mxu0 0.0
  %241 = vmatpush1.msra.mxu0 0.0
  %242 = vmatprep.subr.mxu0 0.0
  %243 = vmatpush1.msra.mxu0 0.0
  %244 = vmatprep.subr.mxu0 0.0
  %245 = vmatpush1.msra.mxu0 0.0
  %246 = vmatprep.subr.mxu0 0.0
  %247 = vmatpush1.msra.mxu0 0.0
  %248 = vmatprep.subr.mxu0 0.0
  %249 = vmatpush1.msra.mxu0 0.0
  %250 = vmatprep.subr.mxu0 0.0
  %251 = vmatpush1.msra.mxu0 0.0
  %252 = vmatprep.subr.mxu0 0.0
  %253 = vmatpush1.msra.mxu0 0.0
  %254 = vmatprep.subr.mxu0 0.0
  %255 = vmatpush1.msra.mxu0 0.0
  %256 = vmatprep.subr.mxu0 0.0
  %257 = vmatpush1.msra.mxu0 0.0
  %258 = vmatprep.subr.mxu0 0.0
  %259 = vmatpush1.msra.mxu0 0.0
  %260 = vmatprep.subr.mxu0 0.0
  %261 = vmatpush1.msra.mxu0 0.0
  %262 = vmatprep.subr.mxu0 0.0
  %263 = vmatpush1.msra.mxu0 0.0
  %264 = vmatprep.subr.mxu0 0.0
  %265 = vmatpush1.msra.mxu0 0.0
  %266 = vmatprep.subr.mxu0 0.0
  %267 = vmatpush1.msra.mxu0 0.0
  %268 = vmatprep.subr.mxu0 0.0
  %269 = vmatpush1.msra.mxu0 0.0
  %270 = vmatprep.subr.mxu0 0.0
  %271 = vmatpush1.msra.mxu0 0.0
  %272 = vmatprep.subr.mxu0 0.0
  %273 = vmatpush1.msra.mxu0 0.0
  %274 = vmatprep.subr.mxu0 0.0
  %275 = vmatpush1.msra.mxu0 0.0
  %276 = vmatprep.subr.mxu0 0.0
  %277 = vmatpush1.msra.mxu0 0.0
  %278 = vmatprep.subr.mxu0 0.0
  %279 = vmatpush1.msra.mxu0 0.0
  %280 = vmatprep.subr.mxu0 0.0
  %281 = vmatpush1.msra.mxu0 0.0
  %282 = vmatprep.subr.mxu0 0.0
  %283 = vmatpush1.msra.mxu0 0.0
  %284 = vmatprep.subr.mxu0 0.0
  %285 = vmatpush1.msra.mxu0 0.0
  %286 = vmatprep.mubr.f32.mxu0 0.0
  %287 = vmatmul.mubr.f32.gmra.mrb[0].mxu0 %v78
  %v288 = vpop.f32.mrb[0].mxu0
  %v289 = vadd.f32 0.0, %v288
  %v290 = vpop.f32.mrb[0].mxu0
  %v291 = vadd.f32 0.0, %v290
  %292 = vdwg.mxu0
  %293 = vrot.lane.b32.xlu0 %v32, 19
  %v294 = vpop.permute.xlu0 %293
  %295 = vrot.lane.b32.xlu0 %v33, 19
  %v296 = vpop.permute.xlu0 %295
  %297 = vrot.lane.b32.xlu0 %v34, 19
  %v298 = vpop.permute.xlu0 %297
  %299 = vrot.lane.b32.xlu0 %v35, 19
  %v300 = vpop.permute.xlu0 %299
  %301 = vrot.lane.b32.xlu0 %v36, 19
  %v302 = vpop.permute.xlu0 %301
  %303 = vrot.lane.b32.xlu0 %v37, 19
  %v304 = vpop.permute.xlu0 %303
  %305 = vrot.lane.b32.xlu0 %v38, 19
  %v306 = vpop.permute.xlu0 %305
  %vm307 = vcmask 154624
  %v308 = vsel %vm307, %v294, %v296
  %v309 = vsel %vm307, %v296, %v298
  %v310 = vsel %vm307, %v298, %v300
  %v311 = vsel %vm307, %v300, %v302
  %v312 = vsel %vm307, %v302, %v304
  %v313 = vsel %vm307, %v304, %v306
  %v320 = vsel %vm77, %v39, 0
  %322 = vmatprep.subr.mxu0 %v309
  %323 = vmatpush1.msra.mxu0 %v308
  %324 = vmatprep.subr.mxu0 0.0
  %325 = vmatpush1.msra.mxu0 0.0
  %326 = vmatprep.subr.mxu0 0.0
  %327 = vmatpush1.msra.mxu0 0.0
  %328 = vmatprep.subr.mxu0 0.0
  %329 = vmatpush1.msra.mxu0 0.0
  %330 = vmatprep.subr.mxu0 0.0
  %331 = vmatpush1.msra.mxu0 0.0
  %332 = vmatprep.subr.mxu0 0.0
  %333 = vmatpush1.msra.mxu0 0.0
  %334 = vmatprep.subr.mxu0 0.0
  %335 = vmatpush1.msra.mxu0 0.0
  %336 = vmatprep.subr.mxu0 0.0
  %337 = vmatpush1.msra.mxu0 0.0
  %338 = vmatprep.subr.mxu0 0.0
  %339 = vmatpush1.msra.mxu0 0.0
  %340 = vmatprep.subr.mxu0 0.0
  %341 = vmatpush1.msra.mxu0 0.0
  %342 = vmatprep.subr.mxu0 0.0
  %343 = vmatpush1.msra.mxu0 0.0
  %344 = vmatprep.subr.mxu0 0.0
  %345 = vmatpush1.msra.mxu0 0.0
  %346 = vmatprep.subr.mxu0 0.0
  %347 = vmatpush1.msra.mxu0 0.0
  %348 = vmatprep.subr.mxu0 0.0
  %349 = vmatpush1.msra.mxu0 0.0
  %350 = vmatprep.subr.mxu0 0.0
  %351 = vmatpush1.msra.mxu0 0.0
  %352 = vmatprep.subr.mxu0 0.0
  %353 = vmatpush1.msra.mxu0 0.0
  %354 = vmatprep.subr.mxu0 0.0
  %355 = vmatpush1.msra.mxu0 0.0
  %356 = vmatprep.subr.mxu0 0.0
  %357 = vmatpush1.msra.mxu0 0.0
  %358 = vmatprep.subr.mxu0 0.0
  %359 = vmatpush1.msra.mxu0 0.0
  %360 = vmatprep.subr.mxu0 0.0
  %361 = vmatpush1.msra.mxu0 0.0
  %362 = vmatprep.subr.mxu0 0.0
  %363 = vmatpush1.msra.mxu0 0.0
  %364 = vmatprep.subr.mxu0 0.0
  %365 = vmatpush1.msra.mxu0 0.0
  %366 = vmatprep.subr.mxu0 0.0
  %367 = vmatpush1.msra.mxu0 0.0
  %368 = vmatprep.subr.mxu0 0.0
  %369 = vmatpush1.msra.mxu0 0.0
  %370 = vmatprep.subr.mxu0 0.0
  %371 = vmatpush1.msra.mxu0 0.0
  %372 = vmatprep.subr.mxu0 0.0
  %373 = vmatpush1.msra.mxu0 0.0
  %374 = vmatprep.subr.mxu0 0.0
  %375 = vmatpush1.msra.mxu0 0.0
  %376 = vmatprep.subr.mxu0 0.0
  %377 = vmatpush1.msra.mxu0 0.0
  %378 = vmatprep.subr.mxu0 0.0
  %379 = vmatpush1.msra.mxu0 0.0
  %380 = vmatprep.subr.mxu0 0.0
  %381 = vmatpush1.msra.mxu0 0.0
  %382 = vmatprep.subr.mxu0 0.0
  %383 = vmatpush1.msra.mxu0 0.0
  %384 = vmatprep.subr.mxu0 0.0
  %385 = vmatpush1.msra.mxu0 0.0
  %386 = vmatprep.mubr.f32.mxu0 0.0
  %387 = vmatmul.mubr.f32.gmra.mrb[0].mxu0 %v320
  %v388 = vpop.f32.mrb[0].mxu0
  %v389 = vadd.f32 %v147, %v388
  %v390 = vpop.f32.mrb[0].mxu0
  %v391 = vadd.f32 %v149, %v390
  %392 = vdwg.mxu0
  %393 = vmatprep.subr.mxu0 %v311
  %394 = vmatpush1.msra.mxu0 %v310
  %395 = vmatprep.subr.mxu0 0.0
  %396 = vmatpush1.msra.mxu0 0.0
  %397 = vmatprep.subr.mxu0 0.0
  %398 = vmatpush1.msra.mxu0 0.0
  %399 = vmatprep.subr.mxu0 0.0
  %400 = vmatpush1.msra.mxu0 0.0
  %401 = vmatprep.subr.mxu0 0.0
  %402 = vmatpush1.msra.mxu0 0.0
  %403 = vmatprep.subr.mxu0 0.0
  %404 = vmatpush1.msra.mxu0 0.0
  %405 = vmatprep.subr.mxu0 0.0
  %406 = vmatpush1.msra.mxu0 0.0
  %407 = vmatprep.subr.mxu0 0.0
  %408 = vmatpush1.msra.mxu0 0.0
  %409 = vmatprep.subr.mxu0 0.0
  %410 = vmatpush1.msra.mxu0 0.0
  %411 = vmatprep.subr.mxu0 0.0
  %412 = vmatpush1.msra.mxu0 0.0
  %413 = vmatprep.subr.mxu0 0.0
  %414 = vmatpush1.msra.mxu0 0.0
  %415 = vmatprep.subr.mxu0 0.0
  %416 = vmatpush1.msra.mxu0 0.0
  %417 = vmatprep.subr.mxu0 0.0
  %418 = vmatpush1.msra.mxu0 0.0
  %419 = vmatprep.subr.mxu0 0.0
  %420 = vmatpush1.msra.mxu0 0.0
  %421 = vmatprep.subr.mxu0 0.0
  %422 = vmatpush1.msra.mxu0 0.0
  %423 = vmatprep.subr.mxu0 0.0
  %424 = vmatpush1.msra.mxu0 0.0
  %425 = vmatprep.subr.mxu0 0.0
  %426 = vmatpush1.msra.mxu0 0.0
  %427 = vmatprep.subr.mxu0 0.0
  %428 = vmatpush1.msra.mxu0 0.0
  %429 = vmatprep.subr.mxu0 0.0
  %430 = vmatpush1.msra.mxu0 0.0
  %431 = vmatprep.subr.mxu0 0.0
  %432 = vmatpush1.msra.mxu0 0.0
  %433 = vmatprep.subr.mxu0 0.0
  %434 = vmatpush1.msra.mxu0 0.0
  %435 = vmatprep.subr.mxu0 0.0
  %436 = vmatpush1.msra.mxu0 0.0
  %437 = vmatprep.subr.mxu0 0.0
  %438 = vmatpush1.msra.mxu0 0.0
  %439 = vmatprep.subr.mxu0 0.0
  %440 = vmatpush1.msra.mxu0 0.0
  %441 = vmatprep.subr.mxu0 0.0
  %442 = vmatpush1.msra.mxu0 0.0
  %443 = vmatprep.subr.mxu0 0.0
  %444 = vmatpush1.msra.mxu0 0.0
  %445 = vmatprep.subr.mxu0 0.0
  %446 = vmatpush1.msra.mxu0 0.0
  %447 = vmatprep.subr.mxu0 0.0
  %448 = vmatpush1.msra.mxu0 0.0
  %449 = vmatprep.subr.mxu0 0.0
  %450 = vmatpush1.msra.mxu0 0.0
  %451 = vmatprep.subr.mxu0 0.0
  %452 = vmatpush1.msra.mxu0 0.0
  %453 = vmatprep.subr.mxu0 0.0
  %454 = vmatpush1.msra.mxu0 0.0
  %455 = vmatprep.subr.mxu0 0.0
  %456 = vmatpush1.msra.mxu0 0.0
  %457 = vmatprep.mubr.f32.mxu0 0.0
  %458 = vmatmul.mubr.f32.gmra.mrb[0].mxu0 %v320
  %v459 = vpop.f32.mrb[0].mxu0
  %v460 = vadd.f32 %v218, %v459
  %v461 = vpop.f32.mrb[0].mxu0
  %v462 = vadd.f32 %v220, %v461
  %463 = vdwg.mxu0
  %464 = vmatprep.subr.mxu0 %v313
  %465 = vmatpush1.msra.mxu0 %v312
  %466 = vmatprep.subr.mxu0 0.0
  %467 = vmatpush1.msra.mxu0 0.0
  %468 = vmatprep.subr.mxu0 0.0
  %469 = vmatpush1.msra.mxu0 0.0
  %470 = vmatprep.subr.mxu0 0.0
  %471 = vmatpush1.msra.mxu0 0.0
  %472 = vmatprep.subr.mxu0 0.0
  %473 = vmatpush1.msra.mxu0 0.0
  %474 = vmatprep.subr.mxu0 0.0
  %475 = vmatpush1.msra.mxu0 0.0
  %476 = vmatprep.subr.mxu0 0.0
  %477 = vmatpush1.msra.mxu0 0.0
  %478 = vmatprep.subr.mxu0 0.0
  %479 = vmatpush1.msra.mxu0 0.0
  %480 = vmatprep.subr.mxu0 0.0
  %481 = vmatpush1.msra.mxu0 0.0
  %482 = vmatprep.subr.mxu0 0.0
  %483 = vmatpush1.msra.mxu0 0.0
  %484 = vmatprep.subr.mxu0 0.0
  %485 = vmatpush1.msra.mxu0 0.0
  %486 = vmatprep.subr.mxu0 0.0
  %487 = vmatpush1.msra.mxu0 0.0
  %488 = vmatprep.subr.mxu0 0.0
  %489 = vmatpush1.msra.mxu0 0.0
  %490 = vmatprep.subr.mxu0 0.0
  %491 = vmatpush1.msra.mxu0 0.0
  %492 = vmatprep.subr.mxu0 0.0
  %493 = vmatpush1.msra.mxu0 0.0
  %494 = vmatprep.subr.mxu0 0.0
  %495 = vmatpush1.msra.mxu0 0.0
  %496 = vmatprep.subr.mxu0 0.0
  %497 = vmatpush1.msra.mxu0 0.0
  %498 = vmatprep.subr.mxu0 0.0
  %499 = vmatpush1.msra.mxu0 0.0
  %500 = vmatprep.subr.mxu0 0.0
  %501 = vmatpush1.msra.mxu0 0.0
  %502 = vmatprep.subr.mxu0 0.0
  %503 = vmatpush1.msra.mxu0 0.0
  %504 = vmatprep.subr.mxu0 0.0
  %505 = vmatpush1.msra.mxu0 0.0
  %506 = vmatprep.subr.mxu0 0.0
  %507 = vmatpush1.msra.mxu0 0.0
  %508 = vmatprep.subr.mxu0 0.0
  %509 = vmatpush1.msra.mxu0 0.0
  %510 = vmatprep.subr.mxu0 0.0
  %511 = vmatpush1.msra.mxu0 0.0
  %512 = vmatprep.subr.mxu0 0.0
  %513 = vmatpush1.msra.mxu0 0.0
  %514 = vmatprep.subr.mxu0 0.0
  %515 = vmatpush1.msra.mxu0 0.0
  %516 = vmatprep.subr.mxu0 0.0
  %517 = vmatpush1.msra.mxu0 0.0
  %518 = vmatprep.subr.mxu0 0.0
  %519 = vmatpush1.msra.mxu0 0.0
  %520 = vmatprep.subr.mxu0 0.0
  %521 = vmatpush1.msra.mxu0 0.0
  %522 = vmatprep.subr.mxu0 0.0
  %523 = vmatpush1.msra.mxu0 0.0
  %524 = vmatprep.subr.mxu0 0.0
  %525 = vmatpush1.msra.mxu0 0.0
  %526 = vmatprep.subr.mxu0 0.0
  %527 = vmatpush1.msra.mxu0 0.0
  %528 = vmatprep.mubr.f32.mxu0 0.0
  %529 = vmatmul.mubr.f32.gmra.mrb[0].mxu0 %v320
  %v530 = vpop.f32.mrb[0].mxu0
  %v531 = vadd.f32 %v289, %v530
  %v532 = vpop.f32.mrb[0].mxu0
  %v533 = vadd.f32 %v291, %v532
  %534 = vdwg.mxu0
  %535 = vrot.lane.b32.xlu0 %v39, 112
  %v536 = vpop.permute.xlu0 %535
  %537 = vrot.lane.b32.xlu0 %v32, 17
  %v538 = vpop.permute.xlu0 %537
  %539 = vrot.lane.b32.xlu0 %v33, 17
  %v540 = vpop.permute.xlu0 %539
  %541 = vrot.lane.b32.xlu0 %v34, 17
  %v542 = vpop.permute.xlu0 %541
  %543 = vrot.lane.b32.xlu0 %v35, 17
  %v544 = vpop.permute.xlu0 %543
  %545 = vrot.lane.b32.xlu0 %v36, 17
  %v546 = vpop.permute.xlu0 %545
  %547 = vrot.lane.b32.xlu0 %v37, 17
  %v548 = vpop.permute.xlu0 %547
  %549 = vrot.lane.b32.xlu0 %v38, 17
  %v550 = vpop.permute.xlu0 %549
  %vm551 = vcmask 138240
  %v552 = vsel %vm551, %v538, %v540
  %v553 = vsel %vm551, %v540, %v542
  %v554 = vsel %vm551, %v542, %v544
  %v555 = vsel %vm551, %v544, %v546
  %v556 = vsel %vm551, %v546, %v548
  %v557 = vsel %vm551, %v548, %v550
  %v564 = vsel %vm77, %v536, 0
  %566 = vmatprep.subr.mxu0 %v553
  %567 = vmatpush1.msra.mxu0 %v552
  %568 = vmatprep.subr.mxu0 0.0
  %569 = vmatpush1.msra.mxu0 0.0
  %570 = vmatprep.subr.mxu0 0.0
  %571 = vmatpush1.msra.mxu0 0.0
  %572 = vmatprep.subr.mxu0 0.0
  %573 = vmatpush1.msra.mxu0 0.0
  %574 = vmatprep.subr.mxu0 0.0
  %575 = vmatpush1.msra.mxu0 0.0
  %576 = vmatprep.subr.mxu0 0.0
  %577 = vmatpush1.msra.mxu0 0.0
  %578 = vmatprep.subr.mxu0 0.0
  %579 = vmatpush1.msra.mxu0 0.0
  %580 = vmatprep.subr.mxu0 0.0
  %581 = vmatpush1.msra.mxu0 0.0
  %582 = vmatprep.subr.mxu0 0.0
  %583 = vmatpush1.msra.mxu0 0.0
  %584 = vmatprep.subr.mxu0 0.0
  %585 = vmatpush1.msra.mxu0 0.0
  %586 = vmatprep.subr.mxu0 0.0
  %587 = vmatpush1.msra.mxu0 0.0
  %588 = vmatprep.subr.mxu0 0.0
  %589 = vmatpush1.msra.mxu0 0.0
  %590 = vmatprep.subr.mxu0 0.0
  %591 = vmatpush1.msra.mxu0 0.0
  %592 = vmatprep.subr.mxu0 0.0
  %593 = vmatpush1.msra.mxu0 0.0
  %594 = vmatprep.subr.mxu0 0.0
  %595 = vmatpush1.msra.mxu0 0.0
  %596 = vmatprep.subr.mxu0 0.0
  %597 = vmatpush1.msra.mxu0 0.0
  %598 = vmatprep.subr.mxu0 0.0
  %599 = vmatpush1.msra.mxu0 0.0
  %600 = vmatprep.subr.mxu0 0.0
  %601 = vmatpush1.msra.mxu0 0.0
  %602 = vmatprep.subr.mxu0 0.0
  %603 = vmatpush1.msra.mxu0 0.0
  %604 = vmatprep.subr.mxu0 0.0
  %605 = vmatpush1.msra.mxu0 0.0
  %606 = vmatprep.subr.mxu0 0.0
  %607 = vmatpush1.msra.mxu0 0.0
  %608 = vmatprep.subr.mxu0 0.0
  %609 = vmatpush1.msra.mxu0 0.0
  %610 = vmatprep.subr.mxu0 0.0
  %611 = vmatpush1.msra.mxu0 0.0
  %612 = vmatprep.subr.mxu0 0.0
  %613 = vmatpush1.msra.mxu0 0.0
  %614 = vmatprep.subr.mxu0 0.0
  %615 = vmatpush1.msra.mxu0 0.0
  %616 = vmatprep.subr.mxu0 0.0
  %617 = vmatpush1.msra.mxu0 0.0
  %618 = vmatprep.subr.mxu0 0.0
  %619 = vmatpush1.msra.mxu0 0.0
  %620 = vmatprep.subr.mxu0 0.0
  %621 = vmatpush1.msra.mxu0 0.0
  %622 = vmatprep.subr.mxu0 0.0
  %623 = vmatpush1.msra.mxu0 0.0
  %624 = vmatprep.subr.mxu0 0.0
  %625 = vmatpush1.msra.mxu0 0.0
  %626 = vmatprep.subr.mxu0 0.0
  %627 = vmatpush1.msra.mxu0 0.0
  %628 = vmatprep.subr.mxu0 0.0
  %629 = vmatpush1.msra.mxu0 0.0
  %630 = vmatprep.mubr.f32.mxu0 0.0
  %631 = vmatmul.mubr.f32.gmra.mrb[0].mxu0 %v564
  %v632 = vpop.f32.mrb[0].mxu0
  %v633 = vadd.f32 0.0, %v632
  %v634 = vpop.f32.mrb[0].mxu0
  %v635 = vadd.f32 0.0, %v634
  %636 = vdwg.mxu0
  %637 = vmatprep.subr.mxu0 %v555
  %638 = vmatpush1.msra.mxu0 %v554
  %639 = vmatprep.subr.mxu0 0.0
  %640 = vmatpush1.msra.mxu0 0.0
  %641 = vmatprep.subr.mxu0 0.0
  %642 = vmatpush1.msra.mxu0 0.0
  %643 = vmatprep.subr.mxu0 0.0
  %644 = vmatpush1.msra.mxu0 0.0
  %645 = vmatprep.subr.mxu0 0.0
  %646 = vmatpush1.msra.mxu0 0.0
  %647 = vmatprep.subr.mxu0 0.0
  %648 = vmatpush1.msra.mxu0 0.0
  %649 = vmatprep.subr.mxu0 0.0
  %650 = vmatpush1.msra.mxu0 0.0
  %651 = vmatprep.subr.mxu0 0.0
  %652 = vmatpush1.msra.mxu0 0.0
  %653 = vmatprep.subr.mxu0 0.0
  %654 = vmatpush1.msra.mxu0 0.0
  %655 = vmatprep.subr.mxu0 0.0
  %656 = vmatpush1.msra.mxu0 0.0
  %657 = vmatprep.subr.mxu0 0.0
  %658 = vmatpush1.msra.mxu0 0.0
  %659 = vmatprep.subr.mxu0 0.0
  %660 = vmatpush1.msra.mxu0 0.0
  %661 = vmatprep.subr.mxu0 0.0
  %662 = vmatpush1.msra.mxu0 0.0
  %663 = vmatprep.subr.mxu0 0.0
  %664 = vmatpush1.msra.mxu0 0.0
  %665 = vmatprep.subr.mxu0 0.0
  %666 = vmatpush1.msra.mxu0 0.0
  %667 = vmatprep.subr.mxu0 0.0
  %668 = vmatpush1.msra.mxu0 0.0
  %669 = vmatprep.subr.mxu0 0.0
  %670 = vmatpush1.msra.mxu0 0.0
  %671 = vmatprep.subr.mxu0 0.0
  %672 = vmatpush1.msra.mxu0 0.0
  %673 = vmatprep.subr.mxu0 0.0
  %674 = vmatpush1.msra.mxu0 0.0
  %675 = vmatprep.subr.mxu0 0.0
  %676 = vmatpush1.msra.mxu0 0.0
  %677 = vmatprep.subr.mxu0 0.0
  %678 = vmatpush1.msra.mxu0 0.0
  %679 = vmatprep.subr.mxu0 0.0
  %680 = vmatpush1.msra.mxu0 0.0
  %681 = vmatprep.subr.mxu0 0.0
  %682 = vmatpush1.msra.mxu0 0.0
  %683 = vmatprep.subr.mxu0 0.0
  %684 = vmatpush1.msra.mxu0 0.0
  %685 = vmatprep.subr.mxu0 0.0
  %686 = vmatpush1.msra.mxu0 0.0
  %687 = vmatprep.subr.mxu0 0.0
  %688 = vmatpush1.msra.mxu0 0.0
  %689 = vmatprep.subr.mxu0 0.0
  %690 = vmatpush1.msra.mxu0 0.0
  %691 = vmatprep.subr.mxu0 0.0
  %692 = vmatpush1.msra.mxu0 0.0
  %693 = vmatprep.subr.mxu0 0.0
  %694 = vmatpush1.msra.mxu0 0.0
  %695 = vmatprep.subr.mxu0 0.0
  %696 = vmatpush1.msra.mxu0 0.0
  %697 = vmatprep.subr.mxu0 0.0
  %698 = vmatpush1.msra.mxu0 0.0
  %699 = vmatprep.subr.mxu0 0.0
  %700 = vmatpush1.msra.mxu0 0.0
  %701 = vmatprep.mubr.f32.mxu0 0.0
  %702 = vmatmul.mubr.f32.gmra.mrb[0].mxu0 %v564
  %v703 = vpop.f32.mrb[0].mxu0
  %v704 = vadd.f32 0.0, %v703
  %v705 = vpop.f32.mrb[0].mxu0
  %v706 = vadd.f32 0.0, %v705
  %707 = vdwg.mxu0
  %708 = vmatprep.subr.mxu0 %v557
  %709 = vmatpush1.msra.mxu0 %v556
  %710 = vmatprep.subr.mxu0 0.0
  %711 = vmatpush1.msra.mxu0 0.0
  %712 = vmatprep.subr.mxu0 0.0
  %713 = vmatpush1.msra.mxu0 0.0
  %714 = vmatprep.subr.mxu0 0.0
  %715 = vmatpush1.msra.mxu0 0.0
  %716 = vmatprep.subr.mxu0 0.0
  %717 = vmatpush1.msra.mxu0 0.0
  %718 = vmatprep.subr.mxu0 0.0
  %719 = vmatpush1.msra.mxu0 0.0
  %720 = vmatprep.subr.mxu0 0.0
  %721 = vmatpush1.msra.mxu0 0.0
  %722 = vmatprep.subr.mxu0 0.0
  %723 = vmatpush1.msra.mxu0 0.0
  %724 = vmatprep.subr.mxu0 0.0
  %725 = vmatpush1.msra.mxu0 0.0
  %726 = vmatprep.subr.mxu0 0.0
  %727 = vmatpush1.msra.mxu0 0.0
  %728 = vmatprep.subr.mxu0 0.0
  %729 = vmatpush1.msra.mxu0 0.0
  %730 = vmatprep.subr.mxu0 0.0
  %731 = vmatpush1.msra.mxu0 0.0
  %732 = vmatprep.subr.mxu0 0.0
  %733 = vmatpush1.msra.mxu0 0.0
  %734 = vmatprep.subr.mxu0 0.0
  %735 = vmatpush1.msra.mxu0 0.0
  %736 = vmatprep.subr.mxu0 0.0
  %737 = vmatpush1.msra.mxu0 0.0
  %738 = vmatprep.subr.mxu0 0.0
  %739 = vmatpush1.msra.mxu0 0.0
  %740 = vmatprep.subr.mxu0 0.0
  %741 = vmatpush1.msra.mxu0 0.0
  %742 = vmatprep.subr.mxu0 0.0
  %743 = vmatpush1.msra.mxu0 0.0
  %744 = vmatprep.subr.mxu0 0.0
  %745 = vmatpush1.msra.mxu0 0.0
  %746 = vmatprep.subr.mxu0 0.0
  %747 = vmatpush1.msra.mxu0 0.0
  %748 = vmatprep.subr.mxu0 0.0
  %749 = vmatpush1.msra.mxu0 0.0
  %750 = vmatprep.subr.mxu0 0.0
  %751 = vmatpush1.msra.mxu0 0.0
  %752 = vmatprep.subr.mxu0 0.0
  %753 = vmatpush1.msra.mxu0 0.0
  %754 = vmatprep.subr.mxu0 0.0
  %755 = vmatpush1.msra.mxu0 0.0
  %756 = vmatprep.subr.mxu0 0.0
  %757 = vmatpush1.msra.mxu0 0.0
  %758 = vmatprep.subr.mxu0 0.0
  %759 = vmatpush1.msra.mxu0 0.0
  %760 = vmatprep.subr.mxu0 0.0
  %761 = vmatpush1.msra.mxu0 0.0
  %762 = vmatprep.subr.mxu0 0.0
  %763 = vmatpush1.msra.mxu0 0.0
  %764 = vmatprep.subr.mxu0 0.0
  %765 = vmatpush1.msra.mxu0 0.0
  %766 = vmatprep.subr.mxu0 0.0
  %767 = vmatpush1.msra.mxu0 0.0
  %768 = vmatprep.subr.mxu0 0.0
  %769 = vmatpush1.msra.mxu0 0.0
  %770 = vmatprep.subr.mxu0 0.0
  %771 = vmatpush1.msra.mxu0 0.0
  %772 = vmatprep.mubr.f32.mxu0 0.0
  %773 = vmatmul.mubr.f32.gmra.mrb[0].mxu0 %v564
  %v774 = vpop.f32.mrb[0].mxu0
  %v775 = vadd.f32 0.0, %v774
  %v776 = vpop.f32.mrb[0].mxu0
  %v777 = vadd.f32 0.0, %v776
  %778 = vdwg.mxu0
  %v779 = vadd.f32 %v389, %v633
  %v780 = vadd.f32 %v391, %v635
  %v781 = vadd.f32 %v460, %v704
  %v782 = vadd.f32 %v462, %v706
  %v783 = vadd.f32 %v531, %v775
  %v784 = vadd.f32 %v533, %v777
  %785 = vrot.lane.b32.xlu0 %v39, 104
  %v786 = vpop.permute.xlu0 %785
  %787 = vrot.lane.b32.xlu0 %v32, 1
  %v788 = vpop.permute.xlu0 %787
  %789 = vrot.lane.b32.xlu0 %v33, 1
  %v790 = vpop.permute.xlu0 %789
  %791 = vrot.lane.b32.xlu0 %v34, 1
  %v792 = vpop.permute.xlu0 %791
  %793 = vrot.lane.b32.xlu0 %v35, 1
  %v794 = vpop.permute.xlu0 %793
  %795 = vrot.lane.b32.xlu0 %v36, 1
  %v796 = vpop.permute.xlu0 %795
  %797 = vrot.lane.b32.xlu0 %v37, 1
  %v798 = vpop.permute.xlu0 %797
  %799 = vrot.lane.b32.xlu0 %v38, 1
  %v800 = vpop.permute.xlu0 %799
  %vm801 = vcmask 7168
  %v802 = vsel %vm801, %v788, %v790
  %v803 = vsel %vm801, %v790, %v792
  %v804 = vsel %vm801, %v792, %v794
  %v805 = vsel %vm801, %v794, %v796
  %v806 = vsel %vm801, %v796, %v798
  %v807 = vsel %vm801, %v798, %v800
  %v814 = vsel %vm77, %v786, 0
  %816 = vmatprep.subr.mxu0 %v803
  %817 = vmatpush1.msra.mxu0 %v802
  %818 = vmatprep.subr.mxu0 0.0
  %819 = vmatpush1.msra.mxu0 0.0
  %820 = vmatprep.subr.mxu0 0.0
  %821 = vmatpush1.msra.mxu0 0.0
  %822 = vmatprep.subr.mxu0 0.0
  %823 = vmatpush1.msra.mxu0 0.0
  %824 = vmatprep.subr.mxu0 0.0
  %825 = vmatpush1.msra.mxu0 0.0
  %826 = vmatprep.subr.mxu0 0.0
  %827 = vmatpush1.msra.mxu0 0.0
  %828 = vmatprep.subr.mxu0 0.0
  %829 = vmatpush1.msra.mxu0 0.0
  %830 = vmatprep.subr.mxu0 0.0
  %831 = vmatpush1.msra.mxu0 0.0
  %832 = vmatprep.subr.mxu0 0.0
  %833 = vmatpush1.msra.mxu0 0.0
  %834 = vmatprep.subr.mxu0 0.0
  %835 = vmatpush1.msra.mxu0 0.0
  %836 = vmatprep.subr.mxu0 0.0
  %837 = vmatpush1.msra.mxu0 0.0
  %838 = vmatprep.subr.mxu0 0.0
  %839 = vmatpush1.msra.mxu0 0.0
  %840 = vmatprep.subr.mxu0 0.0
  %841 = vmatpush1.msra.mxu0 0.0
  %842 = vmatprep.subr.mxu0 0.0
  %843 = vmatpush1.msra.mxu0 0.0
  %844 = vmatprep.subr.mxu0 0.0
  %845 = vmatpush1.msra.mxu0 0.0
  %846 = vmatprep.subr.mxu0 0.0
  %847 = vmatpush1.msra.mxu0 0.0
  %848 = vmatprep.subr.mxu0 0.0
  %849 = vmatpush1.msra.mxu0 0.0
  %850 = vmatprep.subr.mxu0 0.0
  %851 = vmatpush1.msra.mxu0 0.0
  %852 = vmatprep.subr.mxu0 0.0
  %853 = vmatpush1.msra.mxu0 0.0
  %854 = vmatprep.subr.mxu0 0.0
  %855 = vmatpush1.msra.mxu0 0.0
  %856 = vmatprep.subr.mxu0 0.0
  %857 = vmatpush1.msra.mxu0 0.0
  %858 = vmatprep.subr.mxu0 0.0
  %859 = vmatpush1.msra.mxu0 0.0
  %860 = vmatprep.subr.mxu0 0.0
  %861 = vmatpush1.msra.mxu0 0.0
  %862 = vmatprep.subr.mxu0 0.0
  %863 = vmatpush1.msra.mxu0 0.0
  %864 = vmatprep.subr.mxu0 0.0
  %865 = vmatpush1.msra.mxu0 0.0
  %866 = vmatprep.subr.mxu0 0.0
  %867 = vmatpush1.msra.mxu0 0.0
  %868 = vmatprep.subr.mxu0 0.0
  %869 = vmatpush1.msra.mxu0 0.0
  %870 = vmatprep.subr.mxu0 0.0
  %871 = vmatpush1.msra.mxu0 0.0
  %872 = vmatprep.subr.mxu0 0.0
  %873 = vmatpush1.msra.mxu0 0.0
  %874 = vmatprep.subr.mxu0 0.0
  %875 = vmatpush1.msra.mxu0 0.0
  %876 = vmatprep.subr.mxu0 0.0
  %877 = vmatpush1.msra.mxu0 0.0
  %878 = vmatprep.subr.mxu0 0.0
  %879 = vmatpush1.msra.mxu0 0.0
  %880 = vmatprep.mubr.f32.mxu0 0.0
  %881 = vmatmul.mubr.f32.gmra.mrb[0].mxu0 %v814
  %v882 = vpop.f32.mrb[0].mxu0
  %v883 = vadd.f32 0.0, %v882
  %v884 = vpop.f32.mrb[0].mxu0
  %v885 = vadd.f32 0.0, %v884
  %886 = vdwg.mxu0
  %887 = vmatprep.subr.mxu0 %v805
  %888 = vmatpush1.msra.mxu0 %v804
  %889 = vmatprep.subr.mxu0 0.0
  %890 = vmatpush1.msra.mxu0 0.0
  %891 = vmatprep.subr.mxu0 0.0
  %892 = vmatpush1.msra.mxu0 0.0
  %893 = vmatprep.subr.mxu0 0.0
  %894 = vmatpush1.msra.mxu0 0.0
  %895 = vmatprep.subr.mxu0 0.0
  %896 = vmatpush1.msra.mxu0 0.0
  %897 = vmatprep.subr.mxu0 0.0
  %898 = vmatpush1.msra.mxu0 0.0
  %899 = vmatprep.subr.mxu0 0.0
  %900 = vmatpush1.msra.mxu0 0.0
  %901 = vmatprep.subr.mxu0 0.0
  %902 = vmatpush1.msra.mxu0 0.0
  %903 = vmatprep.subr.mxu0 0.0
  %904 = vmatpush1.msra.mxu0 0.0
  %905 = vmatprep.subr.mxu0 0.0
  %906 = vmatpush1.msra.mxu0 0.0
  %907 = vmatprep.subr.mxu0 0.0
  %908 = vmatpush1.msra.mxu0 0.0
  %909 = vmatprep.subr.mxu0 0.0
  %910 = vmatpush1.msra.mxu0 0.0
  %911 = vmatprep.subr.mxu0 0.0
  %912 = vmatpush1.msra.mxu0 0.0
  %913 = vmatprep.subr.mxu0 0.0
  %914 = vmatpush1.msra.mxu0 0.0
  %915 = vmatprep.subr.mxu0 0.0
  %916 = vmatpush1.msra.mxu0 0.0
  %917 = vmatprep.subr.mxu0 0.0
  %918 = vmatpush1.msra.mxu0 0.0
  %919 = vmatprep.subr.mxu0 0.0
  %920 = vmatpush1.msra.mxu0 0.0
  %921 = vmatprep.subr.mxu0 0.0
  %922 = vmatpush1.msra.mxu0 0.0
  %923 = vmatprep.subr.mxu0 0.0
  %924 = vmatpush1.msra.mxu0 0.0
  %925 = vmatprep.subr.mxu0 0.0
  %926 = vmatpush1.msra.mxu0 0.0
  %927 = vmatprep.subr.mxu0 0.0
  %928 = vmatpush1.msra.mxu0 0.0
  %929 = vmatprep.subr.mxu0 0.0
  %930 = vmatpush1.msra.mxu0 0.0
  %931 = vmatprep.subr.mxu0 0.0
  %932 = vmatpush1.msra.mxu0 0.0
  %933 = vmatprep.subr.mxu0 0.0
  %934 = vmatpush1.msra.mxu0 0.0
  %935 = vmatprep.subr.mxu0 0.0
  %936 = vmatpush1.msra.mxu0 0.0
  %937 = vmatprep.subr.mxu0 0.0
  %938 = vmatpush1.msra.mxu0 0.0
  %939 = vmatprep.subr.mxu0 0.0
  %940 = vmatpush1.msra.mxu0 0.0
  %941 = vmatprep.subr.mxu0 0.0
  %942 = vmatpush1.msra.mxu0 0.0
  %943 = vmatprep.subr.mxu0 0.0
  %944 = vmatpush1.msra.mxu0 0.0
  %945 = vmatprep.subr.mxu0 0.0
  %946 = vmatpush1.msra.mxu0 0.0
  %947 = vmatprep.subr.mxu0 0.0
  %948 = vmatpush1.msra.mxu0 0.0
  %949 = vmatprep.subr.mxu0 0.0
  %950 = vmatpush1.msra.mxu0 0.0
  %951 = vmatprep.mubr.f32.mxu0 0.0
  %952 = vmatmul.mubr.f32.gmra.mrb[0].mxu0 %v814
  %v953 = vpop.f32.mrb[0].mxu0
  %v954 = vadd.f32 0.0, %v953
  %v955 = vpop.f32.mrb[0].mxu0
  %v956 = vadd.f32 0.0, %v955
  %957 = vdwg.mxu0
  %958 = vmatprep.subr.mxu0 %v807
  %959 = vmatpush1.msra.mxu0 %v806
  %960 = vmatprep.subr.mxu0 0.0
  %961 = vmatpush1.msra.mxu0 0.0
  %962 = vmatprep.subr.mxu0 0.0
  %963 = vmatpush1.msra.mxu0 0.0
  %964 = vmatprep.subr.mxu0 0.0
  %965 = vmatpush1.msra.mxu0 0.0
  %966 = vmatprep.subr.mxu0 0.0
  %967 = vmatpush1.msra.mxu0 0.0
  %968 = vmatprep.subr.mxu0 0.0
  %969 = vmatpush1.msra.mxu0 0.0
  %970 = vmatprep.subr.mxu0 0.0
  %971 = vmatpush1.msra.mxu0 0.0
  %972 = vmatprep.subr.mxu0 0.0
  %973 = vmatpush1.msra.mxu0 0.0
  %974 = vmatprep.subr.mxu0 0.0
  %975 = vmatpush1.msra.mxu0 0.0
  %976 = vmatprep.subr.mxu0 0.0
  %977 = vmatpush1.msra.mxu0 0.0
  %978 = vmatprep.subr.mxu0 0.0
  %979 = vmatpush1.msra.mxu0 0.0
  %980 = vmatprep.subr.mxu0 0.0
  %981 = vmatpush1.msra.mxu0 0.0
  %982 = vmatprep.subr.mxu0 0.0
  %983 = vmatpush1.msra.mxu0 0.0
  %984 = vmatprep.subr.mxu0 0.0
  %985 = vmatpush1.msra.mxu0 0.0
  %986 = vmatprep.subr.mxu0 0.0
  %987 = vmatpush1.msra.mxu0 0.0
  %988 = vmatprep.subr.mxu0 0.0
  %989 = vmatpush1.msra.mxu0 0.0
  %990 = vmatprep.subr.mxu0 0.0
  %991 = vmatpush1.msra.mxu0 0.0
  %992 = vmatprep.subr.mxu0 0.0
  %993 = vmatpush1.msra.mxu0 0.0
  %994 = vmatprep.subr.mxu0 0.0
  %995 = vmatpush1.msra.mxu0 0.0
  %996 = vmatprep.subr.mxu0 0.0
  %997 = vmatpush1.msra.mxu0 0.0
  %998 = vmatprep.subr.mxu0 0.0
  %999 = vmatpush1.msra.mxu0 0.0
  %1000 = vmatprep.subr.mxu0 0.0
  %1001 = vmatpush1.msra.mxu0 0.0
  %1002 = vmatprep.subr.mxu0 0.0
  %1003 = vmatpush1.msra.mxu0 0.0
  %1004 = vmatprep.subr.mxu0 0.0
  %1005 = vmatpush1.msra.mxu0 0.0
  %1006 = vmatprep.subr.mxu0 0.0
  %1007 = vmatpush1.msra.mxu0 0.0
  %1008 = vmatprep.subr.mxu0 0.0
  %1009 = vmatpush1.msra.mxu0 0.0
  %1010 = vmatprep.subr.mxu0 0.0
  %1011 = vmatpush1.msra.mxu0 0.0
  %1012 = vmatprep.subr.mxu0 0.0
  %1013 = vmatpush1.msra.mxu0 0.0
  %1014 = vmatprep.subr.mxu0 0.0
  %1015 = vmatpush1.msra.mxu0 0.0
  %1016 = vmatprep.subr.mxu0 0.0
  %1017 = vmatpush1.msra.mxu0 0.0
  %1018 = vmatprep.subr.mxu0 0.0
  %1019 = vmatpush1.msra.mxu0 0.0
  %1020 = vmatprep.subr.mxu0 0.0
  %1021 = vmatpush1.msra.mxu0 0.0
  %1022 = vmatprep.mubr.f32.mxu0 0.0
  %1023 = vmatmul.mubr.f32.gmra.mrb[0].mxu0 %v814
  %v1024 = vpop.f32.mrb[0].mxu0
  %v1025 = vadd.f32 0.0, %v1024
  %v1026 = vpop.f32.mrb[0].mxu0
  %v1027 = vadd.f32 0.0, %v1026
  %1028 = vdwg.mxu0
  %v1029 = vadd.f32 %v779, %v883
  %v1030 = vadd.f32 %v780, %v885
  %v1031 = vadd.f32 %v781, %v954
  %v1032 = vadd.f32 %v782, %v956
  %v1033 = vadd.f32 %v783, %v1025
  %v1034 = vadd.f32 %v784, %v1027
  %1035 = vrot.lane.b32.xlu0 %v39, 96
  %v1036 = vpop.permute.xlu0 %1035
  %v1037 = vsel %vm77, %v1036, 0
  %1039 = vmatprep.subr.mxu0 %v34
  %1040 = vmatpush1.msra.mxu0 %v33
  %1041 = vmatprep.subr.mxu0 0.0
  %1042 = vmatpush1.msra.mxu0 0.0
  %1043 = vmatprep.subr.mxu0 0.0
  %1044 = vmatpush1.msra.mxu0 0.0
  %1045 = vmatprep.subr.mxu0 0.0
  %1046 = vmatpush1.msra.mxu0 0.0
  %1047 = vmatprep.subr.mxu0 0.0
  %1048 = vmatpush1.msra.mxu0 0.0
  %1049 = vmatprep.subr.mxu0 0.0
  %1050 = vmatpush1.msra.mxu0 0.0
  %1051 = vmatprep.subr.mxu0 0.0
  %1052 = vmatpush1.msra.mxu0 0.0
  %1053 = vmatprep.subr.mxu0 0.0
  %1054 = vmatpush1.msra.mxu0 0.0
  %1055 = vmatprep.subr.mxu0 0.0
  %1056 = vmatpush1.msra.mxu0 0.0
  %1057 = vmatprep.subr.mxu0 0.0
  %1058 = vmatpush1.msra.mxu0 0.0
  %1059 = vmatprep.subr.mxu0 0.0
  %1060 = vmatpush1.msra.mxu0 0.0
  %1061 = vmatprep.subr.mxu0 0.0
  %1062 = vmatpush1.msra.mxu0 0.0
  %1063 = vmatprep.subr.mxu0 0.0
  %1064 = vmatpush1.msra.mxu0 0.0
  %1065 = vmatprep.subr.mxu0 0.0
  %1066 = vmatpush1.msra.mxu0 0.0
  %1067 = vmatprep.subr.mxu0 0.0
  %1068 = vmatpush1.msra.mxu0 0.0
  %1069 = vmatprep.subr.mxu0 0.0
  %1070 = vmatpush1.msra.mxu0 0.0
  %1071 = vmatprep.subr.mxu0 0.0
  %1072 = vmatpush1.msra.mxu0 0.0
  %1073 = vmatprep.subr.mxu0 0.0
  %1074 = vmatpush1.msra.mxu0 0.0
  %1075 = vmatprep.subr.mxu0 0.0
  %1076 = vmatpush1.msra.mxu0 0.0
  %1077 = vmatprep.subr.mxu0 0.0
  %1078 = vmatpush1.msra.mxu0 0.0
  %1079 = vmatprep.subr.mxu0 0.0
  %1080 = vmatpush1.msra.mxu0 0.0
  %1081 = vmatprep.subr.mxu0 0.0
  %1082 = vmatpush1.msra.mxu0 0.0
  %1083 = vmatprep.subr.mxu0 0.0
  %1084 = vmatpush1.msra.mxu0 0.0
  %1085 = vmatprep.subr.mxu0 0.0
  %1086 = vmatpush1.msra.mxu0 0.0
  %1087 = vmatprep.subr.mxu0 0.0
  %1088 = vmatpush1.msra.mxu0 0.0
  %1089 = vmatprep.subr.mxu0 0.0
  %1090 = vmatpush1.msra.mxu0 0.0
  %1091 = vmatprep.subr.mxu0 0.0
  %1092 = vmatpush1.msra.mxu0 0.0
  %1093 = vmatprep.subr.mxu0 0.0
  %1094 = vmatpush1.msra.mxu0 0.0
  %1095 = vmatprep.subr.mxu0 0.0
  %1096 = vmatpush1.msra.mxu0 0.0
  %1097 = vmatprep.subr.mxu0 0.0
  %1098 = vmatpush1.msra.mxu0 0.0
  %1099 = vmatprep.subr.mxu0 0.0
  %1100 = vmatpush1.msra.mxu0 0.0
  %1101 = vmatprep.subr.mxu0 0.0
  %1102 = vmatpush1.msra.mxu0 0.0
  %1103 = vmatprep.mubr.f32.mxu0 0.0
  %1104 = vmatmul.mubr.f32.gmra.mrb[0].mxu0 %v1037
  %v1105 = vpop.f32.mrb[0].mxu0
  %v1106 = vadd.f32 0.0, %v1105
  %v1107 = vpop.f32.mrb[0].mxu0
  %v1108 = vadd.f32 0.0, %v1107
  %1109 = vdwg.mxu0
  %1110 = vmatprep.subr.mxu0 %v36
  %1111 = vmatpush1.msra.mxu0 %v35
  %1112 = vmatprep.subr.mxu0 0.0
  %1113 = vmatpush1.msra.mxu0 0.0
  %1114 = vmatprep.subr.mxu0 0.0
  %1115 = vmatpush1.msra.mxu0 0.0
  %1116 = vmatprep.subr.mxu0 0.0
  %1117 = vmatpush1.msra.mxu0 0.0
  %1118 = vmatprep.subr.mxu0 0.0
  %1119 = vmatpush1.msra.mxu0 0.0
  %1120 = vmatprep.subr.mxu0 0.0
  %1121 = vmatpush1.msra.mxu0 0.0
  %1122 = vmatprep.subr.mxu0 0.0
  %1123 = vmatpush1.msra.mxu0 0.0
  %1124 = vmatprep.subr.mxu0 0.0
  %1125 = vmatpush1.msra.mxu0 0.0
  %1126 = vmatprep.subr.mxu0 0.0
  %1127 = vmatpush1.msra.mxu0 0.0
  %1128 = vmatprep.subr.mxu0 0.0
  %1129 = vmatpush1.msra.mxu0 0.0
  %1130 = vmatprep.subr.mxu0 0.0
  %1131 = vmatpush1.msra.mxu0 0.0
  %1132 = vmatprep.subr.mxu0 0.0
  %1133 = vmatpush1.msra.mxu0 0.0
  %1134 = vmatprep.subr.mxu0 0.0
  %1135 = vmatpush1.msra.mxu0 0.0
  %1136 = vmatprep.subr.mxu0 0.0
  %1137 = vmatpush1.msra.mxu0 0.0
  %1138 = vmatprep.subr.mxu0 0.0
  %1139 = vmatpush1.msra.mxu0 0.0
  %1140 = vmatprep.subr.mxu0 0.0
  %1141 = vmatpush1.msra.mxu0 0.0
  %1142 = vmatprep.subr.mxu0 0.0
  %1143 = vmatpush1.msra.mxu0 0.0
  %1144 = vmatprep.subr.mxu0 0.0
  %1145 = vmatpush1.msra.mxu0 0.0
  %1146 = vmatprep.subr.mxu0 0.0
  %1147 = vmatpush1.msra.mxu0 0.0
  %1148 = vmatprep.subr.mxu0 0.0
  %1149 = vmatpush1.msra.mxu0 0.0
  %1150 = vmatprep.subr.mxu0 0.0
  %1151 = vmatpush1.msra.mxu0 0.0
  %1152 = vmatprep.subr.mxu0 0.0
  %1153 = vmatpush1.msra.mxu0 0.0
  %1154 = vmatprep.subr.mxu0 0.0
  %1155 = vmatpush1.msra.mxu0 0.0
  %1156 = vmatprep.subr.mxu0 0.0
  %1157 = vmatpush1.msra.mxu0 0.0
  %1158 = vmatprep.subr.mxu0 0.0
  %1159 = vmatpush1.msra.mxu0 0.0
  %1160 = vmatprep.subr.mxu0 0.0
  %1161 = vmatpush1.msra.mxu0 0.0
  %1162 = vmatprep.subr.mxu0 0.0
  %1163 = vmatpush1.msra.mxu0 0.0
  %1164 = vmatprep.subr.mxu0 0.0
  %1165 = vmatpush1.msra.mxu0 0.0
  %1166 = vmatprep.subr.mxu0 0.0
  %1167 = vmatpush1.msra.mxu0 0.0
  %1168 = vmatprep.subr.mxu0 0.0
  %1169 = vmatpush1.msra.mxu0 0.0
  %1170 = vmatprep.subr.mxu0 0.0
  %1171 = vmatpush1.msra.mxu0 0.0
  %1172 = vmatprep.subr.mxu0 0.0
  %1173 = vmatpush1.msra.mxu0 0.0
  %1174 = vmatprep.mubr.f32.mxu0 0.0
  %1175 = vmatmul.mubr.f32.gmra.mrb[0].mxu0 %v1037
  %v1176 = vpop.f32.mrb[0].mxu0
  %v1177 = vadd.f32 0.0, %v1176
  %v1178 = vpop.f32.mrb[0].mxu0
  %v1179 = vadd.f32 0.0, %v1178
  %1180 = vdwg.mxu0
  %1181 = vmatprep.subr.mxu0 %v38
  %1182 = vmatpush1.msra.mxu0 %v37
  %1183 = vmatprep.subr.mxu0 0.0
  %1184 = vmatpush1.msra.mxu0 0.0
  %1185 = vmatprep.subr.mxu0 0.0
  %1186 = vmatpush1.msra.mxu0 0.0
  %1187 = vmatprep.subr.mxu0 0.0
  %1188 = vmatpush1.msra.mxu0 0.0
  %1189 = vmatprep.subr.mxu0 0.0
  %1190 = vmatpush1.msra.mxu0 0.0
  %1191 = vmatprep.subr.mxu0 0.0
  %1192 = vmatpush1.msra.mxu0 0.0
  %1193 = vmatprep.subr.mxu0 0.0
  %1194 = vmatpush1.msra.mxu0 0.0
  %1195 = vmatprep.subr.mxu0 0.0
  %1196 = vmatpush1.msra.mxu0 0.0
  %1197 = vmatprep.subr.mxu0 0.0
  %1198 = vmatpush1.msra.mxu0 0.0
  %1199 = vmatprep.subr.mxu0 0.0
  %1200 = vmatpush1.msra.mxu0 0.0
  %1201 = vmatprep.subr.mxu0 0.0
  %1202 = vmatpush1.msra.mxu0 0.0
  %1203 = vmatprep.subr.mxu0 0.0
  %1204 = vmatpush1.msra.mxu0 0.0
  %1205 = vmatprep.subr.mxu0 0.0
  %1206 = vmatpush1.msra.mxu0 0.0
  %1207 = vmatprep.subr.mxu0 0.0
  %1208 = vmatpush1.msra.mxu0 0.0
  %1209 = vmatprep.subr.mxu0 0.0
  %1210 = vmatpush1.msra.mxu0 0.0
  %1211 = vmatprep.subr.mxu0 0.0
  %1212 = vmatpush1.msra.mxu0 0.0
  %1213 = vmatprep.subr.mxu0 0.0
  %1214 = vmatpush1.msra.mxu0 0.0
  %1215 = vmatprep.subr.mxu0 0.0
  %1216 = vmatpush1.msra.mxu0 0.0
  %1217 = vmatprep.subr.mxu0 0.0
  %1218 = vmatpush1.msra.mxu0 0.0
  %1219 = vmatprep.subr.mxu0 0.0
  %1220 = vmatpush1.msra.mxu0 0.0
  %1221 = vmatprep.subr.mxu0 0.0
  %1222 = vmatpush1.msra.mxu0 0.0
  %1223 = vmatprep.subr.mxu0 0.0
  %1224 = vmatpush1.msra.mxu0 0.0
  %1225 = vmatprep.subr.mxu0 0.0
  %1226 = vmatpush1.msra.mxu0 0.0
  %1227 = vmatprep.subr.mxu0 0.0
  %1228 = vmatpush1.msra.mxu0 0.0
  %1229 = vmatprep.subr.mxu0 0.0
  %1230 = vmatpush1.msra.mxu0 0.0
  %1231 = vmatprep.subr.mxu0 0.0
  %1232 = vmatpush1.msra.mxu0 0.0
  %1233 = vmatprep.subr.mxu0 0.0
  %1234 = vmatpush1.msra.mxu0 0.0
  %1235 = vmatprep.subr.mxu0 0.0
  %1236 = vmatpush1.msra.mxu0 0.0
  %1237 = vmatprep.subr.mxu0 0.0
  %1238 = vmatpush1.msra.mxu0 0.0
  %1239 = vmatprep.subr.mxu0 0.0
  %1240 = vmatpush1.msra.mxu0 0.0
  %1241 = vmatprep.subr.mxu0 0.0
  %1242 = vmatpush1.msra.mxu0 0.0
  %1243 = vmatprep.subr.mxu0 0.0
  %1244 = vmatpush1.msra.mxu0 0.0
  %1245 = vmatprep.mubr.f32.mxu0 0.0
  %1246 = vmatmul.mubr.f32.gmra.mrb[0].mxu0 %v1037
  %v1247 = vpop.f32.mrb[0].mxu0
  %v1248 = vadd.f32 0.0, %v1247
  %v1249 = vpop.f32.mrb[0].mxu0
  %v1250 = vadd.f32 0.0, %v1249
  %1251 = vdwg.mxu0
  %v1252 = vadd.f32 %v1029, %v1106
  %v1253 = vadd.f32 %v1030, %v1108
  %v1254 = vadd.f32 %v1031, %v1177
  %v1255 = vadd.f32 %v1032, %v1179
  %v1256 = vadd.f32 %v1033, %v1248
  %v1257 = vadd.f32 %v1034, %v1250
  %v1258 = vld [vmem:[%s0 + $0x8] sm:$0xff]
  %v1259 = vld [vmem:[%s0 + $0x10] sm:$0xff]
  %v1260 = vld [vmem:[%s0 + $0x18] sm:$0xff]
  %v1261 = vld [vmem:[%s0 + $0x20] sm:$0xff]
  %v1262 = vld [vmem:[%s0 + $0x28] sm:$0xff]
  %v1263 = vld [vmem:[%s0 + $0x30] sm:$0xff]
  %v1264 = vld [vmem:[%s0 + $0x38] sm:$0xff]
  %1265 = vrot.lane.b32.xlu0 %v39, 88
  %v1266 = vpop.permute.xlu0 %1265
  %1274 = vrot.lane.b32.xlu0 %v1258, 127
  %v1275 = vpop.permute.xlu0 %1274
  %1276 = vrot.lane.b32.xlu0 %v1259, 127
  %v1277 = vpop.permute.xlu0 %1276
  %1278 = vrot.lane.b32.xlu0 %v1260, 127
  %v1279 = vpop.permute.xlu0 %1278
  %1280 = vrot.lane.b32.xlu0 %v1261, 127
  %v1281 = vpop.permute.xlu0 %1280
  %1282 = vrot.lane.b32.xlu0 %v1262, 127
  %v1283 = vpop.permute.xlu0 %1282
  %1284 = vrot.lane.b32.xlu0 %v1263, 127
  %v1285 = vpop.permute.xlu0 %1284
  %1286 = vrot.lane.b32.xlu0 %v1264, 127
  %v1287 = vpop.permute.xlu0 %1286
  %vm1288 = vcmask 1039360
  %v1289 = vsel %vm1288, %v1275, %v1277
  %v1290 = vsel %vm1288, %v1277, %v1279
  %v1291 = vsel %vm1288, %v1279, %v1281
  %v1292 = vsel %vm1288, %v1281, %v1283
  %v1293 = vsel %vm1288, %v1283, %v1285
  %v1294 = vsel %vm1288, %v1285, %v1287
  %v1301 = vsel %vm77, %v1266, 0
  %1303 = vmatprep.subr.mxu0 %v1290
  %1304 = vmatpush1.msra.mxu0 %v1289
  %1305 = vmatprep.subr.mxu0 0.0
  %1306 = vmatpush1.msra.mxu0 0.0
  %1307 = vmatprep.subr.mxu0 0.0
  %1308 = vmatpush1.msra.mxu0 0.0
  %1309 = vmatprep.subr.mxu0 0.0
  %1310 = vmatpush1.msra.mxu0 0.0
  %1311 = vmatprep.subr.mxu0 0.0
  %1312 = vmatpush1.msra.mxu0 0.0
  %1313 = vmatprep.subr.mxu0 0.0
  %1314 = vmatpush1.msra.mxu0 0.0
  %1315 = vmatprep.subr.mxu0 0.0
  %1316 = vmatpush1.msra.mxu0 0.0
  %1317 = vmatprep.subr.mxu0 0.0
  %1318 = vmatpush1.msra.mxu0 0.0
  %1319 = vmatprep.subr.mxu0 0.0
  %1320 = vmatpush1.msra.mxu0 0.0
  %1321 = vmatprep.subr.mxu0 0.0
  %1322 = vmatpush1.msra.mxu0 0.0
  %1323 = vmatprep.subr.mxu0 0.0
  %1324 = vmatpush1.msra.mxu0 0.0
  %1325 = vmatprep.subr.mxu0 0.0
  %1326 = vmatpush1.msra.mxu0 0.0
  %1327 = vmatprep.subr.mxu0 0.0
  %1328 = vmatpush1.msra.mxu0 0.0
  %1329 = vmatprep.subr.mxu0 0.0
  %1330 = vmatpush1.msra.mxu0 0.0
  %1331 = vmatprep.subr.mxu0 0.0
  %1332 = vmatpush1.msra.mxu0 0.0
  %1333 = vmatprep.subr.mxu0 0.0
  %1334 = vmatpush1.msra.mxu0 0.0
  %1335 = vmatprep.subr.mxu0 0.0
  %1336 = vmatpush1.msra.mxu0 0.0
  %1337 = vmatprep.subr.mxu0 0.0
  %1338 = vmatpush1.msra.mxu0 0.0
  %1339 = vmatprep.subr.mxu0 0.0
  %1340 = vmatpush1.msra.mxu0 0.0
  %1341 = vmatprep.subr.mxu0 0.0
  %1342 = vmatpush1.msra.mxu0 0.0
  %1343 = vmatprep.subr.mxu0 0.0
  %1344 = vmatpush1.msra.mxu0 0.0
  %1345 = vmatprep.subr.mxu0 0.0
  %1346 = vmatpush1.msra.mxu0 0.0
  %1347 = vmatprep.subr.mxu0 0.0
  %1348 = vmatpush1.msra.mxu0 0.0
  %1349 = vmatprep.subr.mxu0 0.0
  %1350 = vmatpush1.msra.mxu0 0.0
  %1351 = vmatprep.subr.mxu0 0.0
  %1352 = vmatpush1.msra.mxu0 0.0
  %1353 = vmatprep.subr.mxu0 0.0
  %1354 = vmatpush1.msra.mxu0 0.0
  %1355 = vmatprep.subr.mxu0 0.0
  %1356 = vmatpush1.msra.mxu0 0.0
  %1357 = vmatprep.subr.mxu0 0.0
  %1358 = vmatpush1.msra.mxu0 0.0
  %1359 = vmatprep.subr.mxu0 0.0
  %1360 = vmatpush1.msra.mxu0 0.0
  %1361 = vmatprep.subr.mxu0 0.0
  %1362 = vmatpush1.msra.mxu0 0.0
  %1363 = vmatprep.subr.mxu0 0.0
  %1364 = vmatpush1.msra.mxu0 0.0
  %1365 = vmatprep.subr.mxu0 0.0
  %1366 = vmatpush1.msra.mxu0 0.0
  %1367 = vmatprep.mubr.f32.mxu0 0.0
  %1368 = vmatmul.mubr.f32.gmra.mrb[0].mxu0 %v1301
  %v1369 = vpop.f32.mrb[0].mxu0
  %v1370 = vadd.f32 0.0, %v1369
  %v1371 = vpop.f32.mrb[0].mxu0
  %v1372 = vadd.f32 0.0, %v1371
  %1373 = vdwg.mxu0
  %1374 = vmatprep.subr.mxu0 %v1292
  %1375 = vmatpush1.msra.mxu0 %v1291
  %1376 = vmatprep.subr.mxu0 0.0
  %1377 = vmatpush1.msra.mxu0 0.0
  %1378 = vmatprep.subr.mxu0 0.0
  %1379 = vmatpush1.msra.mxu0 0.0
  %1380 = vmatprep.subr.mxu0 0.0
  %1381 = vmatpush1.msra.mxu0 0.0
  %1382 = vmatprep.subr.mxu0 0.0
  %1383 = vmatpush1.msra.mxu0 0.0
  %1384 = vmatprep.subr.mxu0 0.0
  %1385 = vmatpush1.msra.mxu0 0.0
  %1386 = vmatprep.subr.mxu0 0.0
  %1387 = vmatpush1.msra.mxu0 0.0
  %1388 = vmatprep.subr.mxu0 0.0
  %1389 = vmatpush1.msra.mxu0 0.0
  %1390 = vmatprep.subr.mxu0 0.0
  %1391 = vmatpush1.msra.mxu0 0.0
  %1392 = vmatprep.subr.mxu0 0.0
  %1393 = vmatpush1.msra.mxu0 0.0
  %1394 = vmatprep.subr.mxu0 0.0
  %1395 = vmatpush1.msra.mxu0 0.0
  %1396 = vmatprep.subr.mxu0 0.0
  %1397 = vmatpush1.msra.mxu0 0.0
  %1398 = vmatprep.subr.mxu0 0.0
  %1399 = vmatpush1.msra.mxu0 0.0
  %1400 = vmatprep.subr.mxu0 0.0
  %1401 = vmatpush1.msra.mxu0 0.0
  %1402 = vmatprep.subr.mxu0 0.0
  %1403 = vmatpush1.msra.mxu0 0.0
  %1404 = vmatprep.subr.mxu0 0.0
  %1405 = vmatpush1.msra.mxu0 0.0
  %1406 = vmatprep.subr.mxu0 0.0
  %1407 = vmatpush1.msra.mxu0 0.0
  %1408 = vmatprep.subr.mxu0 0.0
  %1409 = vmatpush1.msra.mxu0 0.0
  %1410 = vmatprep.subr.mxu0 0.0
  %1411 = vmatpush1.msra.mxu0 0.0
  %1412 = vmatprep.subr.mxu0 0.0
  %1413 = vmatpush1.msra.mxu0 0.0
  %1414 = vmatprep.subr.mxu0 0.0
  %1415 = vmatpush1.msra.mxu0 0.0
  %1416 = vmatprep.subr.mxu0 0.0
  %1417 = vmatpush1.msra.mxu0 0.0
  %1418 = vmatprep.subr.mxu0 0.0
  %1419 = vmatpush1.msra.mxu0 0.0
  %1420 = vmatprep.subr.mxu0 0.0
  %1421 = vmatpush1.msra.mxu0 0.0
  %1422 = vmatprep.subr.mxu0 0.0
  %1423 = vmatpush1.msra.mxu0 0.0
  %1424 = vmatprep.subr.mxu0 0.0
  %1425 = vmatpush1.msra.mxu0 0.0
  %1426 = vmatprep.subr.mxu0 0.0
  %1427 = vmatpush1.msra.mxu0 0.0
  %1428 = vmatprep.subr.mxu0 0.0
  %1429 = vmatpush1.msra.mxu0 0.0
  %1430 = vmatprep.subr.mxu0 0.0
  %1431 = vmatpush1.msra.mxu0 0.0
  %1432 = vmatprep.subr.mxu0 0.0
  %1433 = vmatpush1.msra.mxu0 0.0
  %1434 = vmatprep.subr.mxu0 0.0
  %1435 = vmatpush1.msra.mxu0 0.0
  %1436 = vmatprep.subr.mxu0 0.0
  %1437 = vmatpush1.msra.mxu0 0.0
  %1438 = vmatprep.mubr.f32.mxu0 0.0
  %1439 = vmatmul.mubr.f32.gmra.mrb[0].mxu0 %v1301
  %v1440 = vpop.f32.mrb[0].mxu0
  %v1441 = vadd.f32 0.0, %v1440
  %v1442 = vpop.f32.mrb[0].mxu0
  %v1443 = vadd.f32 0.0, %v1442
  %1444 = vdwg.mxu0
  %1445 = vmatprep.subr.mxu0 %v1294
  %1446 = vmatpush1.msra.mxu0 %v1293
  %1447 = vmatprep.subr.mxu0 0.0
  %1448 = vmatpush1.msra.mxu0 0.0
  %1449 = vmatprep.subr.mxu0 0.0
  %1450 = vmatpush1.msra.mxu0 0.0
  %1451 = vmatprep.subr.mxu0 0.0
  %1452 = vmatpush1.msra.mxu0 0.0
  %1453 = vmatprep.subr.mxu0 0.0
  %1454 = vmatpush1.msra.mxu0 0.0
  %1455 = vmatprep.subr.mxu0 0.0
  %1456 = vmatpush1.msra.mxu0 0.0
  %1457 = vmatprep.subr.mxu0 0.0
  %1458 = vmatpush1.msra.mxu0 0.0
  %1459 = vmatprep.subr.mxu0 0.0
  %1460 = vmatpush1.msra.mxu0 0.0
  %1461 = vmatprep.subr.mxu0 0.0
  %1462 = vmatpush1.msra.mxu0 0.0
  %1463 = vmatprep.subr.mxu0 0.0
  %1464 = vmatpush1.msra.mxu0 0.0
  %1465 = vmatprep.subr.mxu0 0.0
  %1466 = vmatpush1.msra.mxu0 0.0
  %1467 = vmatprep.subr.mxu0 0.0
  %1468 = vmatpush1.msra.mxu0 0.0
  %1469 = vmatprep.subr.mxu0 0.0
  %1470 = vmatpush1.msra.mxu0 0.0
  %1471 = vmatprep.subr.mxu0 0.0
  %1472 = vmatpush1.msra.mxu0 0.0
  %1473 = vmatprep.subr.mxu0 0.0
  %1474 = vmatpush1.msra.mxu0 0.0
  %1475 = vmatprep.subr.mxu0 0.0
  %1476 = vmatpush1.msra.mxu0 0.0
  %1477 = vmatprep.subr.mxu0 0.0
  %1478 = vmatpush1.msra.mxu0 0.0
  %1479 = vmatprep.subr.mxu0 0.0
  %1480 = vmatpush1.msra.mxu0 0.0
  %1481 = vmatprep.subr.mxu0 0.0
  %1482 = vmatpush1.msra.mxu0 0.0
  %1483 = vmatprep.subr.mxu0 0.0
  %1484 = vmatpush1.msra.mxu0 0.0
  %1485 = vmatprep.subr.mxu0 0.0
  %1486 = vmatpush1.msra.mxu0 0.0
  %1487 = vmatprep.subr.mxu0 0.0
  %1488 = vmatpush1.msra.mxu0 0.0
  %1489 = vmatprep.subr.mxu0 0.0
  %1490 = vmatpush1.msra.mxu0 0.0
  %1491 = vmatprep.subr.mxu0 0.0
  %1492 = vmatpush1.msra.mxu0 0.0
  %1493 = vmatprep.subr.mxu0 0.0
  %1494 = vmatpush1.msra.mxu0 0.0
  %1495 = vmatprep.subr.mxu0 0.0
  %1496 = vmatpush1.msra.mxu0 0.0
  %1497 = vmatprep.subr.mxu0 0.0
  %1498 = vmatpush1.msra.mxu0 0.0
  %1499 = vmatprep.subr.mxu0 0.0
  %1500 = vmatpush1.msra.mxu0 0.0
  %1501 = vmatprep.subr.mxu0 0.0
  %1502 = vmatpush1.msra.mxu0 0.0
  %1503 = vmatprep.subr.mxu0 0.0
  %1504 = vmatpush1.msra.mxu0 0.0
  %1505 = vmatprep.subr.mxu0 0.0
  %1506 = vmatpush1.msra.mxu0 0.0
  %1507 = vmatprep.subr.mxu0 0.0
  %1508 = vmatpush1.msra.mxu0 0.0
  %1509 = vmatprep.mubr.f32.mxu0 0.0
  %1510 = vmatmul.mubr.f32.gmra.mrb[0].mxu0 %v1301
  %v1511 = vpop.f32.mrb[0].mxu0
  %v1512 = vadd.f32 0.0, %v1511
  %v1513 = vpop.f32.mrb[0].mxu0
  %v1514 = vadd.f32 0.0, %v1513
  %1515 = vdwg.mxu0
  %v1516 = vadd.f32 %v1252, %v1370
  %v1517 = vadd.f32 %v1253, %v1372
  %v1518 = vadd.f32 %v1254, %v1441
  %v1519 = vadd.f32 %v1255, %v1443
  %v1520 = vadd.f32 %v1256, %v1512
  %v1521 = vadd.f32 %v1257, %v1514
  %1522 = vrot.lane.b32.xlu0 %v39, 80
  %v1523 = vpop.permute.xlu0 %1522
  %1524 = vrot.lane.b32.xlu0 %v1258, 111
  %v1525 = vpop.permute.xlu0 %1524
  %1526 = vrot.lane.b32.xlu0 %v1259, 111
  %v1527 = vpop.permute.xlu0 %1526
  %1528 = vrot.lane.b32.xlu0 %v1260, 111
  %v1529 = vpop.permute.xlu0 %1528
  %1530 = vrot.lane.b32.xlu0 %v1261, 111
  %v1531 = vpop.permute.xlu0 %1530
  %1532 = vrot.lane.b32.xlu0 %v1262, 111
  %v1533 = vpop.permute.xlu0 %1532
  %1534 = vrot.lane.b32.xlu0 %v1263, 111
  %v1535 = vpop.permute.xlu0 %1534
  %1536 = vrot.lane.b32.xlu0 %v1264, 111
  %v1537 = vpop.permute.xlu0 %1536
  %vm1538 = vcmask 908288
  %v1539 = vsel %vm1538, %v1525, %v1527
  %v1540 = vsel %vm1538, %v1527, %v1529
  %v1541 = vsel %vm1538, %v1529, %v1531
  %v1542 = vsel %vm1538, %v1531, %v1533
  %v1543 = vsel %vm1538, %v1533, %v1535
  %v1544 = vsel %vm1538, %v1535, %v1537
  %v1551 = vsel %vm77, %v1523, 0
  %1553 = vmatprep.subr.mxu0 %v1540
  %1554 = vmatpush1.msra.mxu0 %v1539
  %1555 = vmatprep.subr.mxu0 0.0
  %1556 = vmatpush1.msra.mxu0 0.0
  %1557 = vmatprep.subr.mxu0 0.0
  %1558 = vmatpush1.msra.mxu0 0.0
  %1559 = vmatprep.subr.mxu0 0.0
  %1560 = vmatpush1.msra.mxu0 0.0
  %1561 = vmatprep.subr.mxu0 0.0
  %1562 = vmatpush1.msra.mxu0 0.0
  %1563 = vmatprep.subr.mxu0 0.0
  %1564 = vmatpush1.msra.mxu0 0.0
  %1565 = vmatprep.subr.mxu0 0.0
  %1566 = vmatpush1.msra.mxu0 0.0
  %1567 = vmatprep.subr.mxu0 0.0
  %1568 = vmatpush1.msra.mxu0 0.0
  %1569 = vmatprep.subr.mxu0 0.0
  %1570 = vmatpush1.msra.mxu0 0.0
  %1571 = vmatprep.subr.mxu0 0.0
  %1572 = vmatpush1.msra.mxu0 0.0
  %1573 = vmatprep.subr.mxu0 0.0
  %1574 = vmatpush1.msra.mxu0 0.0
  %1575 = vmatprep.subr.mxu0 0.0
  %1576 = vmatpush1.msra.mxu0 0.0
  %1577 = vmatprep.subr.mxu0 0.0
  %1578 = vmatpush1.msra.mxu0 0.0
  %1579 = vmatprep.subr.mxu0 0.0
  %1580 = vmatpush1.msra.mxu0 0.0
  %1581 = vmatprep.subr.mxu0 0.0
  %1582 = vmatpush1.msra.mxu0 0.0
  %1583 = vmatprep.subr.mxu0 0.0
  %1584 = vmatpush1.msra.mxu0 0.0
  %1585 = vmatprep.subr.mxu0 0.0
  %1586 = vmatpush1.msra.mxu0 0.0
  %1587 = vmatprep.subr.mxu0 0.0
  %1588 = vmatpush1.msra.mxu0 0.0
  %1589 = vmatprep.subr.mxu0 0.0
  %1590 = vmatpush1.msra.mxu0 0.0
  %1591 = vmatprep.subr.mxu0 0.0
  %1592 = vmatpush1.msra.mxu0 0.0
  %1593 = vmatprep.subr.mxu0 0.0
  %1594 = vmatpush1.msra.mxu0 0.0
  %1595 = vmatprep.subr.mxu0 0.0
  %1596 = vmatpush1.msra.mxu0 0.0
  %1597 = vmatprep.subr.mxu0 0.0
  %1598 = vmatpush1.msra.mxu0 0.0
  %1599 = vmatprep.subr.mxu0 0.0
  %1600 = vmatpush1.msra.mxu0 0.0
  %1601 = vmatprep.subr.mxu0 0.0
  %1602 = vmatpush1.msra.mxu0 0.0
  %1603 = vmatprep.subr.mxu0 0.0
  %1604 = vmatpush1.msra.mxu0 0.0
  %1605 = vmatprep.subr.mxu0 0.0
  %1606 = vmatpush1.msra.mxu0 0.0
  %1607 = vmatprep.subr.mxu0 0.0
  %1608 = vmatpush1.msra.mxu0 0.0
  %1609 = vmatprep.subr.mxu0 0.0
  %1610 = vmatpush1.msra.mxu0 0.0
  %1611 = vmatprep.subr.mxu0 0.0
  %1612 = vmatpush1.msra.mxu0 0.0
  %1613 = vmatprep.subr.mxu0 0.0
  %1614 = vmatpush1.msra.mxu0 0.0
  %1615 = vmatprep.subr.mxu0 0.0
  %1616 = vmatpush1.msra.mxu0 0.0
  %1617 = vmatprep.mubr.f32.mxu0 0.0
  %1618 = vmatmul.mubr.f32.gmra.mrb[0].mxu0 %v1551
  %v1619 = vpop.f32.mrb[0].mxu0
  %v1620 = vadd.f32 0.0, %v1619
  %v1621 = vpop.f32.mrb[0].mxu0
  %v1622 = vadd.f32 0.0, %v1621
  %1623 = vdwg.mxu0
  %1624 = vmatprep.subr.mxu0 %v1542
  %1625 = vmatpush1.msra.mxu0 %v1541
  %1626 = vmatprep.subr.mxu0 0.0
  %1627 = vmatpush1.msra.mxu0 0.0
  %1628 = vmatprep.subr.mxu0 0.0
  %1629 = vmatpush1.msra.mxu0 0.0
  %1630 = vmatprep.subr.mxu0 0.0
  %1631 = vmatpush1.msra.mxu0 0.0
  %1632 = vmatprep.subr.mxu0 0.0
  %1633 = vmatpush1.msra.mxu0 0.0
  %1634 = vmatprep.subr.mxu0 0.0
  %1635 = vmatpush1.msra.mxu0 0.0
  %1636 = vmatprep.subr.mxu0 0.0
  %1637 = vmatpush1.msra.mxu0 0.0
  %1638 = vmatprep.subr.mxu0 0.0
  %1639 = vmatpush1.msra.mxu0 0.0
  %1640 = vmatprep.subr.mxu0 0.0
  %1641 = vmatpush1.msra.mxu0 0.0
  %1642 = vmatprep.subr.mxu0 0.0
  %1643 = vmatpush1.msra.mxu0 0.0
  %1644 = vmatprep.subr.mxu0 0.0
  %1645 = vmatpush1.msra.mxu0 0.0
  %1646 = vmatprep.subr.mxu0 0.0
  %1647 = vmatpush1.msra.mxu0 0.0
  %1648 = vmatprep.subr.mxu0 0.0
  %1649 = vmatpush1.msra.mxu0 0.0
  %1650 = vmatprep.subr.mxu0 0.0
  %1651 = vmatpush1.msra.mxu0 0.0
  %1652 = vmatprep.subr.mxu0 0.0
  %1653 = vmatpush1.msra.mxu0 0.0
  %1654 = vmatprep.subr.mxu0 0.0
  %1655 = vmatpush1.msra.mxu0 0.0
  %1656 = vmatprep.subr.mxu0 0.0
  %1657 = vmatpush1.msra.mxu0 0.0
  %1658 = vmatprep.subr.mxu0 0.0
  %1659 = vmatpush1.msra.mxu0 0.0
  %1660 = vmatprep.subr.mxu0 0.0
  %1661 = vmatpush1.msra.mxu0 0.0
  %1662 = vmatprep.subr.mxu0 0.0
  %1663 = vmatpush1.msra.mxu0 0.0
  %1664 = vmatprep.subr.mxu0 0.0
  %1665 = vmatpush1.msra.mxu0 0.0
  %1666 = vmatprep.subr.mxu0 0.0
  %1667 = vmatpush1.msra.mxu0 0.0
  %1668 = vmatprep.subr.mxu0 0.0
  %1669 = vmatpush1.msra.mxu0 0.0
  %1670 = vmatprep.subr.mxu0 0.0
  %1671 = vmatpush1.msra.mxu0 0.0
  %1672 = vmatprep.subr.mxu0 0.0
  %1673 = vmatpush1.msra.mxu0 0.0
  %1674 = vmatprep.subr.mxu0 0.0
  %1675 = vmatpush1.msra.mxu0 0.0
  %1676 = vmatprep.subr.mxu0 0.0
  %1677 = vmatpush1.msra.mxu0 0.0
  %1678 = vmatprep.subr.mxu0 0.0
  %1679 = vmatpush1.msra.mxu0 0.0
  %1680 = vmatprep.subr.mxu0 0.0
  %1681 = vmatpush1.msra.mxu0 0.0
  %1682 = vmatprep.subr.mxu0 0.0
  %1683 = vmatpush1.msra.mxu0 0.0
  %1684 = vmatprep.subr.mxu0 0.0
  %1685 = vmatpush1.msra.mxu0 0.0
  %1686 = vmatprep.subr.mxu0 0.0
  %1687 = vmatpush1.msra.mxu0 0.0
  %1688 = vmatprep.mubr.f32.mxu0 0.0
  %1689 = vmatmul.mubr.f32.gmra.mrb[0].mxu0 %v1551
  %v1690 = vpop.f32.mrb[0].mxu0
  %v1691 = vadd.f32 0.0, %v1690
  %v1692 = vpop.f32.mrb[0].mxu0
  %v1693 = vadd.f32 0.0, %v1692
  %1694 = vdwg.mxu0
  %1695 = vmatprep.subr.mxu0 %v1544
  %1696 = vmatpush1.msra.mxu0 %v1543
  %1697 = vmatprep.subr.mxu0 0.0
  %1698 = vmatpush1.msra.mxu0 0.0
  %1699 = vmatprep.subr.mxu0 0.0
  %1700 = vmatpush1.msra.mxu0 0.0
  %1701 = vmatprep.subr.mxu0 0.0
  %1702 = vmatpush1.msra.mxu0 0.0
  %1703 = vmatprep.subr.mxu0 0.0
  %1704 = vmatpush1.msra.mxu0 0.0
  %1705 = vmatprep.subr.mxu0 0.0
  %1706 = vmatpush1.msra.mxu0 0.0
  %1707 = vmatprep.subr.mxu0 0.0
  %1708 = vmatpush1.msra.mxu0 0.0
  %1709 = vmatprep.subr.mxu0 0.0
  %1710 = vmatpush1.msra.mxu0 0.0
  %1711 = vmatprep.subr.mxu0 0.0
  %1712 = vmatpush1.msra.mxu0 0.0
  %1713 = vmatprep.subr.mxu0 0.0
  %1714 = vmatpush1.msra.mxu0 0.0
  %1715 = vmatprep.subr.mxu0 0.0
  %1716 = vmatpush1.msra.mxu0 0.0
  %1717 = vmatprep.subr.mxu0 0.0
  %1718 = vmatpush1.msra.mxu0 0.0
  %1719 = vmatprep.subr.mxu0 0.0
  %1720 = vmatpush1.msra.mxu0 0.0
  %1721 = vmatprep.subr.mxu0 0.0
  %1722 = vmatpush1.msra.mxu0 0.0
  %1723 = vmatprep.subr.mxu0 0.0
  %1724 = vmatpush1.msra.mxu0 0.0
  %1725 = vmatprep.subr.mxu0 0.0
  %1726 = vmatpush1.msra.mxu0 0.0
  %1727 = vmatprep.subr.mxu0 0.0
  %1728 = vmatpush1.msra.mxu0 0.0
  %1729 = vmatprep.subr.mxu0 0.0
  %1730 = vmatpush1.msra.mxu0 0.0
  %1731 = vmatprep.subr.mxu0 0.0
  %1732 = vmatpush1.msra.mxu0 0.0
  %1733 = vmatprep.subr.mxu0 0.0
  %1734 = vmatpush1.msra.mxu0 0.0
  %1735 = vmatprep.subr.mxu0 0.0
  %1736 = vmatpush1.msra.mxu0 0.0
  %1737 = vmatprep.subr.mxu0 0.0
  %1738 = vmatpush1.msra.mxu0 0.0
  %1739 = vmatprep.subr.mxu0 0.0
  %1740 = vmatpush1.msra.mxu0 0.0
  %1741 = vmatprep.subr.mxu0 0.0
  %1742 = vmatpush1.msra.mxu0 0.0
  %1743 = vmatprep.subr.mxu0 0.0
  %1744 = vmatpush1.msra.mxu0 0.0
  %1745 = vmatprep.subr.mxu0 0.0
  %1746 = vmatpush1.msra.mxu0 0.0
  %1747 = vmatprep.subr.mxu0 0.0
  %1748 = vmatpush1.msra.mxu0 0.0
  %1749 = vmatprep.subr.mxu0 0.0
  %1750 = vmatpush1.msra.mxu0 0.0
  %1751 = vmatprep.subr.mxu0 0.0
  %1752 = vmatpush1.msra.mxu0 0.0
  %1753 = vmatprep.subr.mxu0 0.0
  %1754 = vmatpush1.msra.mxu0 0.0
  %1755 = vmatprep.subr.mxu0 0.0
  %1756 = vmatpush1.msra.mxu0 0.0
  %1757 = vmatprep.subr.mxu0 0.0
  %1758 = vmatpush1.msra.mxu0 0.0
  %1759 = vmatprep.mubr.f32.mxu0 0.0
  %1760 = vmatmul.mubr.f32.gmra.mrb[0].mxu0 %v1551
  %v1761 = vpop.f32.mrb[0].mxu0
  %v1762 = vadd.f32 0.0, %v1761
  %v1763 = vpop.f32.mrb[0].mxu0
  %v1764 = vadd.f32 0.0, %v1763
  %1765 = vdwg.mxu0
  %v1766 = vadd.f32 %v1516, %v1620
  %v1767 = vadd.f32 %v1517, %v1622
  %v1768 = vadd.f32 %v1518, %v1691
  %v1769 = vadd.f32 %v1519, %v1693
  %v1770 = vadd.f32 %v1520, %v1762
  %v1771 = vadd.f32 %v1521, %v1764
  %1772 = vrot.lane.b32.xlu0 %v39, 72
  %v1773 = vpop.permute.xlu0 %1772
  %1774 = vrot.lane.b32.xlu0 %v1258, 110
  %v1775 = vpop.permute.xlu0 %1774
  %1776 = vrot.lane.b32.xlu0 %v1259, 110
  %v1777 = vpop.permute.xlu0 %1776
  %1778 = vrot.lane.b32.xlu0 %v1260, 110
  %v1779 = vpop.permute.xlu0 %1778
  %1780 = vrot.lane.b32.xlu0 %v1261, 110
  %v1781 = vpop.permute.xlu0 %1780
  %1782 = vrot.lane.b32.xlu0 %v1262, 110
  %v1783 = vpop.permute.xlu0 %1782
  %1784 = vrot.lane.b32.xlu0 %v1263, 110
  %v1785 = vpop.permute.xlu0 %1784
  %1786 = vrot.lane.b32.xlu0 %v1264, 110
  %v1787 = vpop.permute.xlu0 %1786
  %vm1788 = vcmask 900096
  %v1789 = vsel %vm1788, %v1775, %v1777
  %v1790 = vsel %vm1788, %v1777, %v1779
  %v1791 = vsel %vm1788, %v1779, %v1781
  %v1792 = vsel %vm1788, %v1781, %v1783
  %v1793 = vsel %vm1788, %v1783, %v1785
  %v1794 = vsel %vm1788, %v1785, %v1787
  %v1801 = vsel %vm77, %v1773, 0
  %1803 = vmatprep.subr.mxu0 %v1790
  %1804 = vmatpush1.msra.mxu0 %v1789
  %1805 = vmatprep.subr.mxu0 0.0
  %1806 = vmatpush1.msra.mxu0 0.0
  %1807 = vmatprep.subr.mxu0 0.0
  %1808 = vmatpush1.msra.mxu0 0.0
  %1809 = vmatprep.subr.mxu0 0.0
  %1810 = vmatpush1.msra.mxu0 0.0
  %1811 = vmatprep.subr.mxu0 0.0
  %1812 = vmatpush1.msra.mxu0 0.0
  %1813 = vmatprep.subr.mxu0 0.0
  %1814 = vmatpush1.msra.mxu0 0.0
  %1815 = vmatprep.subr.mxu0 0.0
  %1816 = vmatpush1.msra.mxu0 0.0
  %1817 = vmatprep.subr.mxu0 0.0
  %1818 = vmatpush1.msra.mxu0 0.0
  %1819 = vmatprep.subr.mxu0 0.0
  %1820 = vmatpush1.msra.mxu0 0.0
  %1821 = vmatprep.subr.mxu0 0.0
  %1822 = vmatpush1.msra.mxu0 0.0
  %1823 = vmatprep.subr.mxu0 0.0
  %1824 = vmatpush1.msra.mxu0 0.0
  %1825 = vmatprep.subr.mxu0 0.0
  %1826 = vmatpush1.msra.mxu0 0.0
  %1827 = vmatprep.subr.mxu0 0.0
  %1828 = vmatpush1.msra.mxu0 0.0
  %1829 = vmatprep.subr.mxu0 0.0
  %1830 = vmatpush1.msra.mxu0 0.0
  %1831 = vmatprep.subr.mxu0 0.0
  %1832 = vmatpush1.msra.mxu0 0.0
  %1833 = vmatprep.subr.mxu0 0.0
  %1834 = vmatpush1.msra.mxu0 0.0
  %1835 = vmatprep.subr.mxu0 0.0
  %1836 = vmatpush1.msra.mxu0 0.0
  %1837 = vmatprep.subr.mxu0 0.0
  %1838 = vmatpush1.msra.mxu0 0.0
  %1839 = vmatprep.subr.mxu0 0.0
  %1840 = vmatpush1.msra.mxu0 0.0
  %1841 = vmatprep.subr.mxu0 0.0
  %1842 = vmatpush1.msra.mxu0 0.0
  %1843 = vmatprep.subr.mxu0 0.0
  %1844 = vmatpush1.msra.mxu0 0.0
  %1845 = vmatprep.subr.mxu0 0.0
  %1846 = vmatpush1.msra.mxu0 0.0
  %1847 = vmatprep.subr.mxu0 0.0
  %1848 = vmatpush1.msra.mxu0 0.0
  %1849 = vmatprep.subr.mxu0 0.0
  %1850 = vmatpush1.msra.mxu0 0.0
  %1851 = vmatprep.subr.mxu0 0.0
  %1852 = vmatpush1.msra.mxu0 0.0
  %1853 = vmatprep.subr.mxu0 0.0
  %1854 = vmatpush1.msra.mxu0 0.0
  %1855 = vmatprep.subr.mxu0 0.0
  %1856 = vmatpush1.msra.mxu0 0.0
  %1857 = vmatprep.subr.mxu0 0.0
  %1858 = vmatpush1.msra.mxu0 0.0
  %1859 = vmatprep.subr.mxu0 0.0
  %1860 = vmatpush1.msra.mxu0 0.0
  %1861 = vmatprep.subr.mxu0 0.0
  %1862 = vmatpush1.msra.mxu0 0.0
  %1863 = vmatprep.subr.mxu0 0.0
  %1864 = vmatpush1.msra.mxu0 0.0
  %1865 = vmatprep.subr.mxu0 0.0
  %1866 = vmatpush1.msra.mxu0 0.0
  %1867 = vmatprep.mubr.f32.mxu0 0.0
  %1868 = vmatmul.mubr.f32.gmra.mrb[0].mxu0 %v1801
  %v1869 = vpop.f32.mrb[0].mxu0
  %v1870 = vadd.f32 0.0, %v1869
  %v1871 = vpop.f32.mrb[0].mxu0
  %v1872 = vadd.f32 0.0, %v1871
  %1873 = vdwg.mxu0
  %1874 = vmatprep.subr.mxu0 %v1792
  %1875 = vmatpush1.msra.mxu0 %v1791
  %1876 = vmatprep.subr.mxu0 0.0
  %1877 = vmatpush1.msra.mxu0 0.0
  %1878 = vmatprep.subr.mxu0 0.0
  %1879 = vmatpush1.msra.mxu0 0.0
  %1880 = vmatprep.subr.mxu0 0.0
  %1881 = vmatpush1.msra.mxu0 0.0
  %1882 = vmatprep.subr.mxu0 0.0
  %1883 = vmatpush1.msra.mxu0 0.0
  %1884 = vmatprep.subr.mxu0 0.0
  %1885 = vmatpush1.msra.mxu0 0.0
  %1886 = vmatprep.subr.mxu0 0.0
  %1887 = vmatpush1.msra.mxu0 0.0
  %1888 = vmatprep.subr.mxu0 0.0
  %1889 = vmatpush1.msra.mxu0 0.0
  %1890 = vmatprep.subr.mxu0 0.0
  %1891 = vmatpush1.msra.mxu0 0.0
  %1892 = vmatprep.subr.mxu0 0.0
  %1893 = vmatpush1.msra.mxu0 0.0
  %1894 = vmatprep.subr.mxu0 0.0
  %1895 = vmatpush1.msra.mxu0 0.0
  %1896 = vmatprep.subr.mxu0 0.0
  %1897 = vmatpush1.msra.mxu0 0.0
  %1898 = vmatprep.subr.mxu0 0.0
  %1899 = vmatpush1.msra.mxu0 0.0
  %1900 = vmatprep.subr.mxu0 0.0
  %1901 = vmatpush1.msra.mxu0 0.0
  %1902 = vmatprep.subr.mxu0 0.0
  %1903 = vmatpush1.msra.mxu0 0.0
  %1904 = vmatprep.subr.mxu0 0.0
  %1905 = vmatpush1.msra.mxu0 0.0
  %1906 = vmatprep.subr.mxu0 0.0
  %1907 = vmatpush1.msra.mxu0 0.0
  %1908 = vmatprep.subr.mxu0 0.0
  %1909 = vmatpush1.msra.mxu0 0.0
  %1910 = vmatprep.subr.mxu0 0.0
  %1911 = vmatpush1.msra.mxu0 0.0
  %1912 = vmatprep.subr.mxu0 0.0
  %1913 = vmatpush1.msra.mxu0 0.0
  %1914 = vmatprep.subr.mxu0 0.0
  %1915 = vmatpush1.msra.mxu0 0.0
  %1916 = vmatprep.subr.mxu0 0.0
  %1917 = vmatpush1.msra.mxu0 0.0
  %1918 = vmatprep.subr.mxu0 0.0
  %1919 = vmatpush1.msra.mxu0 0.0
  %1920 = vmatprep.subr.mxu0 0.0
  %1921 = vmatpush1.msra.mxu0 0.0
  %1922 = vmatprep.subr.mxu0 0.0
  %1923 = vmatpush1.msra.mxu0 0.0
  %1924 = vmatprep.subr.mxu0 0.0
  %1925 = vmatpush1.msra.mxu0 0.0
  %1926 = vmatprep.subr.mxu0 0.0
  %1927 = vmatpush1.msra.mxu0 0.0
  %1928 = vmatprep.subr.mxu0 0.0
  %1929 = vmatpush1.msra.mxu0 0.0
  %1930 = vmatprep.subr.mxu0 0.0
  %1931 = vmatpush1.msra.mxu0 0.0
  %1932 = vmatprep.subr.mxu0 0.0
  %1933 = vmatpush1.msra.mxu0 0.0
  %1934 = vmatprep.subr.mxu0 0.0
  %1935 = vmatpush1.msra.mxu0 0.0
  %1936 = vmatprep.subr.mxu0 0.0
  %1937 = vmatpush1.msra.mxu0 0.0
  %1938 = vmatprep.mubr.f32.mxu0 0.0
  %1939 = vmatmul.mubr.f32.gmra.mrb[0].mxu0 %v1801
  %v1940 = vpop.f32.mrb[0].mxu0
  %v1941 = vadd.f32 0.0, %v1940
  %v1942 = vpop.f32.mrb[0].mxu0
  %v1943 = vadd.f32 0.0, %v1942
  %1944 = vdwg.mxu0
  %1945 = vmatprep.subr.mxu0 %v1794
  %1946 = vmatpush1.msra.mxu0 %v1793
  %1947 = vmatprep.subr.mxu0 0.0
  %1948 = vmatpush1.msra.mxu0 0.0
  %1949 = vmatprep.subr.mxu0 0.0
  %1950 = vmatpush1.msra.mxu0 0.0
  %1951 = vmatprep.subr.mxu0 0.0
  %1952 = vmatpush1.msra.mxu0 0.0
  %1953 = vmatprep.subr.mxu0 0.0
  %1954 = vmatpush1.msra.mxu0 0.0
  %1955 = vmatprep.subr.mxu0 0.0
  %1956 = vmatpush1.msra.mxu0 0.0
  %1957 = vmatprep.subr.mxu0 0.0
  %1958 = vmatpush1.msra.mxu0 0.0
  %1959 = vmatprep.subr.mxu0 0.0
  %1960 = vmatpush1.msra.mxu0 0.0
  %1961 = vmatprep.subr.mxu0 0.0
  %1962 = vmatpush1.msra.mxu0 0.0
  %1963 = vmatprep.subr.mxu0 0.0
  %1964 = vmatpush1.msra.mxu0 0.0
  %1965 = vmatprep.subr.mxu0 0.0
  %1966 = vmatpush1.msra.mxu0 0.0
  %1967 = vmatprep.subr.mxu0 0.0
  %1968 = vmatpush1.msra.mxu0 0.0
  %1969 = vmatprep.subr.mxu0 0.0
  %1970 = vmatpush1.msra.mxu0 0.0
  %1971 = vmatprep.subr.mxu0 0.0
  %1972 = vmatpush1.msra.mxu0 0.0
  %1973 = vmatprep.subr.mxu0 0.0
  %1974 = vmatpush1.msra.mxu0 0.0
  %1975 = vmatprep.subr.mxu0 0.0
  %1976 = vmatpush1.msra.mxu0 0.0
  %1977 = vmatprep.subr.mxu0 0.0
  %1978 = vmatpush1.msra.mxu0 0.0
  %1979 = vmatprep.subr.mxu0 0.0
  %1980 = vmatpush1.msra.mxu0 0.0
  %1981 = vmatprep.subr.mxu0 0.0
  %1982 = vmatpush1.msra.mxu0 0.0
  %1983 = vmatprep.subr.mxu0 0.0
  %1984 = vmatpush1.msra.mxu0 0.0
  %1985 = vmatprep.subr.mxu0 0.0
  %1986 = vmatpush1.msra.mxu0 0.0
  %1987 = vmatprep.subr.mxu0 0.0
  %1988 = vmatpush1.msra.mxu0 0.0
  %1989 = vmatprep.subr.mxu0 0.0
  %1990 = vmatpush1.msra.mxu0 0.0
  %1991 = vmatprep.subr.mxu0 0.0
  %1992 = vmatpush1.msra.mxu0 0.0
  %1993 = vmatprep.subr.mxu0 0.0
  %1994 = vmatpush1.msra.mxu0 0.0
  %1995 = vmatprep.subr.mxu0 0.0
  %1996 = vmatpush1.msra.mxu0 0.0
  %1997 = vmatprep.subr.mxu0 0.0
  %1998 = vmatpush1.msra.mxu0 0.0
  %1999 = vmatprep.subr.mxu0 0.0
  %2000 = vmatpush1.msra.mxu0 0.0
  %2001 = vmatprep.subr.mxu0 0.0
  %2002 = vmatpush1.msra.mxu0 0.0
  %2003 = vmatprep.subr.mxu0 0.0
  %2004 = vmatpush1.msra.mxu0 0.0
  %2005 = vmatprep.subr.mxu0 0.0
  %2006 = vmatpush1.msra.mxu0 0.0
  %2007 = vmatprep.subr.mxu0 0.0
  %2008 = vmatpush1.msra.mxu0 0.0
  %2009 = vmatprep.mubr.f32.mxu0 0.0
  %2010 = vmatmul.mubr.f32.gmra.mrb[0].mxu0 %v1801
  %v2011 = vpop.f32.mrb[0].mxu0
  %v2012 = vadd.f32 0.0, %v2011
  %v2013 = vpop.f32.mrb[0].mxu0
  %v2014 = vadd.f32 0.0, %v2013
  %2015 = vdwg.mxu0
  %v2016 = vadd.f32 %v1766, %v1870
  %v2017 = vadd.f32 %v1767, %v1872
  %v2018 = vadd.f32 %v1768, %v1941
  %v2019 = vadd.f32 %v1769, %v1943
  %v2020 = vadd.f32 %v1770, %v2012
  %v2021 = vadd.f32 %v1771, %v2014
  %2022 = vrot.lane.b32.xlu0 %v39, 64
  %v2023 = vpop.permute.xlu0 %2022
  %2024 = vrot.lane.b32.xlu0 %v1258, 109
  %v2025 = vpop.permute.xlu0 %2024
  %2026 = vrot.lane.b32.xlu0 %v1259, 109
  %v2027 = vpop.permute.xlu0 %2026
  %2028 = vrot.lane.b32.xlu0 %v1260, 109
  %v2029 = vpop.permute.xlu0 %2028
  %2030 = vrot.lane.b32.xlu0 %v1261, 109
  %v2031 = vpop.permute.xlu0 %2030
  %2032 = vrot.lane.b32.xlu0 %v1262, 109
  %v2033 = vpop.permute.xlu0 %2032
  %2034 = vrot.lane.b32.xlu0 %v1263, 109
  %v2035 = vpop.permute.xlu0 %2034
  %2036 = vrot.lane.b32.xlu0 %v1264, 109
  %v2037 = vpop.permute.xlu0 %2036
  %vm2038 = vcmask 891904
  %v2039 = vsel %vm2038, %v2025, %v2027
  %v2040 = vsel %vm2038, %v2027, %v2029
  %v2041 = vsel %vm2038, %v2029, %v2031
  %v2042 = vsel %vm2038, %v2031, %v2033
  %v2043 = vsel %vm2038, %v2033, %v2035
  %v2044 = vsel %vm2038, %v2035, %v2037
  %v2051 = vsel %vm77, %v2023, 0
  %2053 = vmatprep.subr.mxu0 %v2040
  %2054 = vmatpush1.msra.mxu0 %v2039
  %2055 = vmatprep.subr.mxu0 0.0
  %2056 = vmatpush1.msra.mxu0 0.0
  %2057 = vmatprep.subr.mxu0 0.0
  %2058 = vmatpush1.msra.mxu0 0.0
  %2059 = vmatprep.subr.mxu0 0.0
  %2060 = vmatpush1.msra.mxu0 0.0
  %2061 = vmatprep.subr.mxu0 0.0
  %2062 = vmatpush1.msra.mxu0 0.0
  %2063 = vmatprep.subr.mxu0 0.0
  %2064 = vmatpush1.msra.mxu0 0.0
  %2065 = vmatprep.subr.mxu0 0.0
  %2066 = vmatpush1.msra.mxu0 0.0
  %2067 = vmatprep.subr.mxu0 0.0
  %2068 = vmatpush1.msra.mxu0 0.0
  %2069 = vmatprep.subr.mxu0 0.0
  %2070 = vmatpush1.msra.mxu0 0.0
  %2071 = vmatprep.subr.mxu0 0.0
  %2072 = vmatpush1.msra.mxu0 0.0
  %2073 = vmatprep.subr.mxu0 0.0
  %2074 = vmatpush1.msra.mxu0 0.0
  %2075 = vmatprep.subr.mxu0 0.0
  %2076 = vmatpush1.msra.mxu0 0.0
  %2077 = vmatprep.subr.mxu0 0.0
  %2078 = vmatpush1.msra.mxu0 0.0
  %2079 = vmatprep.subr.mxu0 0.0
  %2080 = vmatpush1.msra.mxu0 0.0
  %2081 = vmatprep.subr.mxu0 0.0
  %2082 = vmatpush1.msra.mxu0 0.0
  %2083 = vmatprep.subr.mxu0 0.0
  %2084 = vmatpush1.msra.mxu0 0.0
  %2085 = vmatprep.subr.mxu0 0.0
  %2086 = vmatpush1.msra.mxu0 0.0
  %2087 = vmatprep.subr.mxu0 0.0
  %2088 = vmatpush1.msra.mxu0 0.0
  %2089 = vmatprep.subr.mxu0 0.0
  %2090 = vmatpush1.msra.mxu0 0.0
  %2091 = vmatprep.subr.mxu0 0.0
  %2092 = vmatpush1.msra.mxu0 0.0
  %2093 = vmatprep.subr.mxu0 0.0
  %2094 = vmatpush1.msra.mxu0 0.0
  %2095 = vmatprep.subr.mxu0 0.0
  %2096 = vmatpush1.msra.mxu0 0.0
  %2097 = vmatprep.subr.mxu0 0.0
  %2098 = vmatpush1.msra.mxu0 0.0
  %2099 = vmatprep.subr.mxu0 0.0
  %2100 = vmatpush1.msra.mxu0 0.0
  %2101 = vmatprep.subr.mxu0 0.0
  %2102 = vmatpush1.msra.mxu0 0.0
  %2103 = vmatprep.subr.mxu0 0.0
  %2104 = vmatpush1.msra.mxu0 0.0
  %2105 = vmatprep.subr.mxu0 0.0
  %2106 = vmatpush1.msra.mxu0 0.0
  %2107 = vmatprep.subr.mxu0 0.0
  %2108 = vmatpush1.msra.mxu0 0.0
  %2109 = vmatprep.subr.mxu0 0.0
  %2110 = vmatpush1.msra.mxu0 0.0
  %2111 = vmatprep.subr.mxu0 0.0
  %2112 = vmatpush1.msra.mxu0 0.0
  %2113 = vmatprep.subr.mxu0 0.0
  %2114 = vmatpush1.msra.mxu0 0.0
  %2115 = vmatprep.subr.mxu0 0.0
  %2116 = vmatpush1.msra.mxu0 0.0
  %2117 = vmatprep.mubr.f32.mxu0 0.0
  %2118 = vmatmul.mubr.f32.gmra.mrb[0].mxu0 %v2051
  %v2119 = vpop.f32.mrb[0].mxu0
  %v2120 = vadd.f32 0.0, %v2119
  %v2121 = vpop.f32.mrb[0].mxu0
  %v2122 = vadd.f32 0.0, %v2121
  %2123 = vdwg.mxu0
  %2124 = vmatprep.subr.mxu0 %v2042
  %2125 = vmatpush1.msra.mxu0 %v2041
  %2126 = vmatprep.subr.mxu0 0.0
  %2127 = vmatpush1.msra.mxu0 0.0
  %2128 = vmatprep.subr.mxu0 0.0
  %2129 = vmatpush1.msra.mxu0 0.0
  %2130 = vmatprep.subr.mxu0 0.0
  %2131 = vmatpush1.msra.mxu0 0.0
  %2132 = vmatprep.subr.mxu0 0.0
  %2133 = vmatpush1.msra.mxu0 0.0
  %2134 = vmatprep.subr.mxu0 0.0
  %2135 = vmatpush1.msra.mxu0 0.0
  %2136 = vmatprep.subr.mxu0 0.0
  %2137 = vmatpush1.msra.mxu0 0.0
  %2138 = vmatprep.subr.mxu0 0.0
  %2139 = vmatpush1.msra.mxu0 0.0
  %2140 = vmatprep.subr.mxu0 0.0
  %2141 = vmatpush1.msra.mxu0 0.0
  %2142 = vmatprep.subr.mxu0 0.0
  %2143 = vmatpush1.msra.mxu0 0.0
  %2144 = vmatprep.subr.mxu0 0.0
  %2145 = vmatpush1.msra.mxu0 0.0
  %2146 = vmatprep.subr.mxu0 0.0
  %2147 = vmatpush1.msra.mxu0 0.0
  %2148 = vmatprep.subr.mxu0 0.0
  %2149 = vmatpush1.msra.mxu0 0.0
  %2150 = vmatprep.subr.mxu0 0.0
  %2151 = vmatpush1.msra.mxu0 0.0
  %2152 = vmatprep.subr.mxu0 0.0
  %2153 = vmatpush1.msra.mxu0 0.0
  %2154 = vmatprep.subr.mxu0 0.0
  %2155 = vmatpush1.msra.mxu0 0.0
  %2156 = vmatprep.subr.mxu0 0.0
  %2157 = vmatpush1.msra.mxu0 0.0
  %2158 = vmatprep.subr.mxu0 0.0
  %2159 = vmatpush1.msra.mxu0 0.0
  %2160 = vmatprep.subr.mxu0 0.0
  %2161 = vmatpush1.msra.mxu0 0.0
  %2162 = vmatprep.subr.mxu0 0.0
  %2163 = vmatpush1.msra.mxu0 0.0
  %2164 = vmatprep.subr.mxu0 0.0
  %2165 = vmatpush1.msra.mxu0 0.0
  %2166 = vmatprep.subr.mxu0 0.0
  %2167 = vmatpush1.msra.mxu0 0.0
  %2168 = vmatprep.subr.mxu0 0.0
  %2169 = vmatpush1.msra.mxu0 0.0
  %2170 = vmatprep.subr.mxu0 0.0
  %2171 = vmatpush1.msra.mxu0 0.0
  %2172 = vmatprep.subr.mxu0 0.0
  %2173 = vmatpush1.msra.mxu0 0.0
  %2174 = vmatprep.subr.mxu0 0.0
  %2175 = vmatpush1.msra.mxu0 0.0
  %2176 = vmatprep.subr.mxu0 0.0
  %2177 = vmatpush1.msra.mxu0 0.0
  %2178 = vmatprep.subr.mxu0 0.0
  %2179 = vmatpush1.msra.mxu0 0.0
  %2180 = vmatprep.subr.mxu0 0.0
  %2181 = vmatpush1.msra.mxu0 0.0
  %2182 = vmatprep.subr.mxu0 0.0
  %2183 = vmatpush1.msra.mxu0 0.0
  %2184 = vmatprep.subr.mxu0 0.0
  %2185 = vmatpush1.msra.mxu0 0.0
  %2186 = vmatprep.subr.mxu0 0.0
  %2187 = vmatpush1.msra.mxu0 0.0
  %2188 = vmatprep.mubr.f32.mxu0 0.0
  %2189 = vmatmul.mubr.f32.gmra.mrb[0].mxu0 %v2051
  %v2190 = vpop.f32.mrb[0].mxu0
  %v2191 = vadd.f32 0.0, %v2190
  %v2192 = vpop.f32.mrb[0].mxu0
  %v2193 = vadd.f32 0.0, %v2192
  %2194 = vdwg.mxu0
  %2195 = vmatprep.subr.mxu0 %v2044
  %2196 = vmatpush1.msra.mxu0 %v2043
  %2197 = vmatprep.subr.mxu0 0.0
  %2198 = vmatpush1.msra.mxu0 0.0
  %2199 = vmatprep.subr.mxu0 0.0
  %2200 = vmatpush1.msra.mxu0 0.0
  %2201 = vmatprep.subr.mxu0 0.0
  %2202 = vmatpush1.msra.mxu0 0.0
  %2203 = vmatprep.subr.mxu0 0.0
  %2204 = vmatpush1.msra.mxu0 0.0
  %2205 = vmatprep.subr.mxu0 0.0
  %2206 = vmatpush1.msra.mxu0 0.0
  %2207 = vmatprep.subr.mxu0 0.0
  %2208 = vmatpush1.msra.mxu0 0.0
  %2209 = vmatprep.subr.mxu0 0.0
  %2210 = vmatpush1.msra.mxu0 0.0
  %2211 = vmatprep.subr.mxu0 0.0
  %2212 = vmatpush1.msra.mxu0 0.0
  %2213 = vmatprep.subr.mxu0 0.0
  %2214 = vmatpush1.msra.mxu0 0.0
  %2215 = vmatprep.subr.mxu0 0.0
  %2216 = vmatpush1.msra.mxu0 0.0
  %2217 = vmatprep.subr.mxu0 0.0
  %2218 = vmatpush1.msra.mxu0 0.0
  %2219 = vmatprep.subr.mxu0 0.0
  %2220 = vmatpush1.msra.mxu0 0.0
  %2221 = vmatprep.subr.mxu0 0.0
  %2222 = vmatpush1.msra.mxu0 0.0
  %2223 = vmatprep.subr.mxu0 0.0
  %2224 = vmatpush1.msra.mxu0 0.0
  %2225 = vmatprep.subr.mxu0 0.0
  %2226 = vmatpush1.msra.mxu0 0.0
  %2227 = vmatprep.subr.mxu0 0.0
  %2228 = vmatpush1.msra.mxu0 0.0
  %2229 = vmatprep.subr.mxu0 0.0
  %2230 = vmatpush1.msra.mxu0 0.0
  %2231 = vmatprep.subr.mxu0 0.0
  %2232 = vmatpush1.msra.mxu0 0.0
  %2233 = vmatprep.subr.mxu0 0.0
  %2234 = vmatpush1.msra.mxu0 0.0
  %2235 = vmatprep.subr.mxu0 0.0
  %2236 = vmatpush1.msra.mxu0 0.0
  %2237 = vmatprep.subr.mxu0 0.0
  %2238 = vmatpush1.msra.mxu0 0.0
  %2239 = vmatprep.subr.mxu0 0.0
  %2240 = vmatpush1.msra.mxu0 0.0
  %2241 = vmatprep.subr.mxu0 0.0
  %2242 = vmatpush1.msra.mxu0 0.0
  %2243 = vmatprep.subr.mxu0 0.0
  %2244 = vmatpush1.msra.mxu0 0.0
  %2245 = vmatprep.subr.mxu0 0.0
  %2246 = vmatpush1.msra.mxu0 0.0
  %2247 = vmatprep.subr.mxu0 0.0
  %2248 = vmatpush1.msra.mxu0 0.0
  %2249 = vmatprep.subr.mxu0 0.0
  %2250 = vmatpush1.msra.mxu0 0.0
  %2251 = vmatprep.subr.mxu0 0.0
  %2252 = vmatpush1.msra.mxu0 0.0
  %2253 = vmatprep.subr.mxu0 0.0
  %2254 = vmatpush1.msra.mxu0 0.0
  %2255 = vmatprep.subr.mxu0 0.0
  %2256 = vmatpush1.msra.mxu0 0.0
  %2257 = vmatprep.subr.mxu0 0.0
  %2258 = vmatpush1.msra.mxu0 0.0
  %2259 = vmatprep.mubr.f32.mxu0 0.0
  %2260 = vmatmul.mubr.f32.gmra.mrb[0].mxu0 %v2051
  %v2261 = vpop.f32.mrb[0].mxu0
  %v2262 = vadd.f32 0.0, %v2261
  %v2263 = vpop.f32.mrb[0].mxu0
  %v2264 = vadd.f32 0.0, %v2263
  %2265 = vdwg.mxu0
  %v2266 = vadd.f32 %v2016, %v2120
  %v2267 = vadd.f32 %v2017, %v2122
  %v2268 = vadd.f32 %v2018, %v2191
  %v2269 = vadd.f32 %v2019, %v2193
  %v2270 = vadd.f32 %v2020, %v2262
  %v2271 = vadd.f32 %v2021, %v2264
  %v2273 = vlaneseq
  %v2274 = vshrl.u32 %v2273, 7
  %v2275 = vsub.s32 0, %v2274
  %v2276 = vrot.slane %v29, %v2275
  %v2277 = vlaneseq
  %v2278 = vshrl.u32 %v2277, 7
  %v2279 = vsub.s32 1, %v2278
  %v2280 = vrot.slane %v29, %v2279
  %v2281 = vlaneseq
  %v2282 = vshrl.u32 %v2281, 7
  %v2283 = vsub.s32 2, %v2282
  %v2284 = vrot.slane %v29, %v2283
  %v2285 = vlaneseq
  %v2286 = vshrl.u32 %v2285, 7
  %v2287 = vsub.s32 3, %v2286
  %v2288 = vrot.slane %v29, %v2287
  %v2289 = vlaneseq
  %v2290 = vshrl.u32 %v2289, 7
  %v2291 = vsub.s32 4, %v2290
  %v2292 = vrot.slane %v29, %v2291
  %v2293 = vlaneseq
  %v2294 = vshrl.u32 %v2293, 7
  %v2295 = vsub.s32 5, %v2294
  %v2296 = vrot.slane %v29, %v2295
  %v2303 = vmul.f32 %v2266, %v2276
  %v2304 = vmul.f32 %v2267, %v2280
  %v2305 = vmul.f32 %v2268, %v2284
  %v2306 = vmul.f32 %v2269, %v2288
  %v2307 = vmul.f32 %v2270, %v2292
  %v2308 = vmul.f32 %v2271, %v2296
  %v2309 = vadd.f32 %v2303, %v2304
  %v2310 = vadd.f32 %v2309, %v2305
  %v2311 = vadd.f32 %v2310, %v2306
  %v2312 = vadd.f32 %v2311, %v2307
  %v2313 = vadd.f32 %v2312, %v2308
  %2314 = vadd.xlane.f32.xlu0 %v2313
  %v2315 = vpop.xlane.xlu0 %2314
  %v2316 = vmul.f32 %v2303, %v2303
  %v2317 = vmul.f32 %v2304, %v2304
  %v2318 = vmul.f32 %v2305, %v2305
  %v2319 = vmul.f32 %v2306, %v2306
  %v2320 = vmul.f32 %v2307, %v2307
  %v2321 = vmul.f32 %v2308, %v2308
  %v2322 = vadd.f32 %v2316, %v2317
  %v2323 = vadd.f32 %v2322, %v2318
  %v2324 = vadd.f32 %v2323, %v2319
  %v2325 = vadd.f32 %v2324, %v2320
  %v2326 = vadd.f32 %v2325, %v2321
  %2327 = vadd.xlane.f32.xlu0 %v2326
  %v2328 = vpop.xlane.xlu0 %2327
  %v2329 = vmul.f32 %v2315, 0.001953125
  %v2330 = vmul.f32 %v2328, 0.001953125
  %v2331 = vmul.f32 %v2329, %v2329
  %v2332 = vsub.f32 %v2330, %v2331
  %v2333 = vmax.f32 %v2332, 0.0
  %v2334 = vld [vmem:[%s2] sm:$0xff]
  %v2335 = vadd.f32 %v2333, 1e-05
  %v2336 = vrsqrt.pop %v2335
  %v2337 = vmul.f32 %v2334, %v2336
  %v2338 = vld [vmem:[%s3] sm:$0xff]
  %v2339 = vmul.f32 %v2329, %v2337
  %v2340 = vsub.f32 %v2338, %v2339
  %2342 = vset.pattern.permute.xlu0 0
  %2343 = vperm.xlu0 %2342, %v2337
  %v2344 = vpop.permute.xlu0 %2343
  %v2346 = vmul.f32 %v2266, %v2344
  %v2347 = vmul.f32 %v2267, %v2344
  %v2348 = vmul.f32 %v2268, %v2344
  %v2349 = vmul.f32 %v2269, %v2344
  %v2350 = vmul.f32 %v2270, %v2344
  %v2351 = vmul.f32 %v2271, %v2344
  %2353 = vset.pattern.permute.xlu0 0
  %2354 = vperm.xlu0 %2353, %v2340
  %v2355 = vpop.permute.xlu0 %2354
  %v2357 = vadd.f32 %v2346, %v2355
  %v2358 = vadd.f32 %v2347, %v2355
  %v2359 = vadd.f32 %v2348, %v2355
  %v2360 = vadd.f32 %v2349, %v2355
  %v2361 = vadd.f32 %v2350, %v2355
  %v2362 = vadd.f32 %v2351, %v2355
  %v2363 = vmax.f32 %v2357, 0.0
  %v2364 = vmax.f32 %v2358, 0.0
  %v2365 = vmax.f32 %v2359, 0.0
  %v2366 = vmax.f32 %v2360, 0.0
  %v2367 = vmax.f32 %v2361, 0.0
  %v2368 = vmax.f32 %v2362, 0.0
  %v2369 = vmul.f32 %v2363, %v2276
  %v2370 = vmul.f32 %v2364, %v2280
  %v2371 = vmul.f32 %v2365, %v2284
  %v2372 = vmul.f32 %v2366, %v2288
  %v2373 = vmul.f32 %v2367, %v2292
  %v2374 = vmul.f32 %v2368, %v2296
  %2375 = vst [vmem:[#allocation2 + $0x8] sm:$0xff] %v2369
  %2376 = vst [vmem:[#allocation2 + $0x10] sm:$0xff] %v2370
  %2377 = vst [vmem:[#allocation2 + $0x18] sm:$0xff] %v2371
  %2378 = vst [vmem:[#allocation2 + $0x20] sm:$0xff] %v2372
  %2379 = vst [vmem:[#allocation2 + $0x28] sm:$0xff] %v2373
  %2380 = vst [vmem:[#allocation2 + $0x30] sm:$0xff] %v2374
  %v2381 = vld [vmem:[#allocation2] sm:$0xff]
  %v2382 = vld [vmem:[#allocation2 + $0x8] sm:$0xff]
  %v2383 = vld [vmem:[#allocation2 + $0x10] sm:$0xff]
  %v2384 = vld [vmem:[#allocation2 + $0x18] sm:$0xff]
  %v2385 = vld [vmem:[#allocation2 + $0x20] sm:$0xff]
  %v2386 = vld [vmem:[#allocation2 + $0x28] sm:$0xff]
  %v2387 = vld [vmem:[#allocation2 + $0x30] sm:$0xff]
  %v2388 = vld [vmem:[%s4] sm:$0xff]
  %2390 = vrot.lane.b32.xlu0 %v2388, 120
  %v2391 = vpop.permute.xlu0 %2390
  %2399 = vrot.lane.b32.xlu0 %v2381, 18
  %v2400 = vpop.permute.xlu0 %2399
  %2401 = vrot.lane.b32.xlu0 %v2382, 18
  %v2402 = vpop.permute.xlu0 %2401
  %2403 = vrot.lane.b32.xlu0 %v2383, 18
  %v2404 = vpop.permute.xlu0 %2403
  %2405 = vrot.lane.b32.xlu0 %v2384, 18
  %v2406 = vpop.permute.xlu0 %2405
  %2407 = vrot.lane.b32.xlu0 %v2385, 18
  %v2408 = vpop.permute.xlu0 %2407
  %2409 = vrot.lane.b32.xlu0 %v2386, 18
  %v2410 = vpop.permute.xlu0 %2409
  %2411 = vrot.lane.b32.xlu0 %v2387, 18
  %v2412 = vpop.permute.xlu0 %2411
  %v2413 = vsel %vm64, %v2400, %v2402
  %v2414 = vsel %vm64, %v2402, %v2404
  %v2415 = vsel %vm64, %v2404, %v2406
  %v2416 = vsel %vm64, %v2406, %v2408
  %v2417 = vsel %vm64, %v2408, %v2410
  %v2418 = vsel %vm64, %v2410, %v2412
  %v2425 = vsel %vm77, %v2391, 0
  %2427 = vmatprep.subr.mxu0 %v2414
  %2428 = vmatpush1.msra.mxu0 %v2413
  %2429 = vmatprep.subr.mxu0 0.0
  %2430 = vmatpush1.msra.mxu0 0.0
  %2431 = vmatprep.subr.mxu0 0.0
  %2432 = vmatpush1.msra.mxu0 0.0
  %2433 = vmatprep.subr.mxu0 0.0
  %2434 = vmatpush1.msra.mxu0 0.0
  %2435 = vmatprep.subr.mxu0 0.0
  %2436 = vmatpush1.msra.mxu0 0.0
  %2437 = vmatprep.subr.mxu0 0.0
  %2438 = vmatpush1.msra.mxu0 0.0
  %2439 = vmatprep.subr.mxu0 0.0
  %2440 = vmatpush1.msra.mxu0 0.0
  %2441 = vmatprep.subr.mxu0 0.0
  %2442 = vmatpush1.msra.mxu0 0.0
  %2443 = vmatprep.subr.mxu0 0.0
  %2444 = vmatpush1.msra.mxu0 0.0
  %2445 = vmatprep.subr.mxu0 0.0
  %2446 = vmatpush1.msra.mxu0 0.0
  %2447 = vmatprep.subr.mxu0 0.0
  %2448 = vmatpush1.msra.mxu0 0.0
  %2449 = vmatprep.subr.mxu0 0.0
  %2450 = vmatpush1.msra.mxu0 0.0
  %2451 = vmatprep.subr.mxu0 0.0
  %2452 = vmatpush1.msra.mxu0 0.0
  %2453 = vmatprep.subr.mxu0 0.0
  %2454 = vmatpush1.msra.mxu0 0.0
  %2455 = vmatprep.subr.mxu0 0.0
  %2456 = vmatpush1.msra.mxu0 0.0
  %2457 = vmatprep.subr.mxu0 0.0
  %2458 = vmatpush1.msra.mxu0 0.0
  %2459 = vmatprep.subr.mxu0 0.0
  %2460 = vmatpush1.msra.mxu0 0.0
  %2461 = vmatprep.subr.mxu0 0.0
  %2462 = vmatpush1.msra.mxu0 0.0
  %2463 = vmatprep.subr.mxu0 0.0
  %2464 = vmatpush1.msra.mxu0 0.0
  %2465 = vmatprep.subr.mxu0 0.0
  %2466 = vmatpush1.msra.mxu0 0.0
  %2467 = vmatprep.subr.mxu0 0.0
  %2468 = vmatpush1.msra.mxu0 0.0
  %2469 = vmatprep.subr.mxu0 0.0
  %2470 = vmatpush1.msra.mxu0 0.0
  %2471 = vmatprep.subr.mxu0 0.0
  %2472 = vmatpush1.msra.mxu0 0.0
  %2473 = vmatprep.subr.mxu0 0.0
  %2474 = vmatpush1.msra.mxu0 0.0
  %2475 = vmatprep.subr.mxu0 0.0
  %2476 = vmatpush1.msra.mxu0 0.0
  %2477 = vmatprep.subr.mxu0 0.0
  %2478 = vmatpush1.msra.mxu0 0.0
  %2479 = vmatprep.subr.mxu0 0.0
  %2480 = vmatpush1.msra.mxu0 0.0
  %2481 = vmatprep.subr.mxu0 0.0
  %2482 = vmatpush1.msra.mxu0 0.0
  %2483 = vmatprep.subr.mxu0 0.0
  %2484 = vmatpush1.msra.mxu0 0.0
  %2485 = vmatprep.subr.mxu0 0.0
  %2486 = vmatpush1.msra.mxu0 0.0
  %2487 = vmatprep.subr.mxu0 0.0
  %2488 = vmatpush1.msra.mxu0 0.0
  %2489 = vmatprep.subr.mxu0 0.0
  %2490 = vmatpush1.msra.mxu0 0.0
  %2491 = vmatprep.mubr.f32.mxu0 0.0
  %2492 = vmatmul.mubr.f32.gmra.mrb[0].mxu0 %v2425
  %v2493 = vpop.f32.mrb[0].mxu0
  %v2494 = vadd.f32 0.0, %v2493
  %v2495 = vpop.f32.mrb[0].mxu0
  %v2496 = vadd.f32 0.0, %v2495
  %2497 = vdwg.mxu0
  %2498 = vmatprep.subr.mxu0 %v2416
  %2499 = vmatpush1.msra.mxu0 %v2415
  %2500 = vmatprep.subr.mxu0 0.0
  %2501 = vmatpush1.msra.mxu0 0.0
  %2502 = vmatprep.subr.mxu0 0.0
  %2503 = vmatpush1.msra.mxu0 0.0
  %2504 = vmatprep.subr.mxu0 0.0
  %2505 = vmatpush1.msra.mxu0 0.0
  %2506 = vmatprep.subr.mxu0 0.0
  %2507 = vmatpush1.msra.mxu0 0.0
  %2508 = vmatprep.subr.mxu0 0.0
  %2509 = vmatpush1.msra.mxu0 0.0
  %2510 = vmatprep.subr.mxu0 0.0
  %2511 = vmatpush1.msra.mxu0 0.0
  %2512 = vmatprep.subr.mxu0 0.0
  %2513 = vmatpush1.msra.mxu0 0.0
  %2514 = vmatprep.subr.mxu0 0.0
  %2515 = vmatpush1.msra.mxu0 0.0
  %2516 = vmatprep.subr.mxu0 0.0
  %2517 = vmatpush1.msra.mxu0 0.0
  %2518 = vmatprep.subr.mxu0 0.0
  %2519 = vmatpush1.msra.mxu0 0.0
  %2520 = vmatprep.subr.mxu0 0.0
  %2521 = vmatpush1.msra.mxu0 0.0
  %2522 = vmatprep.subr.mxu0 0.0
  %2523 = vmatpush1.msra.mxu0 0.0
  %2524 = vmatprep.subr.mxu0 0.0
  %2525 = vmatpush1.msra.mxu0 0.0
  %2526 = vmatprep.subr.mxu0 0.0
  %2527 = vmatpush1.msra.mxu0 0.0
  %2528 = vmatprep.subr.mxu0 0.0
  %2529 = vmatpush1.msra.mxu0 0.0
  %2530 = vmatprep.subr.mxu0 0.0
  %2531 = vmatpush1.msra.mxu0 0.0
  %2532 = vmatprep.subr.mxu0 0.0
  %2533 = vmatpush1.msra.mxu0 0.0
  %2534 = vmatprep.subr.mxu0 0.0
  %2535 = vmatpush1.msra.mxu0 0.0
  %2536 = vmatprep.subr.mxu0 0.0
  %2537 = vmatpush1.msra.mxu0 0.0
  %2538 = vmatprep.subr.mxu0 0.0
  %2539 = vmatpush1.msra.mxu0 0.0
  %2540 = vmatprep.subr.mxu0 0.0
  %2541 = vmatpush1.msra.mxu0 0.0
  %2542 = vmatprep.subr.mxu0 0.0
  %2543 = vmatpush1.msra.mxu0 0.0
  %2544 = vmatprep.subr.mxu0 0.0
  %2545 = vmatpush1.msra.mxu0 0.0
  %2546 = vmatprep.subr.mxu0 0.0
  %2547 = vmatpush1.msra.mxu0 0.0
  %2548 = vmatprep.subr.mxu0 0.0
  %2549 = vmatpush1.msra.mxu0 0.0
  %2550 = vmatprep.subr.mxu0 0.0
  %2551 = vmatpush1.msra.mxu0 0.0
  %2552 = vmatprep.subr.mxu0 0.0
  %2553 = vmatpush1.msra.mxu0 0.0
  %2554 = vmatprep.subr.mxu0 0.0
  %2555 = vmatpush1.msra.mxu0 0.0
  %2556 = vmatprep.subr.mxu0 0.0
  %2557 = vmatpush1.msra.mxu0 0.0
  %2558 = vmatprep.subr.mxu0 0.0
  %2559 = vmatpush1.msra.mxu0 0.0
  %2560 = vmatprep.subr.mxu0 0.0
  %2561 = vmatpush1.msra.mxu0 0.0
  %2562 = vmatprep.mubr.f32.mxu0 0.0
  %2563 = vmatmul.mubr.f32.gmra.mrb[0].mxu0 %v2425
  %v2564 = vpop.f32.mrb[0].mxu0
  %v2565 = vadd.f32 0.0, %v2564
  %v2566 = vpop.f32.mrb[0].mxu0
  %v2567 = vadd.f32 0.0, %v2566
  %2568 = vdwg.mxu0
  %2569 = vmatprep.subr.mxu0 %v2418
  %2570 = vmatpush1.msra.mxu0 %v2417
  %2571 = vmatprep.subr.mxu0 0.0
  %2572 = vmatpush1.msra.mxu0 0.0
  %2573 = vmatprep.subr.mxu0 0.0
  %2574 = vmatpush1.msra.mxu0 0.0
  %2575 = vmatprep.subr.mxu0 0.0
  %2576 = vmatpush1.msra.mxu0 0.0
  %2577 = vmatprep.subr.mxu0 0.0
  %2578 = vmatpush1.msra.mxu0 0.0
  %2579 = vmatprep.subr.mxu0 0.0
  %2580 = vmatpush1.msra.mxu0 0.0
  %2581 = vmatprep.subr.mxu0 0.0
  %2582 = vmatpush1.msra.mxu0 0.0
  %2583 = vmatprep.subr.mxu0 0.0
  %2584 = vmatpush1.msra.mxu0 0.0
  %2585 = vmatprep.subr.mxu0 0.0
  %2586 = vmatpush1.msra.mxu0 0.0
  %2587 = vmatprep.subr.mxu0 0.0
  %2588 = vmatpush1.msra.mxu0 0.0
  %2589 = vmatprep.subr.mxu0 0.0
  %2590 = vmatpush1.msra.mxu0 0.0
  %2591 = vmatprep.subr.mxu0 0.0
  %2592 = vmatpush1.msra.mxu0 0.0
  %2593 = vmatprep.subr.mxu0 0.0
  %2594 = vmatpush1.msra.mxu0 0.0
  %2595 = vmatprep.subr.mxu0 0.0
  %2596 = vmatpush1.msra.mxu0 0.0
  %2597 = vmatprep.subr.mxu0 0.0
  %2598 = vmatpush1.msra.mxu0 0.0
  %2599 = vmatprep.subr.mxu0 0.0
  %2600 = vmatpush1.msra.mxu0 0.0
  %2601 = vmatprep.subr.mxu0 0.0
  %2602 = vmatpush1.msra.mxu0 0.0
  %2603 = vmatprep.subr.mxu0 0.0
  %2604 = vmatpush1.msra.mxu0 0.0
  %2605 = vmatprep.subr.mxu0 0.0
  %2606 = vmatpush1.msra.mxu0 0.0
  %2607 = vmatprep.subr.mxu0 0.0
  %2608 = vmatpush1.msra.mxu0 0.0
  %2609 = vmatprep.subr.mxu0 0.0
  %2610 = vmatpush1.msra.mxu0 0.0
  %2611 = vmatprep.subr.mxu0 0.0
  %2612 = vmatpush1.msra.mxu0 0.0
  %2613 = vmatprep.subr.mxu0 0.0
  %2614 = vmatpush1.msra.mxu0 0.0
  %2615 = vmatprep.subr.mxu0 0.0
  %2616 = vmatpush1.msra.mxu0 0.0
  %2617 = vmatprep.subr.mxu0 0.0
  %2618 = vmatpush1.msra.mxu0 0.0
  %2619 = vmatprep.subr.mxu0 0.0
  %2620 = vmatpush1.msra.mxu0 0.0
  %2621 = vmatprep.subr.mxu0 0.0
  %2622 = vmatpush1.msra.mxu0 0.0
  %2623 = vmatprep.subr.mxu0 0.0
  %2624 = vmatpush1.msra.mxu0 0.0
  %2625 = vmatprep.subr.mxu0 0.0
  %2626 = vmatpush1.msra.mxu0 0.0
  %2627 = vmatprep.subr.mxu0 0.0
  %2628 = vmatpush1.msra.mxu0 0.0
  %2629 = vmatprep.subr.mxu0 0.0
  %2630 = vmatpush1.msra.mxu0 0.0
  %2631 = vmatprep.subr.mxu0 0.0
  %2632 = vmatpush1.msra.mxu0 0.0
  %2633 = vmatprep.mubr.f32.mxu0 0.0
  %2634 = vmatmul.mubr.f32.gmra.mrb[0].mxu0 %v2425
  %v2635 = vpop.f32.mrb[0].mxu0
  %v2636 = vadd.f32 0.0, %v2635
  %v2637 = vpop.f32.mrb[0].mxu0
  %v2638 = vadd.f32 0.0, %v2637
  %2639 = vdwg.mxu0
  %2640 = vrot.lane.b32.xlu0 %v2381, 19
  %v2641 = vpop.permute.xlu0 %2640
  %2642 = vrot.lane.b32.xlu0 %v2382, 19
  %v2643 = vpop.permute.xlu0 %2642
  %2644 = vrot.lane.b32.xlu0 %v2383, 19
  %v2645 = vpop.permute.xlu0 %2644
  %2646 = vrot.lane.b32.xlu0 %v2384, 19
  %v2647 = vpop.permute.xlu0 %2646
  %2648 = vrot.lane.b32.xlu0 %v2385, 19
  %v2649 = vpop.permute.xlu0 %2648
  %2650 = vrot.lane.b32.xlu0 %v2386, 19
  %v2651 = vpop.permute.xlu0 %2650
  %2652 = vrot.lane.b32.xlu0 %v2387, 19
  %v2653 = vpop.permute.xlu0 %2652
  %v2654 = vsel %vm307, %v2641, %v2643
  %v2655 = vsel %vm307, %v2643, %v2645
  %v2656 = vsel %vm307, %v2645, %v2647
  %v2657 = vsel %vm307, %v2647, %v2649
  %v2658 = vsel %vm307, %v2649, %v2651
  %v2659 = vsel %vm307, %v2651, %v2653
  %v2666 = vsel %vm77, %v2388, 0
  %2668 = vmatprep.subr.mxu0 %v2655
  %2669 = vmatpush1.msra.mxu0 %v2654
  %2670 = vmatprep.subr.mxu0 0.0
  %2671 = vmatpush1.msra.mxu0 0.0
  %2672 = vmatprep.subr.mxu0 0.0
  %2673 = vmatpush1.msra.mxu0 0.0
  %2674 = vmatprep.subr.mxu0 0.0
  %2675 = vmatpush1.msra.mxu0 0.0
  %2676 = vmatprep.subr.mxu0 0.0
  %2677 = vmatpush1.msra.mxu0 0.0
  %2678 = vmatprep.subr.mxu0 0.0
  %2679 = vmatpush1.msra.mxu0 0.0
  %2680 = vmatprep.subr.mxu0 0.0
  %2681 = vmatpush1.msra.mxu0 0.0
  %2682 = vmatprep.subr.mxu0 0.0
  %2683 = vmatpush1.msra.mxu0 0.0
  %2684 = vmatprep.subr.mxu0 0.0
  %2685 = vmatpush1.msra.mxu0 0.0
  %2686 = vmatprep.subr.mxu0 0.0
  %2687 = vmatpush1.msra.mxu0 0.0
  %2688 = vmatprep.subr.mxu0 0.0
  %2689 = vmatpush1.msra.mxu0 0.0
  %2690 = vmatprep.subr.mxu0 0.0
  %2691 = vmatpush1.msra.mxu0 0.0
  %2692 = vmatprep.subr.mxu0 0.0
  %2693 = vmatpush1.msra.mxu0 0.0
  %2694 = vmatprep.subr.mxu0 0.0
  %2695 = vmatpush1.msra.mxu0 0.0
  %2696 = vmatprep.subr.mxu0 0.0
  %2697 = vmatpush1.msra.mxu0 0.0
  %2698 = vmatprep.subr.mxu0 0.0
  %2699 = vmatpush1.msra.mxu0 0.0
  %2700 = vmatprep.subr.mxu0 0.0
  %2701 = vmatpush1.msra.mxu0 0.0
  %2702 = vmatprep.subr.mxu0 0.0
  %2703 = vmatpush1.msra.mxu0 0.0
  %2704 = vmatprep.subr.mxu0 0.0
  %2705 = vmatpush1.msra.mxu0 0.0
  %2706 = vmatprep.subr.mxu0 0.0
  %2707 = vmatpush1.msra.mxu0 0.0
  %2708 = vmatprep.subr.mxu0 0.0
  %2709 = vmatpush1.msra.mxu0 0.0
  %2710 = vmatprep.subr.mxu0 0.0
  %2711 = vmatpush1.msra.mxu0 0.0
  %2712 = vmatprep.subr.mxu0 0.0
  %2713 = vmatpush1.msra.mxu0 0.0
  %2714 = vmatprep.subr.mxu0 0.0
  %2715 = vmatpush1.msra.mxu0 0.0
  %2716 = vmatprep.subr.mxu0 0.0
  %2717 = vmatpush1.msra.mxu0 0.0
  %2718 = vmatprep.subr.mxu0 0.0
  %2719 = vmatpush1.msra.mxu0 0.0
  %2720 = vmatprep.subr.mxu0 0.0
  %2721 = vmatpush1.msra.mxu0 0.0
  %2722 = vmatprep.subr.mxu0 0.0
  %2723 = vmatpush1.msra.mxu0 0.0
  %2724 = vmatprep.subr.mxu0 0.0
  %2725 = vmatpush1.msra.mxu0 0.0
  %2726 = vmatprep.subr.mxu0 0.0
  %2727 = vmatpush1.msra.mxu0 0.0
  %2728 = vmatprep.subr.mxu0 0.0
  %2729 = vmatpush1.msra.mxu0 0.0
  %2730 = vmatprep.subr.mxu0 0.0
  %2731 = vmatpush1.msra.mxu0 0.0
  %2732 = vmatprep.mubr.f32.mxu0 0.0
  %2733 = vmatmul.mubr.f32.gmra.mrb[0].mxu0 %v2666
  %v2734 = vpop.f32.mrb[0].mxu0
  %v2735 = vadd.f32 %v2494, %v2734
  %v2736 = vpop.f32.mrb[0].mxu0
  %v2737 = vadd.f32 %v2496, %v2736
  %2738 = vdwg.mxu0
  %2739 = vmatprep.subr.mxu0 %v2657
  %2740 = vmatpush1.msra.mxu0 %v2656
  %2741 = vmatprep.subr.mxu0 0.0
  %2742 = vmatpush1.msra.mxu0 0.0
  %2743 = vmatprep.subr.mxu0 0.0
  %2744 = vmatpush1.msra.mxu0 0.0
  %2745 = vmatprep.subr.mxu0 0.0
  %2746 = vmatpush1.msra.mxu0 0.0
  %2747 = vmatprep.subr.mxu0 0.0
  %2748 = vmatpush1.msra.mxu0 0.0
  %2749 = vmatprep.subr.mxu0 0.0
  %2750 = vmatpush1.msra.mxu0 0.0
  %2751 = vmatprep.subr.mxu0 0.0
  %2752 = vmatpush1.msra.mxu0 0.0
  %2753 = vmatprep.subr.mxu0 0.0
  %2754 = vmatpush1.msra.mxu0 0.0
  %2755 = vmatprep.subr.mxu0 0.0
  %2756 = vmatpush1.msra.mxu0 0.0
  %2757 = vmatprep.subr.mxu0 0.0
  %2758 = vmatpush1.msra.mxu0 0.0
  %2759 = vmatprep.subr.mxu0 0.0
  %2760 = vmatpush1.msra.mxu0 0.0
  %2761 = vmatprep.subr.mxu0 0.0
  %2762 = vmatpush1.msra.mxu0 0.0
  %2763 = vmatprep.subr.mxu0 0.0
  %2764 = vmatpush1.msra.mxu0 0.0
  %2765 = vmatprep.subr.mxu0 0.0
  %2766 = vmatpush1.msra.mxu0 0.0
  %2767 = vmatprep.subr.mxu0 0.0
  %2768 = vmatpush1.msra.mxu0 0.0
  %2769 = vmatprep.subr.mxu0 0.0
  %2770 = vmatpush1.msra.mxu0 0.0
  %2771 = vmatprep.subr.mxu0 0.0
  %2772 = vmatpush1.msra.mxu0 0.0
  %2773 = vmatprep.subr.mxu0 0.0
  %2774 = vmatpush1.msra.mxu0 0.0
  %2775 = vmatprep.subr.mxu0 0.0
  %2776 = vmatpush1.msra.mxu0 0.0
  %2777 = vmatprep.subr.mxu0 0.0
  %2778 = vmatpush1.msra.mxu0 0.0
  %2779 = vmatprep.subr.mxu0 0.0
  %2780 = vmatpush1.msra.mxu0 0.0
  %2781 = vmatprep.subr.mxu0 0.0
  %2782 = vmatpush1.msra.mxu0 0.0
  %2783 = vmatprep.subr.mxu0 0.0
  %2784 = vmatpush1.msra.mxu0 0.0
  %2785 = vmatprep.subr.mxu0 0.0
  %2786 = vmatpush1.msra.mxu0 0.0
  %2787 = vmatprep.subr.mxu0 0.0
  %2788 = vmatpush1.msra.mxu0 0.0
  %2789 = vmatprep.subr.mxu0 0.0
  %2790 = vmatpush1.msra.mxu0 0.0
  %2791 = vmatprep.subr.mxu0 0.0
  %2792 = vmatpush1.msra.mxu0 0.0
  %2793 = vmatprep.subr.mxu0 0.0
  %2794 = vmatpush1.msra.mxu0 0.0
  %2795 = vmatprep.subr.mxu0 0.0
  %2796 = vmatpush1.msra.mxu0 0.0
  %2797 = vmatprep.subr.mxu0 0.0
  %2798 = vmatpush1.msra.mxu0 0.0
  %2799 = vmatprep.subr.mxu0 0.0
  %2800 = vmatpush1.msra.mxu0 0.0
  %2801 = vmatprep.subr.mxu0 0.0
  %2802 = vmatpush1.msra.mxu0 0.0
  %2803 = vmatprep.mubr.f32.mxu0 0.0
  %2804 = vmatmul.mubr.f32.gmra.mrb[0].mxu0 %v2666
  %v2805 = vpop.f32.mrb[0].mxu0
  %v2806 = vadd.f32 %v2565, %v2805
  %v2807 = vpop.f32.mrb[0].mxu0
  %v2808 = vadd.f32 %v2567, %v2807
  %2809 = vdwg.mxu0
  %2810 = vmatprep.subr.mxu0 %v2659
  %2811 = vmatpush1.msra.mxu0 %v2658
  %2812 = vmatprep.subr.mxu0 0.0
  %2813 = vmatpush1.msra.mxu0 0.0
  %2814 = vmatprep.subr.mxu0 0.0
  %2815 = vmatpush1.msra.mxu0 0.0
  %2816 = vmatprep.subr.mxu0 0.0
  %2817 = vmatpush1.msra.mxu0 0.0
  %2818 = vmatprep.subr.mxu0 0.0
  %2819 = vmatpush1.msra.mxu0 0.0
  %2820 = vmatprep.subr.mxu0 0.0
  %2821 = vmatpush1.msra.mxu0 0.0
  %2822 = vmatprep.subr.mxu0 0.0
  %2823 = vmatpush1.msra.mxu0 0.0
  %2824 = vmatprep.subr.mxu0 0.0
  %2825 = vmatpush1.msra.mxu0 0.0
  %2826 = vmatprep.subr.mxu0 0.0
  %2827 = vmatpush1.msra.mxu0 0.0
  %2828 = vmatprep.subr.mxu0 0.0
  %2829 = vmatpush1.msra.mxu0 0.0
  %2830 = vmatprep.subr.mxu0 0.0
  %2831 = vmatpush1.msra.mxu0 0.0
  %2832 = vmatprep.subr.mxu0 0.0
  %2833 = vmatpush1.msra.mxu0 0.0
  %2834 = vmatprep.subr.mxu0 0.0
  %2835 = vmatpush1.msra.mxu0 0.0
  %2836 = vmatprep.subr.mxu0 0.0
  %2837 = vmatpush1.msra.mxu0 0.0
  %2838 = vmatprep.subr.mxu0 0.0
  %2839 = vmatpush1.msra.mxu0 0.0
  %2840 = vmatprep.subr.mxu0 0.0
  %2841 = vmatpush1.msra.mxu0 0.0
  %2842 = vmatprep.subr.mxu0 0.0
  %2843 = vmatpush1.msra.mxu0 0.0
  %2844 = vmatprep.subr.mxu0 0.0
  %2845 = vmatpush1.msra.mxu0 0.0
  %2846 = vmatprep.subr.mxu0 0.0
  %2847 = vmatpush1.msra.mxu0 0.0
  %2848 = vmatprep.subr.mxu0 0.0
  %2849 = vmatpush1.msra.mxu0 0.0
  %2850 = vmatprep.subr.mxu0 0.0
  %2851 = vmatpush1.msra.mxu0 0.0
  %2852 = vmatprep.subr.mxu0 0.0
  %2853 = vmatpush1.msra.mxu0 0.0
  %2854 = vmatprep.subr.mxu0 0.0
  %2855 = vmatpush1.msra.mxu0 0.0
  %2856 = vmatprep.subr.mxu0 0.0
  %2857 = vmatpush1.msra.mxu0 0.0
  %2858 = vmatprep.subr.mxu0 0.0
  %2859 = vmatpush1.msra.mxu0 0.0
  %2860 = vmatprep.subr.mxu0 0.0
  %2861 = vmatpush1.msra.mxu0 0.0
  %2862 = vmatprep.subr.mxu0 0.0
  %2863 = vmatpush1.msra.mxu0 0.0
  %2864 = vmatprep.subr.mxu0 0.0
  %2865 = vmatpush1.msra.mxu0 0.0
  %2866 = vmatprep.subr.mxu0 0.0
  %2867 = vmatpush1.msra.mxu0 0.0
  %2868 = vmatprep.subr.mxu0 0.0
  %2869 = vmatpush1.msra.mxu0 0.0
  %2870 = vmatprep.subr.mxu0 0.0
  %2871 = vmatpush1.msra.mxu0 0.0
  %2872 = vmatprep.subr.mxu0 0.0
  %2873 = vmatpush1.msra.mxu0 0.0
  %2874 = vmatprep.mubr.f32.mxu0 0.0
  %2875 = vmatmul.mubr.f32.gmra.mrb[0].mxu0 %v2666
  %v2876 = vpop.f32.mrb[0].mxu0
  %v2877 = vadd.f32 %v2636, %v2876
  %v2878 = vpop.f32.mrb[0].mxu0
  %v2879 = vadd.f32 %v2638, %v2878
  %2880 = vdwg.mxu0
  %2881 = vrot.lane.b32.xlu0 %v2388, 112
  %v2882 = vpop.permute.xlu0 %2881
  %2883 = vrot.lane.b32.xlu0 %v2381, 17
  %v2884 = vpop.permute.xlu0 %2883
  %2885 = vrot.lane.b32.xlu0 %v2382, 17
  %v2886 = vpop.permute.xlu0 %2885
  %2887 = vrot.lane.b32.xlu0 %v2383, 17
  %v2888 = vpop.permute.xlu0 %2887
  %2889 = vrot.lane.b32.xlu0 %v2384, 17
  %v2890 = vpop.permute.xlu0 %2889
  %2891 = vrot.lane.b32.xlu0 %v2385, 17
  %v2892 = vpop.permute.xlu0 %2891
  %2893 = vrot.lane.b32.xlu0 %v2386, 17
  %v2894 = vpop.permute.xlu0 %2893
  %2895 = vrot.lane.b32.xlu0 %v2387, 17
  %v2896 = vpop.permute.xlu0 %2895
  %v2897 = vsel %vm551, %v2884, %v2886
  %v2898 = vsel %vm551, %v2886, %v2888
  %v2899 = vsel %vm551, %v2888, %v2890
  %v2900 = vsel %vm551, %v2890, %v2892
  %v2901 = vsel %vm551, %v2892, %v2894
  %v2902 = vsel %vm551, %v2894, %v2896
  %v2909 = vsel %vm77, %v2882, 0
  %2911 = vmatprep.subr.mxu0 %v2898
  %2912 = vmatpush1.msra.mxu0 %v2897
  %2913 = vmatprep.subr.mxu0 0.0
  %2914 = vmatpush1.msra.mxu0 0.0
  %2915 = vmatprep.subr.mxu0 0.0
  %2916 = vmatpush1.msra.mxu0 0.0
  %2917 = vmatprep.subr.mxu0 0.0
  %2918 = vmatpush1.msra.mxu0 0.0
  %2919 = vmatprep.subr.mxu0 0.0
  %2920 = vmatpush1.msra.mxu0 0.0
  %2921 = vmatprep.subr.mxu0 0.0
  %2922 = vmatpush1.msra.mxu0 0.0
  %2923 = vmatprep.subr.mxu0 0.0
  %2924 = vmatpush1.msra.mxu0 0.0
  %2925 = vmatprep.subr.mxu0 0.0
  %2926 = vmatpush1.msra.mxu0 0.0
  %2927 = vmatprep.subr.mxu0 0.0
  %2928 = vmatpush1.msra.mxu0 0.0
  %2929 = vmatprep.subr.mxu0 0.0
  %2930 = vmatpush1.msra.mxu0 0.0
  %2931 = vmatprep.subr.mxu0 0.0
  %2932 = vmatpush1.msra.mxu0 0.0
  %2933 = vmatprep.subr.mxu0 0.0
  %2934 = vmatpush1.msra.mxu0 0.0
  %2935 = vmatprep.subr.mxu0 0.0
  %2936 = vmatpush1.msra.mxu0 0.0
  %2937 = vmatprep.subr.mxu0 0.0
  %2938 = vmatpush1.msra.mxu0 0.0
  %2939 = vmatprep.subr.mxu0 0.0
  %2940 = vmatpush1.msra.mxu0 0.0
  %2941 = vmatprep.subr.mxu0 0.0
  %2942 = vmatpush1.msra.mxu0 0.0
  %2943 = vmatprep.subr.mxu0 0.0
  %2944 = vmatpush1.msra.mxu0 0.0
  %2945 = vmatprep.subr.mxu0 0.0
  %2946 = vmatpush1.msra.mxu0 0.0
  %2947 = vmatprep.subr.mxu0 0.0
  %2948 = vmatpush1.msra.mxu0 0.0
  %2949 = vmatprep.subr.mxu0 0.0
  %2950 = vmatpush1.msra.mxu0 0.0
  %2951 = vmatprep.subr.mxu0 0.0
  %2952 = vmatpush1.msra.mxu0 0.0
  %2953 = vmatprep.subr.mxu0 0.0
  %2954 = vmatpush1.msra.mxu0 0.0
  %2955 = vmatprep.subr.mxu0 0.0
  %2956 = vmatpush1.msra.mxu0 0.0
  %2957 = vmatprep.subr.mxu0 0.0
  %2958 = vmatpush1.msra.mxu0 0.0
  %2959 = vmatprep.subr.mxu0 0.0
  %2960 = vmatpush1.msra.mxu0 0.0
  %2961 = vmatprep.subr.mxu0 0.0
  %2962 = vmatpush1.msra.mxu0 0.0
  %2963 = vmatprep.subr.mxu0 0.0
  %2964 = vmatpush1.msra.mxu0 0.0
  %2965 = vmatprep.subr.mxu0 0.0
  %2966 = vmatpush1.msra.mxu0 0.0
  %2967 = vmatprep.subr.mxu0 0.0
  %2968 = vmatpush1.msra.mxu0 0.0
  %2969 = vmatprep.subr.mxu0 0.0
  %2970 = vmatpush1.msra.mxu0 0.0
  %2971 = vmatprep.subr.mxu0 0.0
  %2972 = vmatpush1.msra.mxu0 0.0
  %2973 = vmatprep.subr.mxu0 0.0
  %2974 = vmatpush1.msra.mxu0 0.0
  %2975 = vmatprep.mubr.f32.mxu0 0.0
  %2976 = vmatmul.mubr.f32.gmra.mrb[0].mxu0 %v2909
  %v2977 = vpop.f32.mrb[0].mxu0
  %v2978 = vadd.f32 0.0, %v2977
  %v2979 = vpop.f32.mrb[0].mxu0
  %v2980 = vadd.f32 0.0, %v2979
  %2981 = vdwg.mxu0
  %2982 = vmatprep.subr.mxu0 %v2900
  %2983 = vmatpush1.msra.mxu0 %v2899
  %2984 = vmatprep.subr.mxu0 0.0
  %2985 = vmatpush1.msra.mxu0 0.0
  %2986 = vmatprep.subr.mxu0 0.0
  %2987 = vmatpush1.msra.mxu0 0.0
  %2988 = vmatprep.subr.mxu0 0.0
  %2989 = vmatpush1.msra.mxu0 0.0
  %2990 = vmatprep.subr.mxu0 0.0
  %2991 = vmatpush1.msra.mxu0 0.0
  %2992 = vmatprep.subr.mxu0 0.0
  %2993 = vmatpush1.msra.mxu0 0.0
  %2994 = vmatprep.subr.mxu0 0.0
  %2995 = vmatpush1.msra.mxu0 0.0
  %2996 = vmatprep.subr.mxu0 0.0
  %2997 = vmatpush1.msra.mxu0 0.0
  %2998 = vmatprep.subr.mxu0 0.0
  %2999 = vmatpush1.msra.mxu0 0.0
  %3000 = vmatprep.subr.mxu0 0.0
  %3001 = vmatpush1.msra.mxu0 0.0
  %3002 = vmatprep.subr.mxu0 0.0
  %3003 = vmatpush1.msra.mxu0 0.0
  %3004 = vmatprep.subr.mxu0 0.0
  %3005 = vmatpush1.msra.mxu0 0.0
  %3006 = vmatprep.subr.mxu0 0.0
  %3007 = vmatpush1.msra.mxu0 0.0
  %3008 = vmatprep.subr.mxu0 0.0
  %3009 = vmatpush1.msra.mxu0 0.0
  %3010 = vmatprep.subr.mxu0 0.0
  %3011 = vmatpush1.msra.mxu0 0.0
  %3012 = vmatprep.subr.mxu0 0.0
  %3013 = vmatpush1.msra.mxu0 0.0
  %3014 = vmatprep.subr.mxu0 0.0
  %3015 = vmatpush1.msra.mxu0 0.0
  %3016 = vmatprep.subr.mxu0 0.0
  %3017 = vmatpush1.msra.mxu0 0.0
  %3018 = vmatprep.subr.mxu0 0.0
  %3019 = vmatpush1.msra.mxu0 0.0
  %3020 = vmatprep.subr.mxu0 0.0
  %3021 = vmatpush1.msra.mxu0 0.0
  %3022 = vmatprep.subr.mxu0 0.0
  %3023 = vmatpush1.msra.mxu0 0.0
  %3024 = vmatprep.subr.mxu0 0.0
  %3025 = vmatpush1.msra.mxu0 0.0
  %3026 = vmatprep.subr.mxu0 0.0
  %3027 = vmatpush1.msra.mxu0 0.0
  %3028 = vmatprep.subr.mxu0 0.0
  %3029 = vmatpush1.msra.mxu0 0.0
  %3030 = vmatprep.subr.mxu0 0.0
  %3031 = vmatpush1.msra.mxu0 0.0
  %3032 = vmatprep.subr.mxu0 0.0
  %3033 = vmatpush1.msra.mxu0 0.0
  %3034 = vmatprep.subr.mxu0 0.0
  %3035 = vmatpush1.msra.mxu0 0.0
  %3036 = vmatprep.subr.mxu0 0.0
  %3037 = vmatpush1.msra.mxu0 0.0
  %3038 = vmatprep.subr.mxu0 0.0
  %3039 = vmatpush1.msra.mxu0 0.0
  %3040 = vmatprep.subr.mxu0 0.0
  %3041 = vmatpush1.msra.mxu0 0.0
  %3042 = vmatprep.subr.mxu0 0.0
  %3043 = vmatpush1.msra.mxu0 0.0
  %3044 = vmatprep.subr.mxu0 0.0
  %3045 = vmatpush1.msra.mxu0 0.0
  %3046 = vmatprep.mubr.f32.mxu0 0.0
  %3047 = vmatmul.mubr.f32.gmra.mrb[0].mxu0 %v2909
  %v3048 = vpop.f32.mrb[0].mxu0
  %v3049 = vadd.f32 0.0, %v3048
  %v3050 = vpop.f32.mrb[0].mxu0
  %v3051 = vadd.f32 0.0, %v3050
  %3052 = vdwg.mxu0
  %3053 = vmatprep.subr.mxu0 %v2902
  %3054 = vmatpush1.msra.mxu0 %v2901
  %3055 = vmatprep.subr.mxu0 0.0
  %3056 = vmatpush1.msra.mxu0 0.0
  %3057 = vmatprep.subr.mxu0 0.0
  %3058 = vmatpush1.msra.mxu0 0.0
  %3059 = vmatprep.subr.mxu0 0.0
  %3060 = vmatpush1.msra.mxu0 0.0
  %3061 = vmatprep.subr.mxu0 0.0
  %3062 = vmatpush1.msra.mxu0 0.0
  %3063 = vmatprep.subr.mxu0 0.0
  %3064 = vmatpush1.msra.mxu0 0.0
  %3065 = vmatprep.subr.mxu0 0.0
  %3066 = vmatpush1.msra.mxu0 0.0
  %3067 = vmatprep.subr.mxu0 0.0
  %3068 = vmatpush1.msra.mxu0 0.0
  %3069 = vmatprep.subr.mxu0 0.0
  %3070 = vmatpush1.msra.mxu0 0.0
  %3071 = vmatprep.subr.mxu0 0.0
  %3072 = vmatpush1.msra.mxu0 0.0
  %3073 = vmatprep.subr.mxu0 0.0
  %3074 = vmatpush1.msra.mxu0 0.0
  %3075 = vmatprep.subr.mxu0 0.0
  %3076 = vmatpush1.msra.mxu0 0.0
  %3077 = vmatprep.subr.mxu0 0.0
  %3078 = vmatpush1.msra.mxu0 0.0
  %3079 = vmatprep.subr.mxu0 0.0
  %3080 = vmatpush1.msra.mxu0 0.0
  %3081 = vmatprep.subr.mxu0 0.0
  %3082 = vmatpush1.msra.mxu0 0.0
  %3083 = vmatprep.subr.mxu0 0.0
  %3084 = vmatpush1.msra.mxu0 0.0
  %3085 = vmatprep.subr.mxu0 0.0
  %3086 = vmatpush1.msra.mxu0 0.0
  %3087 = vmatprep.subr.mxu0 0.0
  %3088 = vmatpush1.msra.mxu0 0.0
  %3089 = vmatprep.subr.mxu0 0.0
  %3090 = vmatpush1.msra.mxu0 0.0
  %3091 = vmatprep.subr.mxu0 0.0
  %3092 = vmatpush1.msra.mxu0 0.0
  %3093 = vmatprep.subr.mxu0 0.0
  %3094 = vmatpush1.msra.mxu0 0.0
  %3095 = vmatprep.subr.mxu0 0.0
  %3096 = vmatpush1.msra.mxu0 0.0
  %3097 = vmatprep.subr.mxu0 0.0
  %3098 = vmatpush1.msra.mxu0 0.0
  %3099 = vmatprep.subr.mxu0 0.0
  %3100 = vmatpush1.msra.mxu0 0.0
  %3101 = vmatprep.subr.mxu0 0.0
  %3102 = vmatpush1.msra.mxu0 0.0
  %3103 = vmatprep.subr.mxu0 0.0
  %3104 = vmatpush1.msra.mxu0 0.0
  %3105 = vmatprep.subr.mxu0 0.0
  %3106 = vmatpush1.msra.mxu0 0.0
  %3107 = vmatprep.subr.mxu0 0.0
  %3108 = vmatpush1.msra.mxu0 0.0
  %3109 = vmatprep.subr.mxu0 0.0
  %3110 = vmatpush1.msra.mxu0 0.0
  %3111 = vmatprep.subr.mxu0 0.0
  %3112 = vmatpush1.msra.mxu0 0.0
  %3113 = vmatprep.subr.mxu0 0.0
  %3114 = vmatpush1.msra.mxu0 0.0
  %3115 = vmatprep.subr.mxu0 0.0
  %3116 = vmatpush1.msra.mxu0 0.0
  %3117 = vmatprep.mubr.f32.mxu0 0.0
  %3118 = vmatmul.mubr.f32.gmra.mrb[0].mxu0 %v2909
  %v3119 = vpop.f32.mrb[0].mxu0
  %v3120 = vadd.f32 0.0, %v3119
  %v3121 = vpop.f32.mrb[0].mxu0
  %v3122 = vadd.f32 0.0, %v3121
  %3123 = vdwg.mxu0
  %v3124 = vadd.f32 %v2735, %v2978
  %v3125 = vadd.f32 %v2737, %v2980
  %v3126 = vadd.f32 %v2806, %v3049
  %v3127 = vadd.f32 %v2808, %v3051
  %v3128 = vadd.f32 %v2877, %v3120
  %v3129 = vadd.f32 %v2879, %v3122
  %3130 = vrot.lane.b32.xlu0 %v2388, 104
  %v3131 = vpop.permute.xlu0 %3130
  %3132 = vrot.lane.b32.xlu0 %v2381, 1
  %v3133 = vpop.permute.xlu0 %3132
  %3134 = vrot.lane.b32.xlu0 %v2382, 1
  %v3135 = vpop.permute.xlu0 %3134
  %3136 = vrot.lane.b32.xlu0 %v2383, 1
  %v3137 = vpop.permute.xlu0 %3136
  %3138 = vrot.lane.b32.xlu0 %v2384, 1
  %v3139 = vpop.permute.xlu0 %3138
  %3140 = vrot.lane.b32.xlu0 %v2385, 1
  %v3141 = vpop.permute.xlu0 %3140
  %3142 = vrot.lane.b32.xlu0 %v2386, 1
  %v3143 = vpop.permute.xlu0 %3142
  %3144 = vrot.lane.b32.xlu0 %v2387, 1
  %v3145 = vpop.permute.xlu0 %3144
  %v3146 = vsel %vm801, %v3133, %v3135
  %v3147 = vsel %vm801, %v3135, %v3137
  %v3148 = vsel %vm801, %v3137, %v3139
  %v3149 = vsel %vm801, %v3139, %v3141
  %v3150 = vsel %vm801, %v3141, %v3143
  %v3151 = vsel %vm801, %v3143, %v3145
  %v3158 = vsel %vm77, %v3131, 0
  %3160 = vmatprep.subr.mxu0 %v3147
  %3161 = vmatpush1.msra.mxu0 %v3146
  %3162 = vmatprep.subr.mxu0 0.0
  %3163 = vmatpush1.msra.mxu0 0.0
  %3164 = vmatprep.subr.mxu0 0.0
  %3165 = vmatpush1.msra.mxu0 0.0
  %3166 = vmatprep.subr.mxu0 0.0
  %3167 = vmatpush1.msra.mxu0 0.0
  %3168 = vmatprep.subr.mxu0 0.0
  %3169 = vmatpush1.msra.mxu0 0.0
  %3170 = vmatprep.subr.mxu0 0.0
  %3171 = vmatpush1.msra.mxu0 0.0
  %3172 = vmatprep.subr.mxu0 0.0
  %3173 = vmatpush1.msra.mxu0 0.0
  %3174 = vmatprep.subr.mxu0 0.0
  %3175 = vmatpush1.msra.mxu0 0.0
  %3176 = vmatprep.subr.mxu0 0.0
  %3177 = vmatpush1.msra.mxu0 0.0
  %3178 = vmatprep.subr.mxu0 0.0
  %3179 = vmatpush1.msra.mxu0 0.0
  %3180 = vmatprep.subr.mxu0 0.0
  %3181 = vmatpush1.msra.mxu0 0.0
  %3182 = vmatprep.subr.mxu0 0.0
  %3183 = vmatpush1.msra.mxu0 0.0
  %3184 = vmatprep.subr.mxu0 0.0
  %3185 = vmatpush1.msra.mxu0 0.0
  %3186 = vmatprep.subr.mxu0 0.0
  %3187 = vmatpush1.msra.mxu0 0.0
  %3188 = vmatprep.subr.mxu0 0.0
  %3189 = vmatpush1.msra.mxu0 0.0
  %3190 = vmatprep.subr.mxu0 0.0
  %3191 = vmatpush1.msra.mxu0 0.0
  %3192 = vmatprep.subr.mxu0 0.0
  %3193 = vmatpush1.msra.mxu0 0.0
  %3194 = vmatprep.subr.mxu0 0.0
  %3195 = vmatpush1.msra.mxu0 0.0
  %3196 = vmatprep.subr.mxu0 0.0
  %3197 = vmatpush1.msra.mxu0 0.0
  %3198 = vmatprep.subr.mxu0 0.0
  %3199 = vmatpush1.msra.mxu0 0.0
  %3200 = vmatprep.subr.mxu0 0.0
  %3201 = vmatpush1.msra.mxu0 0.0
  %3202 = vmatprep.subr.mxu0 0.0
  %3203 = vmatpush1.msra.mxu0 0.0
  %3204 = vmatprep.subr.mxu0 0.0
  %3205 = vmatpush1.msra.mxu0 0.0
  %3206 = vmatprep.subr.mxu0 0.0
  %3207 = vmatpush1.msra.mxu0 0.0
  %3208 = vmatprep.subr.mxu0 0.0
  %3209 = vmatpush1.msra.mxu0 0.0
  %3210 = vmatprep.subr.mxu0 0.0
  %3211 = vmatpush1.msra.mxu0 0.0
  %3212 = vmatprep.subr.mxu0 0.0
  %3213 = vmatpush1.msra.mxu0 0.0
  %3214 = vmatprep.subr.mxu0 0.0
  %3215 = vmatpush1.msra.mxu0 0.0
  %3216 = vmatprep.subr.mxu0 0.0
  %3217 = vmatpush1.msra.mxu0 0.0
  %3218 = vmatprep.subr.mxu0 0.0
  %3219 = vmatpush1.msra.mxu0 0.0
  %3220 = vmatprep.subr.mxu0 0.0
  %3221 = vmatpush1.msra.mxu0 0.0
  %3222 = vmatprep.subr.mxu0 0.0
  %3223 = vmatpush1.msra.mxu0 0.0
  %3224 = vmatprep.mubr.f32.mxu0 0.0
  %3225 = vmatmul.mubr.f32.gmra.mrb[0].mxu0 %v3158
  %v3226 = vpop.f32.mrb[0].mxu0
  %v3227 = vadd.f32 0.0, %v3226
  %v3228 = vpop.f32.mrb[0].mxu0
  %v3229 = vadd.f32 0.0, %v3228
  %3230 = vdwg.mxu0
  %3231 = vmatprep.subr.mxu0 %v3149
  %3232 = vmatpush1.msra.mxu0 %v3148
  %3233 = vmatprep.subr.mxu0 0.0
  %3234 = vmatpush1.msra.mxu0 0.0
  %3235 = vmatprep.subr.mxu0 0.0
  %3236 = vmatpush1.msra.mxu0 0.0
  %3237 = vmatprep.subr.mxu0 0.0
  %3238 = vmatpush1.msra.mxu0 0.0
  %3239 = vmatprep.subr.mxu0 0.0
  %3240 = vmatpush1.msra.mxu0 0.0
  %3241 = vmatprep.subr.mxu0 0.0
  %3242 = vmatpush1.msra.mxu0 0.0
  %3243 = vmatprep.subr.mxu0 0.0
  %3244 = vmatpush1.msra.mxu0 0.0
  %3245 = vmatprep.subr.mxu0 0.0
  %3246 = vmatpush1.msra.mxu0 0.0
  %3247 = vmatprep.subr.mxu0 0.0
  %3248 = vmatpush1.msra.mxu0 0.0
  %3249 = vmatprep.subr.mxu0 0.0
  %3250 = vmatpush1.msra.mxu0 0.0
  %3251 = vmatprep.subr.mxu0 0.0
  %3252 = vmatpush1.msra.mxu0 0.0
  %3253 = vmatprep.subr.mxu0 0.0
  %3254 = vmatpush1.msra.mxu0 0.0
  %3255 = vmatprep.subr.mxu0 0.0
  %3256 = vmatpush1.msra.mxu0 0.0
  %3257 = vmatprep.subr.mxu0 0.0
  %3258 = vmatpush1.msra.mxu0 0.0
  %3259 = vmatprep.subr.mxu0 0.0
  %3260 = vmatpush1.msra.mxu0 0.0
  %3261 = vmatprep.subr.mxu0 0.0
  %3262 = vmatpush1.msra.mxu0 0.0
  %3263 = vmatprep.subr.mxu0 0.0
  %3264 = vmatpush1.msra.mxu0 0.0
  %3265 = vmatprep.subr.mxu0 0.0
  %3266 = vmatpush1.msra.mxu0 0.0
  %3267 = vmatprep.subr.mxu0 0.0
  %3268 = vmatpush1.msra.mxu0 0.0
  %3269 = vmatprep.subr.mxu0 0.0
  %3270 = vmatpush1.msra.mxu0 0.0
  %3271 = vmatprep.subr.mxu0 0.0
  %3272 = vmatpush1.msra.mxu0 0.0
  %3273 = vmatprep.subr.mxu0 0.0
  %3274 = vmatpush1.msra.mxu0 0.0
  %3275 = vmatprep.subr.mxu0 0.0
  %3276 = vmatpush1.msra.mxu0 0.0
  %3277 = vmatprep.subr.mxu0 0.0
  %3278 = vmatpush1.msra.mxu0 0.0
  %3279 = vmatprep.subr.mxu0 0.0
  %3280 = vmatpush1.msra.mxu0 0.0
  %3281 = vmatprep.subr.mxu0 0.0
  %3282 = vmatpush1.msra.mxu0 0.0
  %3283 = vmatprep.subr.mxu0 0.0
  %3284 = vmatpush1.msra.mxu0 0.0
  %3285 = vmatprep.subr.mxu0 0.0
  %3286 = vmatpush1.msra.mxu0 0.0
  %3287 = vmatprep.subr.mxu0 0.0
  %3288 = vmatpush1.msra.mxu0 0.0
  %3289 = vmatprep.subr.mxu0 0.0
  %3290 = vmatpush1.msra.mxu0 0.0
  %3291 = vmatprep.subr.mxu0 0.0
  %3292 = vmatpush1.msra.mxu0 0.0
  %3293 = vmatprep.subr.mxu0 0.0
  %3294 = vmatpush1.msra.mxu0 0.0
  %3295 = vmatprep.mubr.f32.mxu0 0.0
  %3296 = vmatmul.mubr.f32.gmra.mrb[0].mxu0 %v3158
  %v3297 = vpop.f32.mrb[0].mxu0
  %v3298 = vadd.f32 0.0, %v3297
  %v3299 = vpop.f32.mrb[0].mxu0
  %v3300 = vadd.f32 0.0, %v3299
  %3301 = vdwg.mxu0
  %3302 = vmatprep.subr.mxu0 %v3151
  %3303 = vmatpush1.msra.mxu0 %v3150
  %3304 = vmatprep.subr.mxu0 0.0
  %3305 = vmatpush1.msra.mxu0 0.0
  %3306 = vmatprep.subr.mxu0 0.0
  %3307 = vmatpush1.msra.mxu0 0.0
  %3308 = vmatprep.subr.mxu0 0.0
  %3309 = vmatpush1.msra.mxu0 0.0
  %3310 = vmatprep.subr.mxu0 0.0
  %3311 = vmatpush1.msra.mxu0 0.0
  %3312 = vmatprep.subr.mxu0 0.0
  %3313 = vmatpush1.msra.mxu0 0.0
  %3314 = vmatprep.subr.mxu0 0.0
  %3315 = vmatpush1.msra.mxu0 0.0
  %3316 = vmatprep.subr.mxu0 0.0
  %3317 = vmatpush1.msra.mxu0 0.0
  %3318 = vmatprep.subr.mxu0 0.0
  %3319 = vmatpush1.msra.mxu0 0.0
  %3320 = vmatprep.subr.mxu0 0.0
  %3321 = vmatpush1.msra.mxu0 0.0
  %3322 = vmatprep.subr.mxu0 0.0
  %3323 = vmatpush1.msra.mxu0 0.0
  %3324 = vmatprep.subr.mxu0 0.0
  %3325 = vmatpush1.msra.mxu0 0.0
  %3326 = vmatprep.subr.mxu0 0.0
  %3327 = vmatpush1.msra.mxu0 0.0
  %3328 = vmatprep.subr.mxu0 0.0
  %3329 = vmatpush1.msra.mxu0 0.0
  %3330 = vmatprep.subr.mxu0 0.0
  %3331 = vmatpush1.msra.mxu0 0.0
  %3332 = vmatprep.subr.mxu0 0.0
  %3333 = vmatpush1.msra.mxu0 0.0
  %3334 = vmatprep.subr.mxu0 0.0
  %3335 = vmatpush1.msra.mxu0 0.0
  %3336 = vmatprep.subr.mxu0 0.0
  %3337 = vmatpush1.msra.mxu0 0.0
  %3338 = vmatprep.subr.mxu0 0.0
  %3339 = vmatpush1.msra.mxu0 0.0
  %3340 = vmatprep.subr.mxu0 0.0
  %3341 = vmatpush1.msra.mxu0 0.0
  %3342 = vmatprep.subr.mxu0 0.0
  %3343 = vmatpush1.msra.mxu0 0.0
  %3344 = vmatprep.subr.mxu0 0.0
  %3345 = vmatpush1.msra.mxu0 0.0
  %3346 = vmatprep.subr.mxu0 0.0
  %3347 = vmatpush1.msra.mxu0 0.0
  %3348 = vmatprep.subr.mxu0 0.0
  %3349 = vmatpush1.msra.mxu0 0.0
  %3350 = vmatprep.subr.mxu0 0.0
  %3351 = vmatpush1.msra.mxu0 0.0
  %3352 = vmatprep.subr.mxu0 0.0
  %3353 = vmatpush1.msra.mxu0 0.0
  %3354 = vmatprep.subr.mxu0 0.0
  %3355 = vmatpush1.msra.mxu0 0.0
  %3356 = vmatprep.subr.mxu0 0.0
  %3357 = vmatpush1.msra.mxu0 0.0
  %3358 = vmatprep.subr.mxu0 0.0
  %3359 = vmatpush1.msra.mxu0 0.0
  %3360 = vmatprep.subr.mxu0 0.0
  %3361 = vmatpush1.msra.mxu0 0.0
  %3362 = vmatprep.subr.mxu0 0.0
  %3363 = vmatpush1.msra.mxu0 0.0
  %3364 = vmatprep.subr.mxu0 0.0
  %3365 = vmatpush1.msra.mxu0 0.0
  %3366 = vmatprep.mubr.f32.mxu0 0.0
  %3367 = vmatmul.mubr.f32.gmra.mrb[0].mxu0 %v3158
  %v3368 = vpop.f32.mrb[0].mxu0
  %v3369 = vadd.f32 0.0, %v3368
  %v3370 = vpop.f32.mrb[0].mxu0
  %v3371 = vadd.f32 0.0, %v3370
  %3372 = vdwg.mxu0
  %v3373 = vadd.f32 %v3124, %v3227
  %v3374 = vadd.f32 %v3125, %v3229
  %v3375 = vadd.f32 %v3126, %v3298
  %v3376 = vadd.f32 %v3127, %v3300
  %v3377 = vadd.f32 %v3128, %v3369
  %v3378 = vadd.f32 %v3129, %v3371
  %3379 = vrot.lane.b32.xlu0 %v2388, 96
  %v3380 = vpop.permute.xlu0 %3379
  %v3381 = vsel %vm77, %v3380, 0
  %3383 = vmatprep.subr.mxu0 %v2383
  %3384 = vmatpush1.msra.mxu0 %v2382
  %3385 = vmatprep.subr.mxu0 0.0
  %3386 = vmatpush1.msra.mxu0 0.0
  %3387 = vmatprep.subr.mxu0 0.0
  %3388 = vmatpush1.msra.mxu0 0.0
  %3389 = vmatprep.subr.mxu0 0.0
  %3390 = vmatpush1.msra.mxu0 0.0
  %3391 = vmatprep.subr.mxu0 0.0
  %3392 = vmatpush1.msra.mxu0 0.0
  %3393 = vmatprep.subr.mxu0 0.0
  %3394 = vmatpush1.msra.mxu0 0.0
  %3395 = vmatprep.subr.mxu0 0.0
  %3396 = vmatpush1.msra.mxu0 0.0
  %3397 = vmatprep.subr.mxu0 0.0
  %3398 = vmatpush1.msra.mxu0 0.0
  %3399 = vmatprep.subr.mxu0 0.0
  %3400 = vmatpush1.msra.mxu0 0.0
  %3401 = vmatprep.subr.mxu0 0.0
  %3402 = vmatpush1.msra.mxu0 0.0
  %3403 = vmatprep.subr.mxu0 0.0
  %3404 = vmatpush1.msra.mxu0 0.0
  %3405 = vmatprep.subr.mxu0 0.0
  %3406 = vmatpush1.msra.mxu0 0.0
  %3407 = vmatprep.subr.mxu0 0.0
  %3408 = vmatpush1.msra.mxu0 0.0
  %3409 = vmatprep.subr.mxu0 0.0
  %3410 = vmatpush1.msra.mxu0 0.0
  %3411 = vmatprep.subr.mxu0 0.0
  %3412 = vmatpush1.msra.mxu0 0.0
  %3413 = vmatprep.subr.mxu0 0.0
  %3414 = vmatpush1.msra.mxu0 0.0
  %3415 = vmatprep.subr.mxu0 0.0
  %3416 = vmatpush1.msra.mxu0 0.0
  %3417 = vmatprep.subr.mxu0 0.0
  %3418 = vmatpush1.msra.mxu0 0.0
  %3419 = vmatprep.subr.mxu0 0.0
  %3420 = vmatpush1.msra.mxu0 0.0
  %3421 = vmatprep.subr.mxu0 0.0
  %3422 = vmatpush1.msra.mxu0 0.0
  %3423 = vmatprep.subr.mxu0 0.0
  %3424 = vmatpush1.msra.mxu0 0.0
  %3425 = vmatprep.subr.mxu0 0.0
  %3426 = vmatpush1.msra.mxu0 0.0
  %3427 = vmatprep.subr.mxu0 0.0
  %3428 = vmatpush1.msra.mxu0 0.0
  %3429 = vmatprep.subr.mxu0 0.0
  %3430 = vmatpush1.msra.mxu0 0.0
  %3431 = vmatprep.subr.mxu0 0.0
  %3432 = vmatpush1.msra.mxu0 0.0
  %3433 = vmatprep.subr.mxu0 0.0
  %3434 = vmatpush1.msra.mxu0 0.0
  %3435 = vmatprep.subr.mxu0 0.0
  %3436 = vmatpush1.msra.mxu0 0.0
  %3437 = vmatprep.subr.mxu0 0.0
  %3438 = vmatpush1.msra.mxu0 0.0
  %3439 = vmatprep.subr.mxu0 0.0
  %3440 = vmatpush1.msra.mxu0 0.0
  %3441 = vmatprep.subr.mxu0 0.0
  %3442 = vmatpush1.msra.mxu0 0.0
  %3443 = vmatprep.subr.mxu0 0.0
  %3444 = vmatpush1.msra.mxu0 0.0
  %3445 = vmatprep.subr.mxu0 0.0
  %3446 = vmatpush1.msra.mxu0 0.0
  %3447 = vmatprep.mubr.f32.mxu0 0.0
  %3448 = vmatmul.mubr.f32.gmra.mrb[0].mxu0 %v3381
  %v3449 = vpop.f32.mrb[0].mxu0
  %v3450 = vadd.f32 0.0, %v3449
  %v3451 = vpop.f32.mrb[0].mxu0
  %v3452 = vadd.f32 0.0, %v3451
  %3453 = vdwg.mxu0
  %3454 = vmatprep.subr.mxu0 %v2385
  %3455 = vmatpush1.msra.mxu0 %v2384
  %3456 = vmatprep.subr.mxu0 0.0
  %3457 = vmatpush1.msra.mxu0 0.0
  %3458 = vmatprep.subr.mxu0 0.0
  %3459 = vmatpush1.msra.mxu0 0.0
  %3460 = vmatprep.subr.mxu0 0.0
  %3461 = vmatpush1.msra.mxu0 0.0
  %3462 = vmatprep.subr.mxu0 0.0
  %3463 = vmatpush1.msra.mxu0 0.0
  %3464 = vmatprep.subr.mxu0 0.0
  %3465 = vmatpush1.msra.mxu0 0.0
  %3466 = vmatprep.subr.mxu0 0.0
  %3467 = vmatpush1.msra.mxu0 0.0
  %3468 = vmatprep.subr.mxu0 0.0
  %3469 = vmatpush1.msra.mxu0 0.0
  %3470 = vmatprep.subr.mxu0 0.0
  %3471 = vmatpush1.msra.mxu0 0.0
  %3472 = vmatprep.subr.mxu0 0.0
  %3473 = vmatpush1.msra.mxu0 0.0
  %3474 = vmatprep.subr.mxu0 0.0
  %3475 = vmatpush1.msra.mxu0 0.0
  %3476 = vmatprep.subr.mxu0 0.0
  %3477 = vmatpush1.msra.mxu0 0.0
  %3478 = vmatprep.subr.mxu0 0.0
  %3479 = vmatpush1.msra.mxu0 0.0
  %3480 = vmatprep.subr.mxu0 0.0
  %3481 = vmatpush1.msra.mxu0 0.0
  %3482 = vmatprep.subr.mxu0 0.0
  %3483 = vmatpush1.msra.mxu0 0.0
  %3484 = vmatprep.subr.mxu0 0.0
  %3485 = vmatpush1.msra.mxu0 0.0
  %3486 = vmatprep.subr.mxu0 0.0
  %3487 = vmatpush1.msra.mxu0 0.0
  %3488 = vmatprep.subr.mxu0 0.0
  %3489 = vmatpush1.msra.mxu0 0.0
  %3490 = vmatprep.subr.mxu0 0.0
  %3491 = vmatpush1.msra.mxu0 0.0
  %3492 = vmatprep.subr.mxu0 0.0
  %3493 = vmatpush1.msra.mxu0 0.0
  %3494 = vmatprep.subr.mxu0 0.0
  %3495 = vmatpush1.msra.mxu0 0.0
  %3496 = vmatprep.subr.mxu0 0.0
  %3497 = vmatpush1.msra.mxu0 0.0
  %3498 = vmatprep.subr.mxu0 0.0
  %3499 = vmatpush1.msra.mxu0 0.0
  %3500 = vmatprep.subr.mxu0 0.0
  %3501 = vmatpush1.msra.mxu0 0.0
  %3502 = vmatprep.subr.mxu0 0.0
  %3503 = vmatpush1.msra.mxu0 0.0
  %3504 = vmatprep.subr.mxu0 0.0
  %3505 = vmatpush1.msra.mxu0 0.0
  %3506 = vmatprep.subr.mxu0 0.0
  %3507 = vmatpush1.msra.mxu0 0.0
  %3508 = vmatprep.subr.mxu0 0.0
  %3509 = vmatpush1.msra.mxu0 0.0
  %3510 = vmatprep.subr.mxu0 0.0
  %3511 = vmatpush1.msra.mxu0 0.0
  %3512 = vmatprep.subr.mxu0 0.0
  %3513 = vmatpush1.msra.mxu0 0.0
  %3514 = vmatprep.subr.mxu0 0.0
  %3515 = vmatpush1.msra.mxu0 0.0
  %3516 = vmatprep.subr.mxu0 0.0
  %3517 = vmatpush1.msra.mxu0 0.0
  %3518 = vmatprep.mubr.f32.mxu0 0.0
  %3519 = vmatmul.mubr.f32.gmra.mrb[0].mxu0 %v3381
  %v3520 = vpop.f32.mrb[0].mxu0
  %v3521 = vadd.f32 0.0, %v3520
  %v3522 = vpop.f32.mrb[0].mxu0
  %v3523 = vadd.f32 0.0, %v3522
  %3524 = vdwg.mxu0
  %3525 = vmatprep.subr.mxu0 %v2387
  %3526 = vmatpush1.msra.mxu0 %v2386
  %3527 = vmatprep.subr.mxu0 0.0
  %3528 = vmatpush1.msra.mxu0 0.0
  %3529 = vmatprep.subr.mxu0 0.0
  %3530 = vmatpush1.msra.mxu0 0.0
  %3531 = vmatprep.subr.mxu0 0.0
  %3532 = vmatpush1.msra.mxu0 0.0
  %3533 = vmatprep.subr.mxu0 0.0
  %3534 = vmatpush1.msra.mxu0 0.0
  %3535 = vmatprep.subr.mxu0 0.0
  %3536 = vmatpush1.msra.mxu0 0.0
  %3537 = vmatprep.subr.mxu0 0.0
  %3538 = vmatpush1.msra.mxu0 0.0
  %3539 = vmatprep.subr.mxu0 0.0
  %3540 = vmatpush1.msra.mxu0 0.0
  %3541 = vmatprep.subr.mxu0 0.0
  %3542 = vmatpush1.msra.mxu0 0.0
  %3543 = vmatprep.subr.mxu0 0.0
  %3544 = vmatpush1.msra.mxu0 0.0
  %3545 = vmatprep.subr.mxu0 0.0
  %3546 = vmatpush1.msra.mxu0 0.0
  %3547 = vmatprep.subr.mxu0 0.0
  %3548 = vmatpush1.msra.mxu0 0.0
  %3549 = vmatprep.subr.mxu0 0.0
  %3550 = vmatpush1.msra.mxu0 0.0
  %3551 = vmatprep.subr.mxu0 0.0
  %3552 = vmatpush1.msra.mxu0 0.0
  %3553 = vmatprep.subr.mxu0 0.0
  %3554 = vmatpush1.msra.mxu0 0.0
  %3555 = vmatprep.subr.mxu0 0.0
  %3556 = vmatpush1.msra.mxu0 0.0
  %3557 = vmatprep.subr.mxu0 0.0
  %3558 = vmatpush1.msra.mxu0 0.0
  %3559 = vmatprep.subr.mxu0 0.0
  %3560 = vmatpush1.msra.mxu0 0.0
  %3561 = vmatprep.subr.mxu0 0.0
  %3562 = vmatpush1.msra.mxu0 0.0
  %3563 = vmatprep.subr.mxu0 0.0
  %3564 = vmatpush1.msra.mxu0 0.0
  %3565 = vmatprep.subr.mxu0 0.0
  %3566 = vmatpush1.msra.mxu0 0.0
  %3567 = vmatprep.subr.mxu0 0.0
  %3568 = vmatpush1.msra.mxu0 0.0
  %3569 = vmatprep.subr.mxu0 0.0
  %3570 = vmatpush1.msra.mxu0 0.0
  %3571 = vmatprep.subr.mxu0 0.0
  %3572 = vmatpush1.msra.mxu0 0.0
  %3573 = vmatprep.subr.mxu0 0.0
  %3574 = vmatpush1.msra.mxu0 0.0
  %3575 = vmatprep.subr.mxu0 0.0
  %3576 = vmatpush1.msra.mxu0 0.0
  %3577 = vmatprep.subr.mxu0 0.0
  %3578 = vmatpush1.msra.mxu0 0.0
  %3579 = vmatprep.subr.mxu0 0.0
  %3580 = vmatpush1.msra.mxu0 0.0
  %3581 = vmatprep.subr.mxu0 0.0
  %3582 = vmatpush1.msra.mxu0 0.0
  %3583 = vmatprep.subr.mxu0 0.0
  %3584 = vmatpush1.msra.mxu0 0.0
  %3585 = vmatprep.subr.mxu0 0.0
  %3586 = vmatpush1.msra.mxu0 0.0
  %3587 = vmatprep.subr.mxu0 0.0
  %3588 = vmatpush1.msra.mxu0 0.0
  %3589 = vmatprep.mubr.f32.mxu0 0.0
  %3590 = vmatmul.mubr.f32.gmra.mrb[0].mxu0 %v3381
  %v3591 = vpop.f32.mrb[0].mxu0
  %v3592 = vadd.f32 0.0, %v3591
  %v3593 = vpop.f32.mrb[0].mxu0
  %v3594 = vadd.f32 0.0, %v3593
  %3595 = vdwg.mxu0
  %v3596 = vadd.f32 %v3373, %v3450
  %v3597 = vadd.f32 %v3374, %v3452
  %v3598 = vadd.f32 %v3375, %v3521
  %v3599 = vadd.f32 %v3376, %v3523
  %v3600 = vadd.f32 %v3377, %v3592
  %v3601 = vadd.f32 %v3378, %v3594
  %v3602 = vld [vmem:[#allocation2 + $0x8] sm:$0xff]
  %v3603 = vld [vmem:[#allocation2 + $0x10] sm:$0xff]
  %v3604 = vld [vmem:[#allocation2 + $0x18] sm:$0xff]
  %v3605 = vld [vmem:[#allocation2 + $0x20] sm:$0xff]
  %v3606 = vld [vmem:[#allocation2 + $0x28] sm:$0xff]
  %v3607 = vld [vmem:[#allocation2 + $0x30] sm:$0xff]
  %v3608 = vld [vmem:[#allocation2 + $0x38] sm:$0xff]
  %3609 = vrot.lane.b32.xlu0 %v2388, 88
  %v3610 = vpop.permute.xlu0 %3609
  %3618 = vrot.lane.b32.xlu0 %v3602, 127
  %v3619 = vpop.permute.xlu0 %3618
  %3620 = vrot.lane.b32.xlu0 %v3603, 127
  %v3621 = vpop.permute.xlu0 %3620
  %3622 = vrot.lane.b32.xlu0 %v3604, 127
  %v3623 = vpop.permute.xlu0 %3622
  %3624 = vrot.lane.b32.xlu0 %v3605, 127
  %v3625 = vpop.permute.xlu0 %3624
  %3626 = vrot.lane.b32.xlu0 %v3606, 127
  %v3627 = vpop.permute.xlu0 %3626
  %3628 = vrot.lane.b32.xlu0 %v3607, 127
  %v3629 = vpop.permute.xlu0 %3628
  %3630 = vrot.lane.b32.xlu0 %v3608, 127
  %v3631 = vpop.permute.xlu0 %3630
  %v3632 = vsel %vm1288, %v3619, %v3621
  %v3633 = vsel %vm1288, %v3621, %v3623
  %v3634 = vsel %vm1288, %v3623, %v3625
  %v3635 = vsel %vm1288, %v3625, %v3627
  %v3636 = vsel %vm1288, %v3627, %v3629
  %v3637 = vsel %vm1288, %v3629, %v3631
  %v3644 = vsel %vm77, %v3610, 0
  %3646 = vmatprep.subr.mxu0 %v3633
  %3647 = vmatpush1.msra.mxu0 %v3632
  %3648 = vmatprep.subr.mxu0 0.0
  %3649 = vmatpush1.msra.mxu0 0.0
  %3650 = vmatprep.subr.mxu0 0.0
  %3651 = vmatpush1.msra.mxu0 0.0
  %3652 = vmatprep.subr.mxu0 0.0
  %3653 = vmatpush1.msra.mxu0 0.0
  %3654 = vmatprep.subr.mxu0 0.0
  %3655 = vmatpush1.msra.mxu0 0.0
  %3656 = vmatprep.subr.mxu0 0.0
  %3657 = vmatpush1.msra.mxu0 0.0
  %3658 = vmatprep.subr.mxu0 0.0
  %3659 = vmatpush1.msra.mxu0 0.0
  %3660 = vmatprep.subr.mxu0 0.0
  %3661 = vmatpush1.msra.mxu0 0.0
  %3662 = vmatprep.subr.mxu0 0.0
  %3663 = vmatpush1.msra.mxu0 0.0
  %3664 = vmatprep.subr.mxu0 0.0
  %3665 = vmatpush1.msra.mxu0 0.0
  %3666 = vmatprep.subr.mxu0 0.0
  %3667 = vmatpush1.msra.mxu0 0.0
  %3668 = vmatprep.subr.mxu0 0.0
  %3669 = vmatpush1.msra.mxu0 0.0
  %3670 = vmatprep.subr.mxu0 0.0
  %3671 = vmatpush1.msra.mxu0 0.0
  %3672 = vmatprep.subr.mxu0 0.0
  %3673 = vmatpush1.msra.mxu0 0.0
  %3674 = vmatprep.subr.mxu0 0.0
  %3675 = vmatpush1.msra.mxu0 0.0
  %3676 = vmatprep.subr.mxu0 0.0
  %3677 = vmatpush1.msra.mxu0 0.0
  %3678 = vmatprep.subr.mxu0 0.0
  %3679 = vmatpush1.msra.mxu0 0.0
  %3680 = vmatprep.subr.mxu0 0.0
  %3681 = vmatpush1.msra.mxu0 0.0
  %3682 = vmatprep.subr.mxu0 0.0
  %3683 = vmatpush1.msra.mxu0 0.0
  %3684 = vmatprep.subr.mxu0 0.0
  %3685 = vmatpush1.msra.mxu0 0.0
  %3686 = vmatprep.subr.mxu0 0.0
  %3687 = vmatpush1.msra.mxu0 0.0
  %3688 = vmatprep.subr.mxu0 0.0
  %3689 = vmatpush1.msra.mxu0 0.0
  %3690 = vmatprep.subr.mxu0 0.0
  %3691 = vmatpush1.msra.mxu0 0.0
  %3692 = vmatprep.subr.mxu0 0.0
  %3693 = vmatpush1.msra.mxu0 0.0
  %3694 = vmatprep.subr.mxu0 0.0
  %3695 = vmatpush1.msra.mxu0 0.0
  %3696 = vmatprep.subr.mxu0 0.0
  %3697 = vmatpush1.msra.mxu0 0.0
  %3698 = vmatprep.subr.mxu0 0.0
  %3699 = vmatpush1.msra.mxu0 0.0
  %3700 = vmatprep.subr.mxu0 0.0
  %3701 = vmatpush1.msra.mxu0 0.0
  %3702 = vmatprep.subr.mxu0 0.0
  %3703 = vmatpush1.msra.mxu0 0.0
  %3704 = vmatprep.subr.mxu0 0.0
  %3705 = vmatpush1.msra.mxu0 0.0
  %3706 = vmatprep.subr.mxu0 0.0
  %3707 = vmatpush1.msra.mxu0 0.0
  %3708 = vmatprep.subr.mxu0 0.0
  %3709 = vmatpush1.msra.mxu0 0.0
  %3710 = vmatprep.mubr.f32.mxu0 0.0
  %3711 = vmatmul.mubr.f32.gmra.mrb[0].mxu0 %v3644
  %v3712 = vpop.f32.mrb[0].mxu0
  %v3713 = vadd.f32 0.0, %v3712
  %v3714 = vpop.f32.mrb[0].mxu0
  %v3715 = vadd.f32 0.0, %v3714
  %3716 = vdwg.mxu0
  %3717 = vmatprep.subr.mxu0 %v3635
  %3718 = vmatpush1.msra.mxu0 %v3634
  %3719 = vmatprep.subr.mxu0 0.0
  %3720 = vmatpush1.msra.mxu0 0.0
  %3721 = vmatprep.subr.mxu0 0.0
  %3722 = vmatpush1.msra.mxu0 0.0
  %3723 = vmatprep.subr.mxu0 0.0
  %3724 = vmatpush1.msra.mxu0 0.0
  %3725 = vmatprep.subr.mxu0 0.0
  %3726 = vmatpush1.msra.mxu0 0.0
  %3727 = vmatprep.subr.mxu0 0.0
  %3728 = vmatpush1.msra.mxu0 0.0
  %3729 = vmatprep.subr.mxu0 0.0
  %3730 = vmatpush1.msra.mxu0 0.0
  %3731 = vmatprep.subr.mxu0 0.0
  %3732 = vmatpush1.msra.mxu0 0.0
  %3733 = vmatprep.subr.mxu0 0.0
  %3734 = vmatpush1.msra.mxu0 0.0
  %3735 = vmatprep.subr.mxu0 0.0
  %3736 = vmatpush1.msra.mxu0 0.0
  %3737 = vmatprep.subr.mxu0 0.0
  %3738 = vmatpush1.msra.mxu0 0.0
  %3739 = vmatprep.subr.mxu0 0.0
  %3740 = vmatpush1.msra.mxu0 0.0
  %3741 = vmatprep.subr.mxu0 0.0
  %3742 = vmatpush1.msra.mxu0 0.0
  %3743 = vmatprep.subr.mxu0 0.0
  %3744 = vmatpush1.msra.mxu0 0.0
  %3745 = vmatprep.subr.mxu0 0.0
  %3746 = vmatpush1.msra.mxu0 0.0
  %3747 = vmatprep.subr.mxu0 0.0
  %3748 = vmatpush1.msra.mxu0 0.0
  %3749 = vmatprep.subr.mxu0 0.0
  %3750 = vmatpush1.msra.mxu0 0.0
  %3751 = vmatprep.subr.mxu0 0.0
  %3752 = vmatpush1.msra.mxu0 0.0
  %3753 = vmatprep.subr.mxu0 0.0
  %3754 = vmatpush1.msra.mxu0 0.0
  %3755 = vmatprep.subr.mxu0 0.0
  %3756 = vmatpush1.msra.mxu0 0.0
  %3757 = vmatprep.subr.mxu0 0.0
  %3758 = vmatpush1.msra.mxu0 0.0
  %3759 = vmatprep.subr.mxu0 0.0
  %3760 = vmatpush1.msra.mxu0 0.0
  %3761 = vmatprep.subr.mxu0 0.0
  %3762 = vmatpush1.msra.mxu0 0.0
  %3763 = vmatprep.subr.mxu0 0.0
  %3764 = vmatpush1.msra.mxu0 0.0
  %3765 = vmatprep.subr.mxu0 0.0
  %3766 = vmatpush1.msra.mxu0 0.0
  %3767 = vmatprep.subr.mxu0 0.0
  %3768 = vmatpush1.msra.mxu0 0.0
  %3769 = vmatprep.subr.mxu0 0.0
  %3770 = vmatpush1.msra.mxu0 0.0
  %3771 = vmatprep.subr.mxu0 0.0
  %3772 = vmatpush1.msra.mxu0 0.0
  %3773 = vmatprep.subr.mxu0 0.0
  %3774 = vmatpush1.msra.mxu0 0.0
  %3775 = vmatprep.subr.mxu0 0.0
  %3776 = vmatpush1.msra.mxu0 0.0
  %3777 = vmatprep.subr.mxu0 0.0
  %3778 = vmatpush1.msra.mxu0 0.0
  %3779 = vmatprep.subr.mxu0 0.0
  %3780 = vmatpush1.msra.mxu0 0.0
  %3781 = vmatprep.mubr.f32.mxu0 0.0
  %3782 = vmatmul.mubr.f32.gmra.mrb[0].mxu0 %v3644
  %v3783 = vpop.f32.mrb[0].mxu0
  %v3784 = vadd.f32 0.0, %v3783
  %v3785 = vpop.f32.mrb[0].mxu0
  %v3786 = vadd.f32 0.0, %v3785
  %3787 = vdwg.mxu0
  %3788 = vmatprep.subr.mxu0 %v3637
  %3789 = vmatpush1.msra.mxu0 %v3636
  %3790 = vmatprep.subr.mxu0 0.0
  %3791 = vmatpush1.msra.mxu0 0.0
  %3792 = vmatprep.subr.mxu0 0.0
  %3793 = vmatpush1.msra.mxu0 0.0
  %3794 = vmatprep.subr.mxu0 0.0
  %3795 = vmatpush1.msra.mxu0 0.0
  %3796 = vmatprep.subr.mxu0 0.0
  %3797 = vmatpush1.msra.mxu0 0.0
  %3798 = vmatprep.subr.mxu0 0.0
  %3799 = vmatpush1.msra.mxu0 0.0
  %3800 = vmatprep.subr.mxu0 0.0
  %3801 = vmatpush1.msra.mxu0 0.0
  %3802 = vmatprep.subr.mxu0 0.0
  %3803 = vmatpush1.msra.mxu0 0.0
  %3804 = vmatprep.subr.mxu0 0.0
  %3805 = vmatpush1.msra.mxu0 0.0
  %3806 = vmatprep.subr.mxu0 0.0
  %3807 = vmatpush1.msra.mxu0 0.0
  %3808 = vmatprep.subr.mxu0 0.0
  %3809 = vmatpush1.msra.mxu0 0.0
  %3810 = vmatprep.subr.mxu0 0.0
  %3811 = vmatpush1.msra.mxu0 0.0
  %3812 = vmatprep.subr.mxu0 0.0
  %3813 = vmatpush1.msra.mxu0 0.0
  %3814 = vmatprep.subr.mxu0 0.0
  %3815 = vmatpush1.msra.mxu0 0.0
  %3816 = vmatprep.subr.mxu0 0.0
  %3817 = vmatpush1.msra.mxu0 0.0
  %3818 = vmatprep.subr.mxu0 0.0
  %3819 = vmatpush1.msra.mxu0 0.0
  %3820 = vmatprep.subr.mxu0 0.0
  %3821 = vmatpush1.msra.mxu0 0.0
  %3822 = vmatprep.subr.mxu0 0.0
  %3823 = vmatpush1.msra.mxu0 0.0
  %3824 = vmatprep.subr.mxu0 0.0
  %3825 = vmatpush1.msra.mxu0 0.0
  %3826 = vmatprep.subr.mxu0 0.0
  %3827 = vmatpush1.msra.mxu0 0.0
  %3828 = vmatprep.subr.mxu0 0.0
  %3829 = vmatpush1.msra.mxu0 0.0
  %3830 = vmatprep.subr.mxu0 0.0
  %3831 = vmatpush1.msra.mxu0 0.0
  %3832 = vmatprep.subr.mxu0 0.0
  %3833 = vmatpush1.msra.mxu0 0.0
  %3834 = vmatprep.subr.mxu0 0.0
  %3835 = vmatpush1.msra.mxu0 0.0
  %3836 = vmatprep.subr.mxu0 0.0
  %3837 = vmatpush1.msra.mxu0 0.0
  %3838 = vmatprep.subr.mxu0 0.0
  %3839 = vmatpush1.msra.mxu0 0.0
  %3840 = vmatprep.subr.mxu0 0.0
  %3841 = vmatpush1.msra.mxu0 0.0
  %3842 = vmatprep.subr.mxu0 0.0
  %3843 = vmatpush1.msra.mxu0 0.0
  %3844 = vmatprep.subr.mxu0 0.0
  %3845 = vmatpush1.msra.mxu0 0.0
  %3846 = vmatprep.subr.mxu0 0.0
  %3847 = vmatpush1.msra.mxu0 0.0
  %3848 = vmatprep.subr.mxu0 0.0
  %3849 = vmatpush1.msra.mxu0 0.0
  %3850 = vmatprep.subr.mxu0 0.0
  %3851 = vmatpush1.msra.mxu0 0.0
  %3852 = vmatprep.mubr.f32.mxu0 0.0
  %3853 = vmatmul.mubr.f32.gmra.mrb[0].mxu0 %v3644
  %v3854 = vpop.f32.mrb[0].mxu0
  %v3855 = vadd.f32 0.0, %v3854
  %v3856 = vpop.f32.mrb[0].mxu0
  %v3857 = vadd.f32 0.0, %v3856
  %3858 = vdwg.mxu0
  %v3859 = vadd.f32 %v3596, %v3713
  %v3860 = vadd.f32 %v3597, %v3715
  %v3861 = vadd.f32 %v3598, %v3784
  %v3862 = vadd.f32 %v3599, %v3786
  %v3863 = vadd.f32 %v3600, %v3855
  %v3864 = vadd.f32 %v3601, %v3857
  %3865 = vrot.lane.b32.xlu0 %v2388, 80
  %v3866 = vpop.permute.xlu0 %3865
  %3867 = vrot.lane.b32.xlu0 %v3602, 111
  %v3868 = vpop.permute.xlu0 %3867
  %3869 = vrot.lane.b32.xlu0 %v3603, 111
  %v3870 = vpop.permute.xlu0 %3869
  %3871 = vrot.lane.b32.xlu0 %v3604, 111
  %v3872 = vpop.permute.xlu0 %3871
  %3873 = vrot.lane.b32.xlu0 %v3605, 111
  %v3874 = vpop.permute.xlu0 %3873
  %3875 = vrot.lane.b32.xlu0 %v3606, 111
  %v3876 = vpop.permute.xlu0 %3875
  %3877 = vrot.lane.b32.xlu0 %v3607, 111
  %v3878 = vpop.permute.xlu0 %3877
  %3879 = vrot.lane.b32.xlu0 %v3608, 111
  %v3880 = vpop.permute.xlu0 %3879
  %v3881 = vsel %vm1538, %v3868, %v3870
  %v3882 = vsel %vm1538, %v3870, %v3872
  %v3883 = vsel %vm1538, %v3872, %v3874
  %v3884 = vsel %vm1538, %v3874, %v3876
  %v3885 = vsel %vm1538, %v3876, %v3878
  %v3886 = vsel %vm1538, %v3878, %v3880
  %v3893 = vsel %vm77, %v3866, 0
  %3895 = vmatprep.subr.mxu0 %v3882
  %3896 = vmatpush1.msra.mxu0 %v3881
  %3897 = vmatprep.subr.mxu0 0.0
  %3898 = vmatpush1.msra.mxu0 0.0
  %3899 = vmatprep.subr.mxu0 0.0
  %3900 = vmatpush1.msra.mxu0 0.0
  %3901 = vmatprep.subr.mxu0 0.0
  %3902 = vmatpush1.msra.mxu0 0.0
  %3903 = vmatprep.subr.mxu0 0.0
  %3904 = vmatpush1.msra.mxu0 0.0
  %3905 = vmatprep.subr.mxu0 0.0
  %3906 = vmatpush1.msra.mxu0 0.0
  %3907 = vmatprep.subr.mxu0 0.0
  %3908 = vmatpush1.msra.mxu0 0.0
  %3909 = vmatprep.subr.mxu0 0.0
  %3910 = vmatpush1.msra.mxu0 0.0
  %3911 = vmatprep.subr.mxu0 0.0
  %3912 = vmatpush1.msra.mxu0 0.0
  %3913 = vmatprep.subr.mxu0 0.0
  %3914 = vmatpush1.msra.mxu0 0.0
  %3915 = vmatprep.subr.mxu0 0.0
  %3916 = vmatpush1.msra.mxu0 0.0
  %3917 = vmatprep.subr.mxu0 0.0
  %3918 = vmatpush1.msra.mxu0 0.0
  %3919 = vmatprep.subr.mxu0 0.0
  %3920 = vmatpush1.msra.mxu0 0.0
  %3921 = vmatprep.subr.mxu0 0.0
  %3922 = vmatpush1.msra.mxu0 0.0
  %3923 = vmatprep.subr.mxu0 0.0
  %3924 = vmatpush1.msra.mxu0 0.0
  %3925 = vmatprep.subr.mxu0 0.0
  %3926 = vmatpush1.msra.mxu0 0.0
  %3927 = vmatprep.subr.mxu0 0.0
  %3928 = vmatpush1.msra.mxu0 0.0
  %3929 = vmatprep.subr.mxu0 0.0
  %3930 = vmatpush1.msra.mxu0 0.0
  %3931 = vmatprep.subr.mxu0 0.0
  %3932 = vmatpush1.msra.mxu0 0.0
  %3933 = vmatprep.subr.mxu0 0.0
  %3934 = vmatpush1.msra.mxu0 0.0
  %3935 = vmatprep.subr.mxu0 0.0
  %3936 = vmatpush1.msra.mxu0 0.0
  %3937 = vmatprep.subr.mxu0 0.0
  %3938 = vmatpush1.msra.mxu0 0.0
  %3939 = vmatprep.subr.mxu0 0.0
  %3940 = vmatpush1.msra.mxu0 0.0
  %3941 = vmatprep.subr.mxu0 0.0
  %3942 = vmatpush1.msra.mxu0 0.0
  %3943 = vmatprep.subr.mxu0 0.0
  %3944 = vmatpush1.msra.mxu0 0.0
  %3945 = vmatprep.subr.mxu0 0.0
  %3946 = vmatpush1.msra.mxu0 0.0
  %3947 = vmatprep.subr.mxu0 0.0
  %3948 = vmatpush1.msra.mxu0 0.0
  %3949 = vmatprep.subr.mxu0 0.0
  %3950 = vmatpush1.msra.mxu0 0.0
  %3951 = vmatprep.subr.mxu0 0.0
  %3952 = vmatpush1.msra.mxu0 0.0
  %3953 = vmatprep.subr.mxu0 0.0
  %3954 = vmatpush1.msra.mxu0 0.0
  %3955 = vmatprep.subr.mxu0 0.0
  %3956 = vmatpush1.msra.mxu0 0.0
  %3957 = vmatprep.subr.mxu0 0.0
  %3958 = vmatpush1.msra.mxu0 0.0
  %3959 = vmatprep.mubr.f32.mxu0 0.0
  %3960 = vmatmul.mubr.f32.gmra.mrb[0].mxu0 %v3893
  %v3961 = vpop.f32.mrb[0].mxu0
  %v3962 = vadd.f32 0.0, %v3961
  %v3963 = vpop.f32.mrb[0].mxu0
  %v3964 = vadd.f32 0.0, %v3963
  %3965 = vdwg.mxu0
  %3966 = vmatprep.subr.mxu0 %v3884
  %3967 = vmatpush1.msra.mxu0 %v3883
  %3968 = vmatprep.subr.mxu0 0.0
  %3969 = vmatpush1.msra.mxu0 0.0
  %3970 = vmatprep.subr.mxu0 0.0
  %3971 = vmatpush1.msra.mxu0 0.0
  %3972 = vmatprep.subr.mxu0 0.0
  %3973 = vmatpush1.msra.mxu0 0.0
  %3974 = vmatprep.subr.mxu0 0.0
  %3975 = vmatpush1.msra.mxu0 0.0
  %3976 = vmatprep.subr.mxu0 0.0
  %3977 = vmatpush1.msra.mxu0 0.0
  %3978 = vmatprep.subr.mxu0 0.0
  %3979 = vmatpush1.msra.mxu0 0.0
  %3980 = vmatprep.subr.mxu0 0.0
  %3981 = vmatpush1.msra.mxu0 0.0
  %3982 = vmatprep.subr.mxu0 0.0
  %3983 = vmatpush1.msra.mxu0 0.0
  %3984 = vmatprep.subr.mxu0 0.0
  %3985 = vmatpush1.msra.mxu0 0.0
  %3986 = vmatprep.subr.mxu0 0.0
  %3987 = vmatpush1.msra.mxu0 0.0
  %3988 = vmatprep.subr.mxu0 0.0
  %3989 = vmatpush1.msra.mxu0 0.0
  %3990 = vmatprep.subr.mxu0 0.0
  %3991 = vmatpush1.msra.mxu0 0.0
  %3992 = vmatprep.subr.mxu0 0.0
  %3993 = vmatpush1.msra.mxu0 0.0
  %3994 = vmatprep.subr.mxu0 0.0
  %3995 = vmatpush1.msra.mxu0 0.0
  %3996 = vmatprep.subr.mxu0 0.0
  %3997 = vmatpush1.msra.mxu0 0.0
  %3998 = vmatprep.subr.mxu0 0.0
  %3999 = vmatpush1.msra.mxu0 0.0
  %4000 = vmatprep.subr.mxu0 0.0
  %4001 = vmatpush1.msra.mxu0 0.0
  %4002 = vmatprep.subr.mxu0 0.0
  %4003 = vmatpush1.msra.mxu0 0.0
  %4004 = vmatprep.subr.mxu0 0.0
  %4005 = vmatpush1.msra.mxu0 0.0
  %4006 = vmatprep.subr.mxu0 0.0
  %4007 = vmatpush1.msra.mxu0 0.0
  %4008 = vmatprep.subr.mxu0 0.0
  %4009 = vmatpush1.msra.mxu0 0.0
  %4010 = vmatprep.subr.mxu0 0.0
  %4011 = vmatpush1.msra.mxu0 0.0
  %4012 = vmatprep.subr.mxu0 0.0
  %4013 = vmatpush1.msra.mxu0 0.0
  %4014 = vmatprep.subr.mxu0 0.0
  %4015 = vmatpush1.msra.mxu0 0.0
  %4016 = vmatprep.subr.mxu0 0.0
  %4017 = vmatpush1.msra.mxu0 0.0
  %4018 = vmatprep.subr.mxu0 0.0
  %4019 = vmatpush1.msra.mxu0 0.0
  %4020 = vmatprep.subr.mxu0 0.0
  %4021 = vmatpush1.msra.mxu0 0.0
  %4022 = vmatprep.subr.mxu0 0.0
  %4023 = vmatpush1.msra.mxu0 0.0
  %4024 = vmatprep.subr.mxu0 0.0
  %4025 = vmatpush1.msra.mxu0 0.0
  %4026 = vmatprep.subr.mxu0 0.0
  %4027 = vmatpush1.msra.mxu0 0.0
  %4028 = vmatprep.subr.mxu0 0.0
  %4029 = vmatpush1.msra.mxu0 0.0
  %4030 = vmatprep.mubr.f32.mxu0 0.0
  %4031 = vmatmul.mubr.f32.gmra.mrb[0].mxu0 %v3893
  %v4032 = vpop.f32.mrb[0].mxu0
  %v4033 = vadd.f32 0.0, %v4032
  %v4034 = vpop.f32.mrb[0].mxu0
  %v4035 = vadd.f32 0.0, %v4034
  %4036 = vdwg.mxu0
  %4037 = vmatprep.subr.mxu0 %v3886
  %4038 = vmatpush1.msra.mxu0 %v3885
  %4039 = vmatprep.subr.mxu0 0.0
  %4040 = vmatpush1.msra.mxu0 0.0
  %4041 = vmatprep.subr.mxu0 0.0
  %4042 = vmatpush1.msra.mxu0 0.0
  %4043 = vmatprep.subr.mxu0 0.0
  %4044 = vmatpush1.msra.mxu0 0.0
  %4045 = vmatprep.subr.mxu0 0.0
  %4046 = vmatpush1.msra.mxu0 0.0
  %4047 = vmatprep.subr.mxu0 0.0
  %4048 = vmatpush1.msra.mxu0 0.0
  %4049 = vmatprep.subr.mxu0 0.0
  %4050 = vmatpush1.msra.mxu0 0.0
  %4051 = vmatprep.subr.mxu0 0.0
  %4052 = vmatpush1.msra.mxu0 0.0
  %4053 = vmatprep.subr.mxu0 0.0
  %4054 = vmatpush1.msra.mxu0 0.0
  %4055 = vmatprep.subr.mxu0 0.0
  %4056 = vmatpush1.msra.mxu0 0.0
  %4057 = vmatprep.subr.mxu0 0.0
  %4058 = vmatpush1.msra.mxu0 0.0
  %4059 = vmatprep.subr.mxu0 0.0
  %4060 = vmatpush1.msra.mxu0 0.0
  %4061 = vmatprep.subr.mxu0 0.0
  %4062 = vmatpush1.msra.mxu0 0.0
  %4063 = vmatprep.subr.mxu0 0.0
  %4064 = vmatpush1.msra.mxu0 0.0
  %4065 = vmatprep.subr.mxu0 0.0
  %4066 = vmatpush1.msra.mxu0 0.0
  %4067 = vmatprep.subr.mxu0 0.0
  %4068 = vmatpush1.msra.mxu0 0.0
  %4069 = vmatprep.subr.mxu0 0.0
  %4070 = vmatpush1.msra.mxu0 0.0
  %4071 = vmatprep.subr.mxu0 0.0
  %4072 = vmatpush1.msra.mxu0 0.0
  %4073 = vmatprep.subr.mxu0 0.0
  %4074 = vmatpush1.msra.mxu0 0.0
  %4075 = vmatprep.subr.mxu0 0.0
  %4076 = vmatpush1.msra.mxu0 0.0
  %4077 = vmatprep.subr.mxu0 0.0
  %4078 = vmatpush1.msra.mxu0 0.0
  %4079 = vmatprep.subr.mxu0 0.0
  %4080 = vmatpush1.msra.mxu0 0.0
  %4081 = vmatprep.subr.mxu0 0.0
  %4082 = vmatpush1.msra.mxu0 0.0
  %4083 = vmatprep.subr.mxu0 0.0
  %4084 = vmatpush1.msra.mxu0 0.0
  %4085 = vmatprep.subr.mxu0 0.0
  %4086 = vmatpush1.msra.mxu0 0.0
  %4087 = vmatprep.subr.mxu0 0.0
  %4088 = vmatpush1.msra.mxu0 0.0
  %4089 = vmatprep.subr.mxu0 0.0
  %4090 = vmatpush1.msra.mxu0 0.0
  %4091 = vmatprep.subr.mxu0 0.0
  %4092 = vmatpush1.msra.mxu0 0.0
  %4093 = vmatprep.subr.mxu0 0.0
  %4094 = vmatpush1.msra.mxu0 0.0
  %4095 = vmatprep.subr.mxu0 0.0
  %4096 = vmatpush1.msra.mxu0 0.0
  %4097 = vmatprep.subr.mxu0 0.0
  %4098 = vmatpush1.msra.mxu0 0.0
  %4099 = vmatprep.subr.mxu0 0.0
  %4100 = vmatpush1.msra.mxu0 0.0
  %4101 = vmatprep.mubr.f32.mxu0 0.0
  %4102 = vmatmul.mubr.f32.gmra.mrb[0].mxu0 %v3893
  %v4103 = vpop.f32.mrb[0].mxu0
  %v4104 = vadd.f32 0.0, %v4103
  %v4105 = vpop.f32.mrb[0].mxu0
  %v4106 = vadd.f32 0.0, %v4105
  %4107 = vdwg.mxu0
  %v4108 = vadd.f32 %v3859, %v3962
  %v4109 = vadd.f32 %v3860, %v3964
  %v4110 = vadd.f32 %v3861, %v4033
  %v4111 = vadd.f32 %v3862, %v4035
  %v4112 = vadd.f32 %v3863, %v4104
  %v4113 = vadd.f32 %v3864, %v4106
  %4114 = vrot.lane.b32.xlu0 %v2388, 72
  %v4115 = vpop.permute.xlu0 %4114
  %4116 = vrot.lane.b32.xlu0 %v3602, 110
  %v4117 = vpop.permute.xlu0 %4116
  %4118 = vrot.lane.b32.xlu0 %v3603, 110
  %v4119 = vpop.permute.xlu0 %4118
  %4120 = vrot.lane.b32.xlu0 %v3604, 110
  %v4121 = vpop.permute.xlu0 %4120
  %4122 = vrot.lane.b32.xlu0 %v3605, 110
  %v4123 = vpop.permute.xlu0 %4122
  %4124 = vrot.lane.b32.xlu0 %v3606, 110
  %v4125 = vpop.permute.xlu0 %4124
  %4126 = vrot.lane.b32.xlu0 %v3607, 110
  %v4127 = vpop.permute.xlu0 %4126
  %4128 = vrot.lane.b32.xlu0 %v3608, 110
  %v4129 = vpop.permute.xlu0 %4128
  %v4130 = vsel %vm1788, %v4117, %v4119
  %v4131 = vsel %vm1788, %v4119, %v4121
  %v4132 = vsel %vm1788, %v4121, %v4123
  %v4133 = vsel %vm1788, %v4123, %v4125
  %v4134 = vsel %vm1788, %v4125, %v4127
  %v4135 = vsel %vm1788, %v4127, %v4129
  %v4142 = vsel %vm77, %v4115, 0
  %4144 = vmatprep.subr.mxu0 %v4131
  %4145 = vmatpush1.msra.mxu0 %v4130
  %4146 = vmatprep.subr.mxu0 0.0
  %4147 = vmatpush1.msra.mxu0 0.0
  %4148 = vmatprep.subr.mxu0 0.0
  %4149 = vmatpush1.msra.mxu0 0.0
  %4150 = vmatprep.subr.mxu0 0.0
  %4151 = vmatpush1.msra.mxu0 0.0
  %4152 = vmatprep.subr.mxu0 0.0
  %4153 = vmatpush1.msra.mxu0 0.0
  %4154 = vmatprep.subr.mxu0 0.0
  %4155 = vmatpush1.msra.mxu0 0.0
  %4156 = vmatprep.subr.mxu0 0.0
  %4157 = vmatpush1.msra.mxu0 0.0
  %4158 = vmatprep.subr.mxu0 0.0
  %4159 = vmatpush1.msra.mxu0 0.0
  %4160 = vmatprep.subr.mxu0 0.0
  %4161 = vmatpush1.msra.mxu0 0.0
  %4162 = vmatprep.subr.mxu0 0.0
  %4163 = vmatpush1.msra.mxu0 0.0
  %4164 = vmatprep.subr.mxu0 0.0
  %4165 = vmatpush1.msra.mxu0 0.0
  %4166 = vmatprep.subr.mxu0 0.0
  %4167 = vmatpush1.msra.mxu0 0.0
  %4168 = vmatprep.subr.mxu0 0.0
  %4169 = vmatpush1.msra.mxu0 0.0
  %4170 = vmatprep.subr.mxu0 0.0
  %4171 = vmatpush1.msra.mxu0 0.0
  %4172 = vmatprep.subr.mxu0 0.0
  %4173 = vmatpush1.msra.mxu0 0.0
  %4174 = vmatprep.subr.mxu0 0.0
  %4175 = vmatpush1.msra.mxu0 0.0
  %4176 = vmatprep.subr.mxu0 0.0
  %4177 = vmatpush1.msra.mxu0 0.0
  %4178 = vmatprep.subr.mxu0 0.0
  %4179 = vmatpush1.msra.mxu0 0.0
  %4180 = vmatprep.subr.mxu0 0.0
  %4181 = vmatpush1.msra.mxu0 0.0
  %4182 = vmatprep.subr.mxu0 0.0
  %4183 = vmatpush1.msra.mxu0 0.0
  %4184 = vmatprep.subr.mxu0 0.0
  %4185 = vmatpush1.msra.mxu0 0.0
  %4186 = vmatprep.subr.mxu0 0.0
  %4187 = vmatpush1.msra.mxu0 0.0
  %4188 = vmatprep.subr.mxu0 0.0
  %4189 = vmatpush1.msra.mxu0 0.0
  %4190 = vmatprep.subr.mxu0 0.0
  %4191 = vmatpush1.msra.mxu0 0.0
  %4192 = vmatprep.subr.mxu0 0.0
  %4193 = vmatpush1.msra.mxu0 0.0
  %4194 = vmatprep.subr.mxu0 0.0
  %4195 = vmatpush1.msra.mxu0 0.0
  %4196 = vmatprep.subr.mxu0 0.0
  %4197 = vmatpush1.msra.mxu0 0.0
  %4198 = vmatprep.subr.mxu0 0.0
  %4199 = vmatpush1.msra.mxu0 0.0
  %4200 = vmatprep.subr.mxu0 0.0
  %4201 = vmatpush1.msra.mxu0 0.0
  %4202 = vmatprep.subr.mxu0 0.0
  %4203 = vmatpush1.msra.mxu0 0.0
  %4204 = vmatprep.subr.mxu0 0.0
  %4205 = vmatpush1.msra.mxu0 0.0
  %4206 = vmatprep.subr.mxu0 0.0
  %4207 = vmatpush1.msra.mxu0 0.0
  %4208 = vmatprep.mubr.f32.mxu0 0.0
  %4209 = vmatmul.mubr.f32.gmra.mrb[0].mxu0 %v4142
  %v4210 = vpop.f32.mrb[0].mxu0
  %v4211 = vadd.f32 0.0, %v4210
  %v4212 = vpop.f32.mrb[0].mxu0
  %v4213 = vadd.f32 0.0, %v4212
  %4214 = vdwg.mxu0
  %4215 = vmatprep.subr.mxu0 %v4133
  %4216 = vmatpush1.msra.mxu0 %v4132
  %4217 = vmatprep.subr.mxu0 0.0
  %4218 = vmatpush1.msra.mxu0 0.0
  %4219 = vmatprep.subr.mxu0 0.0
  %4220 = vmatpush1.msra.mxu0 0.0
  %4221 = vmatprep.subr.mxu0 0.0
  %4222 = vmatpush1.msra.mxu0 0.0
  %4223 = vmatprep.subr.mxu0 0.0
  %4224 = vmatpush1.msra.mxu0 0.0
  %4225 = vmatprep.subr.mxu0 0.0
  %4226 = vmatpush1.msra.mxu0 0.0
  %4227 = vmatprep.subr.mxu0 0.0
  %4228 = vmatpush1.msra.mxu0 0.0
  %4229 = vmatprep.subr.mxu0 0.0
  %4230 = vmatpush1.msra.mxu0 0.0
  %4231 = vmatprep.subr.mxu0 0.0
  %4232 = vmatpush1.msra.mxu0 0.0
  %4233 = vmatprep.subr.mxu0 0.0
  %4234 = vmatpush1.msra.mxu0 0.0
  %4235 = vmatprep.subr.mxu0 0.0
  %4236 = vmatpush1.msra.mxu0 0.0
  %4237 = vmatprep.subr.mxu0 0.0
  %4238 = vmatpush1.msra.mxu0 0.0
  %4239 = vmatprep.subr.mxu0 0.0
  %4240 = vmatpush1.msra.mxu0 0.0
  %4241 = vmatprep.subr.mxu0 0.0
  %4242 = vmatpush1.msra.mxu0 0.0
  %4243 = vmatprep.subr.mxu0 0.0
  %4244 = vmatpush1.msra.mxu0 0.0
  %4245 = vmatprep.subr.mxu0 0.0
  %4246 = vmatpush1.msra.mxu0 0.0
  %4247 = vmatprep.subr.mxu0 0.0
  %4248 = vmatpush1.msra.mxu0 0.0
  %4249 = vmatprep.subr.mxu0 0.0
  %4250 = vmatpush1.msra.mxu0 0.0
  %4251 = vmatprep.subr.mxu0 0.0
  %4252 = vmatpush1.msra.mxu0 0.0
  %4253 = vmatprep.subr.mxu0 0.0
  %4254 = vmatpush1.msra.mxu0 0.0
  %4255 = vmatprep.subr.mxu0 0.0
  %4256 = vmatpush1.msra.mxu0 0.0
  %4257 = vmatprep.subr.mxu0 0.0
  %4258 = vmatpush1.msra.mxu0 0.0
  %4259 = vmatprep.subr.mxu0 0.0
  %4260 = vmatpush1.msra.mxu0 0.0
  %4261 = vmatprep.subr.mxu0 0.0
  %4262 = vmatpush1.msra.mxu0 0.0
  %4263 = vmatprep.subr.mxu0 0.0
  %4264 = vmatpush1.msra.mxu0 0.0
  %4265 = vmatprep.subr.mxu0 0.0
  %4266 = vmatpush1.msra.mxu0 0.0
  %4267 = vmatprep.subr.mxu0 0.0
  %4268 = vmatpush1.msra.mxu0 0.0
  %4269 = vmatprep.subr.mxu0 0.0
  %4270 = vmatpush1.msra.mxu0 0.0
  %4271 = vmatprep.subr.mxu0 0.0
  %4272 = vmatpush1.msra.mxu0 0.0
  %4273 = vmatprep.subr.mxu0 0.0
  %4274 = vmatpush1.msra.mxu0 0.0
  %4275 = vmatprep.subr.mxu0 0.0
  %4276 = vmatpush1.msra.mxu0 0.0
  %4277 = vmatprep.subr.mxu0 0.0
  %4278 = vmatpush1.msra.mxu0 0.0
  %4279 = vmatprep.mubr.f32.mxu0 0.0
  %4280 = vmatmul.mubr.f32.gmra.mrb[0].mxu0 %v4142
  %v4281 = vpop.f32.mrb[0].mxu0
  %v4282 = vadd.f32 0.0, %v4281
  %v4283 = vpop.f32.mrb[0].mxu0
  %v4284 = vadd.f32 0.0, %v4283
  %4285 = vdwg.mxu0
  %4286 = vmatprep.subr.mxu0 %v4135
  %4287 = vmatpush1.msra.mxu0 %v4134
  %4288 = vmatprep.subr.mxu0 0.0
  %4289 = vmatpush1.msra.mxu0 0.0
  %4290 = vmatprep.subr.mxu0 0.0
  %4291 = vmatpush1.msra.mxu0 0.0
  %4292 = vmatprep.subr.mxu0 0.0
  %4293 = vmatpush1.msra.mxu0 0.0
  %4294 = vmatprep.subr.mxu0 0.0
  %4295 = vmatpush1.msra.mxu0 0.0
  %4296 = vmatprep.subr.mxu0 0.0
  %4297 = vmatpush1.msra.mxu0 0.0
  %4298 = vmatprep.subr.mxu0 0.0
  %4299 = vmatpush1.msra.mxu0 0.0
  %4300 = vmatprep.subr.mxu0 0.0
  %4301 = vmatpush1.msra.mxu0 0.0
  %4302 = vmatprep.subr.mxu0 0.0
  %4303 = vmatpush1.msra.mxu0 0.0
  %4304 = vmatprep.subr.mxu0 0.0
  %4305 = vmatpush1.msra.mxu0 0.0
  %4306 = vmatprep.subr.mxu0 0.0
  %4307 = vmatpush1.msra.mxu0 0.0
  %4308 = vmatprep.subr.mxu0 0.0
  %4309 = vmatpush1.msra.mxu0 0.0
  %4310 = vmatprep.subr.mxu0 0.0
  %4311 = vmatpush1.msra.mxu0 0.0
  %4312 = vmatprep.subr.mxu0 0.0
  %4313 = vmatpush1.msra.mxu0 0.0
  %4314 = vmatprep.subr.mxu0 0.0
  %4315 = vmatpush1.msra.mxu0 0.0
  %4316 = vmatprep.subr.mxu0 0.0
  %4317 = vmatpush1.msra.mxu0 0.0
  %4318 = vmatprep.subr.mxu0 0.0
  %4319 = vmatpush1.msra.mxu0 0.0
  %4320 = vmatprep.subr.mxu0 0.0
  %4321 = vmatpush1.msra.mxu0 0.0
  %4322 = vmatprep.subr.mxu0 0.0
  %4323 = vmatpush1.msra.mxu0 0.0
  %4324 = vmatprep.subr.mxu0 0.0
  %4325 = vmatpush1.msra.mxu0 0.0
  %4326 = vmatprep.subr.mxu0 0.0
  %4327 = vmatpush1.msra.mxu0 0.0
  %4328 = vmatprep.subr.mxu0 0.0
  %4329 = vmatpush1.msra.mxu0 0.0
  %4330 = vmatprep.subr.mxu0 0.0
  %4331 = vmatpush1.msra.mxu0 0.0
  %4332 = vmatprep.subr.mxu0 0.0
  %4333 = vmatpush1.msra.mxu0 0.0
  %4334 = vmatprep.subr.mxu0 0.0
  %4335 = vmatpush1.msra.mxu0 0.0
  %4336 = vmatprep.subr.mxu0 0.0
  %4337 = vmatpush1.msra.mxu0 0.0
  %4338 = vmatprep.subr.mxu0 0.0
  %4339 = vmatpush1.msra.mxu0 0.0
  %4340 = vmatprep.subr.mxu0 0.0
  %4341 = vmatpush1.msra.mxu0 0.0
  %4342 = vmatprep.subr.mxu0 0.0
  %4343 = vmatpush1.msra.mxu0 0.0
  %4344 = vmatprep.subr.mxu0 0.0
  %4345 = vmatpush1.msra.mxu0 0.0
  %4346 = vmatprep.subr.mxu0 0.0
  %4347 = vmatpush1.msra.mxu0 0.0
  %4348 = vmatprep.subr.mxu0 0.0
  %4349 = vmatpush1.msra.mxu0 0.0
  %4350 = vmatprep.mubr.f32.mxu0 0.0
  %4351 = vmatmul.mubr.f32.gmra.mrb[0].mxu0 %v4142
  %v4352 = vpop.f32.mrb[0].mxu0
  %v4353 = vadd.f32 0.0, %v4352
  %v4354 = vpop.f32.mrb[0].mxu0
  %v4355 = vadd.f32 0.0, %v4354
  %4356 = vdwg.mxu0
  %v4357 = vadd.f32 %v4108, %v4211
  %v4358 = vadd.f32 %v4109, %v4213
  %v4359 = vadd.f32 %v4110, %v4282
  %v4360 = vadd.f32 %v4111, %v4284
  %v4361 = vadd.f32 %v4112, %v4353
  %v4362 = vadd.f32 %v4113, %v4355
  %4363 = vrot.lane.b32.xlu0 %v2388, 64
  %v4364 = vpop.permute.xlu0 %4363
  %4365 = vrot.lane.b32.xlu0 %v3602, 109
  %v4366 = vpop.permute.xlu0 %4365
  %4367 = vrot.lane.b32.xlu0 %v3603, 109
  %v4368 = vpop.permute.xlu0 %4367
  %4369 = vrot.lane.b32.xlu0 %v3604, 109
  %v4370 = vpop.permute.xlu0 %4369
  %4371 = vrot.lane.b32.xlu0 %v3605, 109
  %v4372 = vpop.permute.xlu0 %4371
  %4373 = vrot.lane.b32.xlu0 %v3606, 109
  %v4374 = vpop.permute.xlu0 %4373
  %4375 = vrot.lane.b32.xlu0 %v3607, 109
  %v4376 = vpop.permute.xlu0 %4375
  %4377 = vrot.lane.b32.xlu0 %v3608, 109
  %v4378 = vpop.permute.xlu0 %4377
  %v4379 = vsel %vm2038, %v4366, %v4368
  %v4380 = vsel %vm2038, %v4368, %v4370
  %v4381 = vsel %vm2038, %v4370, %v4372
  %v4382 = vsel %vm2038, %v4372, %v4374
  %v4383 = vsel %vm2038, %v4374, %v4376
  %v4384 = vsel %vm2038, %v4376, %v4378
  %v4391 = vsel %vm77, %v4364, 0
  %4393 = vmatprep.subr.mxu0 %v4380
  %4394 = vmatpush1.msra.mxu0 %v4379
  %4395 = vmatprep.subr.mxu0 0.0
  %4396 = vmatpush1.msra.mxu0 0.0
  %4397 = vmatprep.subr.mxu0 0.0
  %4398 = vmatpush1.msra.mxu0 0.0
  %4399 = vmatprep.subr.mxu0 0.0
  %4400 = vmatpush1.msra.mxu0 0.0
  %4401 = vmatprep.subr.mxu0 0.0
  %4402 = vmatpush1.msra.mxu0 0.0
  %4403 = vmatprep.subr.mxu0 0.0
  %4404 = vmatpush1.msra.mxu0 0.0
  %4405 = vmatprep.subr.mxu0 0.0
  %4406 = vmatpush1.msra.mxu0 0.0
  %4407 = vmatprep.subr.mxu0 0.0
  %4408 = vmatpush1.msra.mxu0 0.0
  %4409 = vmatprep.subr.mxu0 0.0
  %4410 = vmatpush1.msra.mxu0 0.0
  %4411 = vmatprep.subr.mxu0 0.0
  %4412 = vmatpush1.msra.mxu0 0.0
  %4413 = vmatprep.subr.mxu0 0.0
  %4414 = vmatpush1.msra.mxu0 0.0
  %4415 = vmatprep.subr.mxu0 0.0
  %4416 = vmatpush1.msra.mxu0 0.0
  %4417 = vmatprep.subr.mxu0 0.0
  %4418 = vmatpush1.msra.mxu0 0.0
  %4419 = vmatprep.subr.mxu0 0.0
  %4420 = vmatpush1.msra.mxu0 0.0
  %4421 = vmatprep.subr.mxu0 0.0
  %4422 = vmatpush1.msra.mxu0 0.0
  %4423 = vmatprep.subr.mxu0 0.0
  %4424 = vmatpush1.msra.mxu0 0.0
  %4425 = vmatprep.subr.mxu0 0.0
  %4426 = vmatpush1.msra.mxu0 0.0
  %4427 = vmatprep.subr.mxu0 0.0
  %4428 = vmatpush1.msra.mxu0 0.0
  %4429 = vmatprep.subr.mxu0 0.0
  %4430 = vmatpush1.msra.mxu0 0.0
  %4431 = vmatprep.subr.mxu0 0.0
  %4432 = vmatpush1.msra.mxu0 0.0
  %4433 = vmatprep.subr.mxu0 0.0
  %4434 = vmatpush1.msra.mxu0 0.0
  %4435 = vmatprep.subr.mxu0 0.0
  %4436 = vmatpush1.msra.mxu0 0.0
  %4437 = vmatprep.subr.mxu0 0.0
  %4438 = vmatpush1.msra.mxu0 0.0
  %4439 = vmatprep.subr.mxu0 0.0
  %4440 = vmatpush1.msra.mxu0 0.0
  %4441 = vmatprep.subr.mxu0 0.0
  %4442 = vmatpush1.msra.mxu0 0.0
  %4443 = vmatprep.subr.mxu0 0.0
  %4444 = vmatpush1.msra.mxu0 0.0
  %4445 = vmatprep.subr.mxu0 0.0
  %4446 = vmatpush1.msra.mxu0 0.0
  %4447 = vmatprep.subr.mxu0 0.0
  %4448 = vmatpush1.msra.mxu0 0.0
  %4449 = vmatprep.subr.mxu0 0.0
  %4450 = vmatpush1.msra.mxu0 0.0
  %4451 = vmatprep.subr.mxu0 0.0
  %4452 = vmatpush1.msra.mxu0 0.0
  %4453 = vmatprep.subr.mxu0 0.0
  %4454 = vmatpush1.msra.mxu0 0.0
  %4455 = vmatprep.subr.mxu0 0.0
  %4456 = vmatpush1.msra.mxu0 0.0
  %4457 = vmatprep.mubr.f32.mxu0 0.0
  %4458 = vmatmul.mubr.f32.gmra.mrb[0].mxu0 %v4391
  %v4459 = vpop.f32.mrb[0].mxu0
  %v4460 = vadd.f32 0.0, %v4459
  %v4461 = vpop.f32.mrb[0].mxu0
  %v4462 = vadd.f32 0.0, %v4461
  %4463 = vdwg.mxu0
  %4464 = vmatprep.subr.mxu0 %v4382
  %4465 = vmatpush1.msra.mxu0 %v4381
  %4466 = vmatprep.subr.mxu0 0.0
  %4467 = vmatpush1.msra.mxu0 0.0
  %4468 = vmatprep.subr.mxu0 0.0
  %4469 = vmatpush1.msra.mxu0 0.0
  %4470 = vmatprep.subr.mxu0 0.0
  %4471 = vmatpush1.msra.mxu0 0.0
  %4472 = vmatprep.subr.mxu0 0.0
  %4473 = vmatpush1.msra.mxu0 0.0
  %4474 = vmatprep.subr.mxu0 0.0
  %4475 = vmatpush1.msra.mxu0 0.0
  %4476 = vmatprep.subr.mxu0 0.0
  %4477 = vmatpush1.msra.mxu0 0.0
  %4478 = vmatprep.subr.mxu0 0.0
  %4479 = vmatpush1.msra.mxu0 0.0
  %4480 = vmatprep.subr.mxu0 0.0
  %4481 = vmatpush1.msra.mxu0 0.0
  %4482 = vmatprep.subr.mxu0 0.0
  %4483 = vmatpush1.msra.mxu0 0.0
  %4484 = vmatprep.subr.mxu0 0.0
  %4485 = vmatpush1.msra.mxu0 0.0
  %4486 = vmatprep.subr.mxu0 0.0
  %4487 = vmatpush1.msra.mxu0 0.0
  %4488 = vmatprep.subr.mxu0 0.0
  %4489 = vmatpush1.msra.mxu0 0.0
  %4490 = vmatprep.subr.mxu0 0.0
  %4491 = vmatpush1.msra.mxu0 0.0
  %4492 = vmatprep.subr.mxu0 0.0
  %4493 = vmatpush1.msra.mxu0 0.0
  %4494 = vmatprep.subr.mxu0 0.0
  %4495 = vmatpush1.msra.mxu0 0.0
  %4496 = vmatprep.subr.mxu0 0.0
  %4497 = vmatpush1.msra.mxu0 0.0
  %4498 = vmatprep.subr.mxu0 0.0
  %4499 = vmatpush1.msra.mxu0 0.0
  %4500 = vmatprep.subr.mxu0 0.0
  %4501 = vmatpush1.msra.mxu0 0.0
  %4502 = vmatprep.subr.mxu0 0.0
  %4503 = vmatpush1.msra.mxu0 0.0
  %4504 = vmatprep.subr.mxu0 0.0
  %4505 = vmatpush1.msra.mxu0 0.0
  %4506 = vmatprep.subr.mxu0 0.0
  %4507 = vmatpush1.msra.mxu0 0.0
  %4508 = vmatprep.subr.mxu0 0.0
  %4509 = vmatpush1.msra.mxu0 0.0
  %4510 = vmatprep.subr.mxu0 0.0
  %4511 = vmatpush1.msra.mxu0 0.0
  %4512 = vmatprep.subr.mxu0 0.0
  %4513 = vmatpush1.msra.mxu0 0.0
  %4514 = vmatprep.subr.mxu0 0.0
  %4515 = vmatpush1.msra.mxu0 0.0
  %4516 = vmatprep.subr.mxu0 0.0
  %4517 = vmatpush1.msra.mxu0 0.0
  %4518 = vmatprep.subr.mxu0 0.0
  %4519 = vmatpush1.msra.mxu0 0.0
  %4520 = vmatprep.subr.mxu0 0.0
  %4521 = vmatpush1.msra.mxu0 0.0
  %4522 = vmatprep.subr.mxu0 0.0
  %4523 = vmatpush1.msra.mxu0 0.0
  %4524 = vmatprep.subr.mxu0 0.0
  %4525 = vmatpush1.msra.mxu0 0.0
  %4526 = vmatprep.subr.mxu0 0.0
  %4527 = vmatpush1.msra.mxu0 0.0
  %4528 = vmatprep.mubr.f32.mxu0 0.0
  %4529 = vmatmul.mubr.f32.gmra.mrb[0].mxu0 %v4391
  %v4530 = vpop.f32.mrb[0].mxu0
  %v4531 = vadd.f32 0.0, %v4530
  %v4532 = vpop.f32.mrb[0].mxu0
  %v4533 = vadd.f32 0.0, %v4532
  %4534 = vdwg.mxu0
  %4535 = vmatprep.subr.mxu0 %v4384
  %4536 = vmatpush1.msra.mxu0 %v4383
  %4537 = vmatprep.subr.mxu0 0.0
  %4538 = vmatpush1.msra.mxu0 0.0
  %4539 = vmatprep.subr.mxu0 0.0
  %4540 = vmatpush1.msra.mxu0 0.0
  %4541 = vmatprep.subr.mxu0 0.0
  %4542 = vmatpush1.msra.mxu0 0.0
  %4543 = vmatprep.subr.mxu0 0.0
  %4544 = vmatpush1.msra.mxu0 0.0
  %4545 = vmatprep.subr.mxu0 0.0
  %4546 = vmatpush1.msra.mxu0 0.0
  %4547 = vmatprep.subr.mxu0 0.0
  %4548 = vmatpush1.msra.mxu0 0.0
  %4549 = vmatprep.subr.mxu0 0.0
  %4550 = vmatpush1.msra.mxu0 0.0
  %4551 = vmatprep.subr.mxu0 0.0
  %4552 = vmatpush1.msra.mxu0 0.0
  %4553 = vmatprep.subr.mxu0 0.0
  %4554 = vmatpush1.msra.mxu0 0.0
  %4555 = vmatprep.subr.mxu0 0.0
  %4556 = vmatpush1.msra.mxu0 0.0
  %4557 = vmatprep.subr.mxu0 0.0
  %4558 = vmatpush1.msra.mxu0 0.0
  %4559 = vmatprep.subr.mxu0 0.0
  %4560 = vmatpush1.msra.mxu0 0.0
  %4561 = vmatprep.subr.mxu0 0.0
  %4562 = vmatpush1.msra.mxu0 0.0
  %4563 = vmatprep.subr.mxu0 0.0
  %4564 = vmatpush1.msra.mxu0 0.0
  %4565 = vmatprep.subr.mxu0 0.0
  %4566 = vmatpush1.msra.mxu0 0.0
  %4567 = vmatprep.subr.mxu0 0.0
  %4568 = vmatpush1.msra.mxu0 0.0
  %4569 = vmatprep.subr.mxu0 0.0
  %4570 = vmatpush1.msra.mxu0 0.0
  %4571 = vmatprep.subr.mxu0 0.0
  %4572 = vmatpush1.msra.mxu0 0.0
  %4573 = vmatprep.subr.mxu0 0.0
  %4574 = vmatpush1.msra.mxu0 0.0
  %4575 = vmatprep.subr.mxu0 0.0
  %4576 = vmatpush1.msra.mxu0 0.0
  %4577 = vmatprep.subr.mxu0 0.0
  %4578 = vmatpush1.msra.mxu0 0.0
  %4579 = vmatprep.subr.mxu0 0.0
  %4580 = vmatpush1.msra.mxu0 0.0
  %4581 = vmatprep.subr.mxu0 0.0
  %4582 = vmatpush1.msra.mxu0 0.0
  %4583 = vmatprep.subr.mxu0 0.0
  %4584 = vmatpush1.msra.mxu0 0.0
  %4585 = vmatprep.subr.mxu0 0.0
  %4586 = vmatpush1.msra.mxu0 0.0
  %4587 = vmatprep.subr.mxu0 0.0
  %4588 = vmatpush1.msra.mxu0 0.0
  %4589 = vmatprep.subr.mxu0 0.0
  %4590 = vmatpush1.msra.mxu0 0.0
  %4591 = vmatprep.subr.mxu0 0.0
  %4592 = vmatpush1.msra.mxu0 0.0
  %4593 = vmatprep.subr.mxu0 0.0
  %4594 = vmatpush1.msra.mxu0 0.0
  %4595 = vmatprep.subr.mxu0 0.0
  %4596 = vmatpush1.msra.mxu0 0.0
  %4597 = vmatprep.subr.mxu0 0.0
  %4598 = vmatpush1.msra.mxu0 0.0
  %4599 = vmatprep.mubr.f32.mxu0 0.0
  %4600 = vmatmul.mubr.f32.gmra.mrb[0].mxu0 %v4391
  %v4601 = vpop.f32.mrb[0].mxu0
  %v4602 = vadd.f32 0.0, %v4601
  %v4603 = vpop.f32.mrb[0].mxu0
  %v4604 = vadd.f32 0.0, %v4603
  %4605 = vdwg.mxu0
  %v4606 = vadd.f32 %v4357, %v4460
  %v4607 = vadd.f32 %v4358, %v4462
  %v4608 = vadd.f32 %v4359, %v4531
  %v4609 = vadd.f32 %v4360, %v4533
  %v4610 = vadd.f32 %v4361, %v4602
  %v4611 = vadd.f32 %v4362, %v4604
  %v4612 = vmul.f32 %v4606, %v2276
  %v4613 = vmul.f32 %v4607, %v2280
  %v4614 = vmul.f32 %v4608, %v2284
  %v4615 = vmul.f32 %v4609, %v2288
  %v4616 = vmul.f32 %v4610, %v2292
  %v4617 = vmul.f32 %v4611, %v2296
  %v4618 = vadd.f32 %v4612, %v4613
  %v4619 = vadd.f32 %v4618, %v4614
  %v4620 = vadd.f32 %v4619, %v4615
  %v4621 = vadd.f32 %v4620, %v4616
  %v4622 = vadd.f32 %v4621, %v4617
  %4623 = vadd.xlane.f32.xlu0 %v4622
  %v4624 = vpop.xlane.xlu0 %4623
  %v4625 = vmul.f32 %v4612, %v4612
  %v4626 = vmul.f32 %v4613, %v4613
  %v4627 = vmul.f32 %v4614, %v4614
  %v4628 = vmul.f32 %v4615, %v4615
  %v4629 = vmul.f32 %v4616, %v4616
  %v4630 = vmul.f32 %v4617, %v4617
  %v4631 = vadd.f32 %v4625, %v4626
  %v4632 = vadd.f32 %v4631, %v4627
  %v4633 = vadd.f32 %v4632, %v4628
  %v4634 = vadd.f32 %v4633, %v4629
  %v4635 = vadd.f32 %v4634, %v4630
  %4636 = vadd.xlane.f32.xlu0 %v4635
  %v4637 = vpop.xlane.xlu0 %4636
  %v4638 = vmul.f32 %v4624, 0.001953125
  %v4639 = vmul.f32 %v4637, 0.001953125
  %v4640 = vmul.f32 %v4638, %v4638
  %v4641 = vsub.f32 %v4639, %v4640
  %v4642 = vmax.f32 %v4641, 0.0
  %v4643 = vld [vmem:[%s5] sm:$0xff]
  %v4644 = vadd.f32 %v4642, 1e-05
  %v4645 = vrsqrt.pop %v4644
  %v4646 = vmul.f32 %v4643, %v4645
  %v4647 = vld [vmem:[%s6] sm:$0xff]
  %v4648 = vmul.f32 %v4638, %v4646
  %v4649 = vsub.f32 %v4647, %v4648
  %4651 = vset.pattern.permute.xlu0 0
  %4652 = vperm.xlu0 %4651, %v4646
  %v4653 = vpop.permute.xlu0 %4652
  %v4655 = vmul.f32 %v4606, %v4653
  %v4656 = vmul.f32 %v4607, %v4653
  %v4657 = vmul.f32 %v4608, %v4653
  %v4658 = vmul.f32 %v4609, %v4653
  %v4659 = vmul.f32 %v4610, %v4653
  %v4660 = vmul.f32 %v4611, %v4653
  %4662 = vset.pattern.permute.xlu0 0
  %4663 = vperm.xlu0 %4662, %v4649
  %v4664 = vpop.permute.xlu0 %4663
  %v4666 = vadd.f32 %v4655, %v4664
  %v4667 = vadd.f32 %v4656, %v4664
  %v4668 = vadd.f32 %v4657, %v4664
  %v4669 = vadd.f32 %v4658, %v4664
  %v4670 = vadd.f32 %v4659, %v4664
  %v4671 = vadd.f32 %v4660, %v4664
  %v4672 = vmax.f32 %v4666, 0.0
  %v4673 = vmax.f32 %v4667, 0.0
  %v4674 = vmax.f32 %v4668, 0.0
  %v4675 = vmax.f32 %v4669, 0.0
  %v4676 = vmax.f32 %v4670, 0.0
  %v4677 = vmax.f32 %v4671, 0.0
  %v4678 = vmul.f32 %v4672, %v2276
  %v4679 = vmul.f32 %v4673, %v2280
  %v4680 = vmul.f32 %v4674, %v2284
  %v4681 = vmul.f32 %v4675, %v2288
  %v4682 = vmul.f32 %v4676, %v2292
  %v4683 = vmul.f32 %v4677, %v2296
  %4684 = vst [vmem:[%s8] sm:$0xff] %v4678
  %4685 = vst [vmem:[%s8 + $0x8] sm:$0xff] %v4679
  %4686 = vst [vmem:[%s8 + $0x10] sm:$0xff] %v4680
  %4687 = vst [vmem:[%s8 + $0x18] sm:$0xff] %v4681
  %4688 = vst [vmem:[%s8 + $0x20] sm:$0xff] %v4682
  %4689 = vst [vmem:[%s8 + $0x28] sm:$0xff] %v4683
  // Predicated region
  $region34: #{convs1_forward.1} parent=0 // pred_check
    _
  $region35: #{convs1_forward.1} parent=0 // pred_check_branch
    %4691 = sbr.rel (0) target = $region37
  $region36: #{convs1_forward.1} parent=0 // pred_region
    _
  $region37: #{convs1_forward.1} parent=0 // pred_fallthru
    _
  // Predicated region
  $region38: #{convs1_forward.1} parent=0 // pred_check
    _
  $region39: #{convs1_forward.1} parent=0 // pred_check_branch
    %4693 = sbr.rel (0) target = $region41
  $region40: #{convs1_forward.1} parent=0 // pred_region
    _
  $region41: #{convs1_forward.1} parent=0 // pred_fallthru
    _

</llo_original>
